<compile_context>
chip_gen: v7x
topology: tpu7x:2x2x1
jax: 0.10.0
libtpu: 0.0.40
codegen_flags: <defaults>
</compile_context>

<pallas_src>
import jax
import jax.numpy as jnp
from jax.experimental import pallas as pl
from jax.experimental.pallas import tpu as pltpu

# ---- small synthetic config ----
BATCH = 2
C_IN = 4
IMG = 16
PATCH = 4
S = (IMG // PATCH) ** 2            # 16 tokens
P_DIM = C_IN * PATCH * PATCH       # 64 flattened patch dim
D = 32                             # hidden (channel) dim
TOK_HID = 16                       # token-mixing MLP hidden dim
CH_HID = 64                        # channel-mixing MLP hidden dim
NUM_BLOCKS = 2
NUM_CLASSES = 10
LANE_OUT = 128                     # lane-dense classifier output width
EPS = 1e-5                         # nn.LayerNorm default

# TODO(synk): PyTorch nn.GELU defaults to exact erf; jax.nn.gelu's default
# tanh approximation is used here (kernel and reference match each other).


def _layernorm(x, w, b):
    mu = jnp.mean(x, axis=-1, keepdims=True)
    var = jnp.mean((x - mu) ** 2, axis=-1, keepdims=True)
    return (x - mu) * jax.lax.rsqrt(var + EPS) * w + b


def make_mixer_kernel(bb):
    """Kernel processing `bb` batch elements per grid step (statically unrolled)."""

    def mixer_kernel(patches_ref, w_emb_ref, b_emb_ref,
                     ln1_w_ref, ln1_b_ref, tw1_ref, tb1_ref, tw2_ref, tb2_ref,
                     ln2_w_ref, ln2_b_ref, cw1_ref, cb1_ref, cw2_ref, cb2_ref,
                     lnc_w_ref, lnc_b_ref, wc_ref, bc_ref, out_ref):
        for b in range(bb):                          # static unroll over batch block
            # --- patch embedding: (S, P_DIM) @ (P_DIM, D) + b -> (S, D) ---
            x = jnp.dot(patches_ref[b], w_emb_ref[...],
                        preferred_element_type=jnp.float32) + b_emb_ref[...]

            for i in range(NUM_BLOCKS):              # static unroll over mixer blocks
                # --- token mixing: W1 @ y -> (TOK_HID, D); W2 @ h -> (S, D) ---
                # (weights stored pre-transposed, so no transposes needed)
                y = _layernorm(x, ln1_w_ref[i], ln1_b_ref[i])               # (S, D)
                h = jnp.dot(tw1_ref[i], y,
                            preferred_element_type=jnp.float32) + tb1_ref[i]  # (TOK_HID, D)
                h = jax.nn.gelu(h)
                h = jnp.dot(tw2_ref[i], h,
                            preferred_element_type=jnp.float32) + tb2_ref[i]  # (S, D)
                x = x + h

                # --- channel mixing (mix across the hidden axis) ---
                y = _layernorm(x, ln2_w_ref[i], ln2_b_ref[i])               # (S, D)
                h = jnp.dot(y, cw1_ref[i],
                            preferred_element_type=jnp.float32) + cb1_ref[i]  # (S, CH_HID)
                h = jax.nn.gelu(h)
                h = jnp.dot(h, cw2_ref[i],
                            preferred_element_type=jnp.float32) + cb2_ref[i]  # (S, D)
                x = x + h

            # --- classifier: LN -> mean pool over tokens -> Linear (lane-dense) ---
            y = _layernorm(x, lnc_w_ref[...], lnc_b_ref[...])
            pooled = jnp.mean(y, axis=0, keepdims=True)                      # (1, D)
            out_ref[b] = jnp.dot(pooled, wc_ref[...],
                                 preferred_element_type=jnp.float32) + bc_ref[...]

    return mixer_kernel


def _full_spec(shape):
    nd = len(shape)
    return pl.BlockSpec(tuple(shape), lambda g, _nd=nd: (0,) * _nd)


def init_params(key):
    ks = jax.random.split(key, 6)
    std = 0.02
    return {
        "w_emb": jax.random.normal(ks[0], (P_DIM, D), jnp.float32) * std,
        "b_emb": jnp.zeros((1, D), jnp.float32),
        "ln1_w": jnp.ones((NUM_BLOCKS, 1, D), jnp.float32),
        "ln1_b": jnp.zeros((NUM_BLOCKS, 1, D), jnp.float32),
        # token-mixing weights stored in (out, in) layout so the kernel needs no transposes
        # (a real checkpoint load keeps tw1 as-is and transposes tw2/cw*/w_emb/wc).
        "tw1": jax.random.normal(ks[1], (NUM_BLOCKS, TOK_HID, S), jnp.float32) * std,
        "tb1": jnp.zeros((NUM_BLOCKS, TOK_HID, 1), jnp.float32),
        "tw2": jax.random.normal(ks[2], (NUM_BLOCKS, S, TOK_HID), jnp.float32) * std,
        "tb2": jnp.zeros((NUM_BLOCKS, S, 1), jnp.float32),
        "ln2_w": jnp.ones((NUM_BLOCKS, 1, D), jnp.float32),
        "ln2_b": jnp.zeros((NUM_BLOCKS, 1, D), jnp.float32),
        "cw1": jax.random.normal(ks[3], (NUM_BLOCKS, D, CH_HID), jnp.float32) * std,
        "cb1": jnp.zeros((NUM_BLOCKS, 1, CH_HID), jnp.float32),
        "cw2": jax.random.normal(ks[4], (NUM_BLOCKS, CH_HID, D), jnp.float32) * std,
        "cb2": jnp.zeros((NUM_BLOCKS, 1, D), jnp.float32),
        "lnc_w": jnp.ones((1, D), jnp.float32),
        "lnc_b": jnp.zeros((1, D), jnp.float32),
        "wc": jax.random.normal(ks[5], (D, NUM_CLASSES), jnp.float32) * std,
        "bc": jnp.zeros((1, NUM_CLASSES), jnp.float32),
    }


PARAM_ORDER = ["w_emb", "b_emb", "ln1_w", "ln1_b", "tw1", "tb1", "tw2", "tb2",
               "ln2_w", "ln2_b", "cw1", "cb1", "cw2", "cb2", "lnc_w", "lnc_b"]


def patchify(x):
    # NCHW -> (B, S, C*ps*ps), per-patch order (C, ph, pw) like a Conv2d patch embed
    B, C, H, W = x.shape
    xp = x.reshape(B, C, H // PATCH, PATCH, W // PATCH, PATCH)
    xp = xp.transpose(0, 2, 4, 1, 3, 5).reshape(B, S, P_DIM)
    return xp


def _tensorcores_per_device():
    """Best-effort TensorCore count per device (1 or 2); only affects grid choice."""
    try:
        kind = jax.devices()[0].device_kind.lower()
    except Exception:
        return 1
    return 2 if any(tag in kind for tag in ("v4", "v5p", "v7")) else 1


def build_forward(batch):
    # Multi-TC parts (v7x, v4/v5p megacore): one batch element per grid step,
    # "parallel" semantics shards the batch across cores.
    # Single-TC parts (v5e/v6e): collapse to a single grid step (no per-step overhead).
    bb = 1 if _tensorcores_per_device() > 1 else batch
    grid = (batch // bb,)
    kernel = make_mixer_kernel(bb)

    flops = batch * (
        2 * S * P_DIM * D
        + NUM_BLOCKS * (2 * TOK_HID * S * D + 2 * S * TOK_HID * D
                        + 2 * S * D * CH_HID + 2 * S * CH_HID * D)
        + 2 * D * LANE_OUT)
    transcendentals = batch * (NUM_BLOCKS * (TOK_HID * D + S * CH_HID)
                               + (2 * NUM_BLOCKS + 1) * S)

    @jax.jit
    def forward(x, params):
        patches = patchify(x)

        # Lane-dense classifier: pad weight/bias to 128 output lanes.
        wc_pad = jnp.zeros((D, LANE_OUT), jnp.float32).at[:, :NUM_CLASSES].set(params["wc"])
        bc_pad = jnp.zeros((1, LANE_OUT), jnp.float32).at[:, :NUM_CLASSES].set(params["bc"])
        weights = [params[k] for k in PARAM_ORDER] + [wc_pad, bc_pad]

        in_specs = [pl.BlockSpec((bb, S, P_DIM), lambda g: (g, 0, 0))]
        in_specs += [_full_spec(w.shape) for w in weights]
        out_spec = pl.BlockSpec((bb, 1, LANE_OUT), lambda g: (g, 0, 0))

        bytes_accessed = (patches.size * patches.dtype.itemsize
                          + sum(w.size * w.dtype.itemsize for w in weights)
                          + batch * LANE_OUT * 4)

        out = pl.pallas_call(
            kernel,
            out_shape=jax.ShapeDtypeStruct((batch, 1, LANE_OUT), jnp.float32),
            grid_spec=pltpu.PrefetchScalarGridSpec(
                num_scalar_prefetch=0,
                grid=grid,
                in_specs=in_specs,
                out_specs=out_spec,
            ),
            compiler_params=pltpu.CompilerParams(
                dimension_semantics=("parallel",)),
            cost_estimate=pl.CostEstimate(
                flops=int(flops),
                transcendentals=int(transcendentals),
                bytes_accessed=int(bytes_accessed)),
        )(patches, *weights)
        return out[:, 0, :NUM_CLASSES]

    return forward


def mlp_mixer_reference(x, params):
    """Pure-JAX reference of the same forward pass (for validation)."""
    xp = patchify(x)                                                    # (B, S, P)
    h = jnp.einsum("bsp,pd->bsd", xp, params["w_emb"]) + params["b_emb"]
    for i in range(NUM_BLOCKS):
        y = _layernorm(h, params["ln1_w"][i], params["ln1_b"][i])
        t = jax.nn.gelu(jnp.einsum("hs,bsd->bhd", params["tw1"][i], y) + params["tb1"][i])
        t = jnp.einsum("sh,bhd->bsd", params["tw2"][i], t) + params["tb2"][i]
        h = h + t
        y = _layernorm(h, params["ln2_w"][i], params["ln2_b"][i])
        c = jax.nn.gelu(jnp.einsum("bsd,dh->bsh", y, params["cw1"][i]) + params["cb1"][i])
        c = jnp.einsum("bsh,hd->bsd", c, params["cw2"][i]) + params["cb2"][i]
        h = h + c
    y = _layernorm(h, params["lnc_w"], params["lnc_b"])
    pooled = jnp.mean(y, axis=1)                                        # (B, D)
    return pooled @ params["wc"] + params["bc"]


if __name__ == "__main__":
    key = jax.random.PRNGKey(0)
    k_x, k_p = jax.random.split(key)
    x = jax.random.normal(k_x, (BATCH, C_IN, IMG, IMG), jnp.float32)
    params = init_params(k_p)

    forward = build_forward(BATCH)
    logits = forward(x, params)
    jax.block_until_ready(logits)

    ref = mlp_mixer_reference(x, params)
    assert logits.shape == (BATCH, NUM_CLASSES)
    assert jnp.allclose(logits, ref, atol=1e-4, rtol=1e-4), "mismatch vs reference"

    print("KERNEL_OK")
</pallas_src>

<mosaic_0001>
module attributes {stable_mosaic.version = 11 : i64} {
  func.func @mixer_kernel(%arg0: i32, %arg1: memref<2x16x64xf32, #tpu.memory_space<vmem>>, %arg2: memref<64x32xf32, #tpu.memory_space<vmem>>, %arg3: memref<1x32xf32, #tpu.memory_space<vmem>>, %arg4: memref<2x1x32xf32, #tpu.memory_space<vmem>>, %arg5: memref<2x1x32xf32, #tpu.memory_space<vmem>>, %arg6: memref<2x16x16xf32, #tpu.memory_space<vmem>>, %arg7: memref<2x16x1xf32, #tpu.memory_space<vmem>>, %arg8: memref<2x16x16xf32, #tpu.memory_space<vmem>>, %arg9: memref<2x16x1xf32, #tpu.memory_space<vmem>>, %arg10: memref<2x1x32xf32, #tpu.memory_space<vmem>>, %arg11: memref<2x1x32xf32, #tpu.memory_space<vmem>>, %arg12: memref<2x32x64xf32, #tpu.memory_space<vmem>>, %arg13: memref<2x1x64xf32, #tpu.memory_space<vmem>>, %arg14: memref<2x64x32xf32, #tpu.memory_space<vmem>>, %arg15: memref<2x1x32xf32, #tpu.memory_space<vmem>>, %arg16: memref<1x32xf32, #tpu.memory_space<vmem>>, %arg17: memref<1x32xf32, #tpu.memory_space<vmem>>, %arg18: memref<32x128xf32, #tpu.memory_space<vmem>>, %arg19: memref<1x128xf32, #tpu.memory_space<vmem>>, %arg20: memref<2x1x128xf32, #tpu.memory_space<vmem>>) attributes {dimension_semantics = [#tpu.dimension_semantics<parallel>], iteration_bounds = array<i64: 1>, scalar_prefetch = 0 : i64, scratch_operands = 0 : i64, tpu.core_type = #tpu.core_type<tc>, window_params = [{transform_indices = @transform_0, window_bounds = array<i64: 2, 16, 64>}, {pipeline_mode = #tpu.pipeline_mode<synchronous>, transform_indices = @transform_1, window_bounds = array<i64: 64, 32>}, {pipeline_mode = #tpu.pipeline_mode<synchronous>, transform_indices = @transform_2, window_bounds = array<i64: 1, 32>}, {pipeline_mode = #tpu.pipeline_mode<synchronous>, transform_indices = @transform_3, window_bounds = array<i64: 2, 1, 32>}, {pipeline_mode = #tpu.pipeline_mode<synchronous>, transform_indices = @transform_4, window_bounds = array<i64: 2, 1, 32>}, {pipeline_mode = #tpu.pipeline_mode<synchronous>, transform_indices = @transform_5, window_bounds = array<i64: 2, 16, 16>}, {pipeline_mode = #tpu.pipeline_mode<synchronous>, transform_indices = @transform_6, window_bounds = array<i64: 2, 16, 1>}, {pipeline_mode = #tpu.pipeline_mode<synchronous>, transform_indices = @transform_7, window_bounds = array<i64: 2, 16, 16>}, {pipeline_mode = #tpu.pipeline_mode<synchronous>, transform_indices = @transform_8, window_bounds = array<i64: 2, 16, 1>}, {pipeline_mode = #tpu.pipeline_mode<synchronous>, transform_indices = @transform_9, window_bounds = array<i64: 2, 1, 32>}, {pipeline_mode = #tpu.pipeline_mode<synchronous>, transform_indices = @transform_10, window_bounds = array<i64: 2, 1, 32>}, {pipeline_mode = #tpu.pipeline_mode<synchronous>, transform_indices = @transform_11, window_bounds = array<i64: 2, 32, 64>}, {pipeline_mode = #tpu.pipeline_mode<synchronous>, transform_indices = @transform_12, window_bounds = array<i64: 2, 1, 64>}, {pipeline_mode = #tpu.pipeline_mode<synchronous>, transform_indices = @transform_13, window_bounds = array<i64: 2, 64, 32>}, {pipeline_mode = #tpu.pipeline_mode<synchronous>, transform_indices = @transform_14, window_bounds = array<i64: 2, 1, 32>}, {pipeline_mode = #tpu.pipeline_mode<synchronous>, transform_indices = @transform_15, window_bounds = array<i64: 1, 32>}, {pipeline_mode = #tpu.pipeline_mode<synchronous>, transform_indices = @transform_16, window_bounds = array<i64: 1, 32>}, {pipeline_mode = #tpu.pipeline_mode<synchronous>, transform_indices = @transform_17, window_bounds = array<i64: 32, 128>}, {pipeline_mode = #tpu.pipeline_mode<synchronous>, transform_indices = @transform_18, window_bounds = array<i64: 1, 128>}, {transform_indices = @transform_19, window_bounds = array<i64: 2, 1, 128>}]} {
    %c0 = arith.constant 0 : index
    %c0_0 = arith.constant 0 : index
    %c0_1 = arith.constant 0 : index
    %0 = vector.load %arg1[%c0, %c0_0, %c0_1] : memref<2x16x64xf32, #tpu.memory_space<vmem>>, vector<1x16x64xf32>
    %1 = vector.shape_cast %0 : vector<1x16x64xf32> to vector<16x64xf32>
    %c0_2 = arith.constant 0 : index
    %c0_3 = arith.constant 0 : index
    %2 = vector.load %arg2[%c0_2, %c0_3] : memref<64x32xf32, #tpu.memory_space<vmem>>, vector<64x32xf32>
    %cst = arith.constant dense<0.000000e+00> : vector<16x32xf32>
    %3 = tpu.matmul %1, %2, %cst {dimension_numbers = #tpu.dot_dimension_numbers<[1], [0], [0], [1], [0, 0, 1, 1], [], []>} : vector<16x64xf32>, vector<64x32xf32>, vector<16x32xf32> -> vector<16x32xf32>
    %c0_4 = arith.constant 0 : index
    %c0_5 = arith.constant 0 : index
    %4 = vector.load %arg3[%c0_4, %c0_5] : memref<1x32xf32, #tpu.memory_space<vmem>>, vector<1x32xf32>
    %5 = vector.broadcast %4 : vector<1x32xf32> to vector<16x32xf32>
    %6 = arith.addf %3, %5 : vector<16x32xf32>
    %c0_6 = arith.constant 0 : index
    %c0_7 = arith.constant 0 : index
    %c0_8 = arith.constant 0 : index
    %7 = vector.load %arg4[%c0_6, %c0_7, %c0_8] : memref<2x1x32xf32, #tpu.memory_space<vmem>>, vector<1x1x32xf32>
    %8 = vector.shape_cast %7 : vector<1x1x32xf32> to vector<1x32xf32>
    %c0_9 = arith.constant 0 : index
    %c0_10 = arith.constant 0 : index
    %c0_11 = arith.constant 0 : index
    %9 = vector.load %arg5[%c0_9, %c0_10, %c0_11] : memref<2x1x32xf32, #tpu.memory_space<vmem>>, vector<1x1x32xf32>
    %10 = vector.shape_cast %9 : vector<1x1x32xf32> to vector<1x32xf32>
    %cst_12 = arith.constant dense<0.000000e+00> : vector<16xf32>
    %11 = vector.multi_reduction <add>, %6, %cst_12 [1] : vector<16x32xf32> to vector<16xf32>
    %12 = vector.shape_cast %11 : vector<16xf32> to vector<16x1xf32>
    %cst_13 = arith.constant 3.200000e+01 : f32
    %13 = vector.broadcast %cst_13 : f32 to vector<16x1xf32>
    %14 = arith.divf %12, %13 : vector<16x1xf32>
    %15 = vector.broadcast %14 : vector<16x1xf32> to vector<16x32xf32>
    %16 = arith.subf %6, %15 : vector<16x32xf32>
    %17 = arith.mulf %16, %16 : vector<16x32xf32>
    %cst_14 = arith.constant dense<0.000000e+00> : vector<16xf32>
    %18 = vector.multi_reduction <add>, %17, %cst_14 [1] : vector<16x32xf32> to vector<16xf32>
    %19 = vector.shape_cast %18 : vector<16xf32> to vector<16x1xf32>
    %cst_15 = arith.constant 3.200000e+01 : f32
    %20 = vector.broadcast %cst_15 : f32 to vector<16x1xf32>
    %21 = arith.divf %19, %20 : vector<16x1xf32>
    %22 = vector.broadcast %14 : vector<16x1xf32> to vector<16x32xf32>
    %23 = arith.subf %6, %22 : vector<16x32xf32>
    %cst_16 = arith.constant 9.99999974E-6 : f32
    %24 = vector.broadcast %cst_16 : f32 to vector<16x1xf32>
    %25 = arith.addf %21, %24 : vector<16x1xf32>
    %26 = math.rsqrt %25 : vector<16x1xf32>
    %27 = vector.broadcast %26 : vector<16x1xf32> to vector<16x32xf32>
    %28 = arith.mulf %23, %27 : vector<16x32xf32>
    %29 = vector.broadcast %8 : vector<1x32xf32> to vector<16x32xf32>
    %30 = arith.mulf %28, %29 : vector<16x32xf32>
    %31 = vector.broadcast %10 : vector<1x32xf32> to vector<16x32xf32>
    %32 = arith.addf %30, %31 : vector<16x32xf32>
    %c0_17 = arith.constant 0 : index
    %c0_18 = arith.constant 0 : index
    %c0_19 = arith.constant 0 : index
    %33 = vector.load %arg6[%c0_17, %c0_18, %c0_19] : memref<2x16x16xf32, #tpu.memory_space<vmem>>, vector<1x16x16xf32>
    %34 = vector.shape_cast %33 : vector<1x16x16xf32> to vector<16x16xf32>
    %cst_20 = arith.constant dense<0.000000e+00> : vector<16x32xf32>
    %35 = tpu.matmul %34, %32, %cst_20 {dimension_numbers = #tpu.dot_dimension_numbers<[1], [0], [0], [1], [0, 0, 1, 1], [], []>} : vector<16x16xf32>, vector<16x32xf32>, vector<16x32xf32> -> vector<16x32xf32>
    %c0_21 = arith.constant 0 : index
    %c0_22 = arith.constant 0 : index
    %c0_23 = arith.constant 0 : index
    %36 = vector.load %arg7[%c0_21, %c0_22, %c0_23] : memref<2x16x1xf32, #tpu.memory_space<vmem>>, vector<1x16x1xf32>
    %37 = vector.shape_cast %36 : vector<1x16x1xf32> to vector<16x1xf32>
    %38 = vector.broadcast %37 : vector<16x1xf32> to vector<16x32xf32>
    %39 = arith.addf %35, %38 : vector<16x32xf32>
    %40 = arith.mulf %39, %39 : vector<16x32xf32>
    %41 = arith.mulf %39, %40 : vector<16x32xf32>
    %cst_24 = arith.constant 4.471500e-02 : f32
    %42 = vector.broadcast %cst_24 : f32 to vector<16x32xf32>
    %43 = arith.mulf %42, %41 : vector<16x32xf32>
    %44 = arith.addf %39, %43 : vector<16x32xf32>
    %cst_25 = arith.constant 0.797884583 : f32
    %45 = vector.broadcast %cst_25 : f32 to vector<16x32xf32>
    %46 = arith.mulf %45, %44 : vector<16x32xf32>
    %47 = math.tanh %46 : vector<16x32xf32>
    %cst_26 = arith.constant 1.000000e+00 : f32
    %48 = vector.broadcast %cst_26 : f32 to vector<16x32xf32>
    %49 = arith.addf %48, %47 : vector<16x32xf32>
    %cst_27 = arith.constant 5.000000e-01 : f32
    %50 = vector.broadcast %cst_27 : f32 to vector<16x32xf32>
    %51 = arith.mulf %50, %49 : vector<16x32xf32>
    %52 = arith.mulf %39, %51 : vector<16x32xf32>
    %c0_28 = arith.constant 0 : index
    %c0_29 = arith.constant 0 : index
    %c0_30 = arith.constant 0 : index
    %53 = vector.load %arg8[%c0_28, %c0_29, %c0_30] : memref<2x16x16xf32, #tpu.memory_space<vmem>>, vector<1x16x16xf32>
    %54 = vector.shape_cast %53 : vector<1x16x16xf32> to vector<16x16xf32>
    %cst_31 = arith.constant dense<0.000000e+00> : vector<16x32xf32>
    %55 = tpu.matmul %54, %52, %cst_31 {dimension_numbers = #tpu.dot_dimension_numbers<[1], [0], [0], [1], [0, 0, 1, 1], [], []>} : vector<16x16xf32>, vector<16x32xf32>, vector<16x32xf32> -> vector<16x32xf32>
    %c0_32 = arith.constant 0 : index
    %c0_33 = arith.constant 0 : index
    %c0_34 = arith.constant 0 : index
    %56 = vector.load %arg9[%c0_32, %c0_33, %c0_34] : memref<2x16x1xf32, #tpu.memory_space<vmem>>, vector<1x16x1xf32>
    %57 = vector.shape_cast %56 : vector<1x16x1xf32> to vector<16x1xf32>
    %58 = vector.broadcast %57 : vector<16x1xf32> to vector<16x32xf32>
    %59 = arith.addf %55, %58 : vector<16x32xf32>
    %60 = arith.addf %6, %59 : vector<16x32xf32>
    %c0_35 = arith.constant 0 : index
    %c0_36 = arith.constant 0 : index
    %c0_37 = arith.constant 0 : index
    %61 = vector.load %arg10[%c0_35, %c0_36, %c0_37] : memref<2x1x32xf32, #tpu.memory_space<vmem>>, vector<1x1x32xf32>
    %62 = vector.shape_cast %61 : vector<1x1x32xf32> to vector<1x32xf32>
    %c0_38 = arith.constant 0 : index
    %c0_39 = arith.constant 0 : index
    %c0_40 = arith.constant 0 : index
    %63 = vector.load %arg11[%c0_38, %c0_39, %c0_40] : memref<2x1x32xf32, #tpu.memory_space<vmem>>, vector<1x1x32xf32>
    %64 = vector.shape_cast %63 : vector<1x1x32xf32> to vector<1x32xf32>
    %cst_41 = arith.constant dense<0.000000e+00> : vector<16xf32>
    %65 = vector.multi_reduction <add>, %60, %cst_41 [1] : vector<16x32xf32> to vector<16xf32>
    %66 = vector.shape_cast %65 : vector<16xf32> to vector<16x1xf32>
    %cst_42 = arith.constant 3.200000e+01 : f32
    %67 = vector.broadcast %cst_42 : f32 to vector<16x1xf32>
    %68 = arith.divf %66, %67 : vector<16x1xf32>
    %69 = vector.broadcast %68 : vector<16x1xf32> to vector<16x32xf32>
    %70 = arith.subf %60, %69 : vector<16x32xf32>
    %71 = arith.mulf %70, %70 : vector<16x32xf32>
    %cst_43 = arith.constant dense<0.000000e+00> : vector<16xf32>
    %72 = vector.multi_reduction <add>, %71, %cst_43 [1] : vector<16x32xf32> to vector<16xf32>
    %73 = vector.shape_cast %72 : vector<16xf32> to vector<16x1xf32>
    %cst_44 = arith.constant 3.200000e+01 : f32
    %74 = vector.broadcast %cst_44 : f32 to vector<16x1xf32>
    %75 = arith.divf %73, %74 : vector<16x1xf32>
    %76 = vector.broadcast %68 : vector<16x1xf32> to vector<16x32xf32>
    %77 = arith.subf %60, %76 : vector<16x32xf32>
    %cst_45 = arith.constant 9.99999974E-6 : f32
    %78 = vector.broadcast %cst_45 : f32 to vector<16x1xf32>
    %79 = arith.addf %75, %78 : vector<16x1xf32>
    %80 = math.rsqrt %79 : vector<16x1xf32>
    %81 = vector.broadcast %80 : vector<16x1xf32> to vector<16x32xf32>
    %82 = arith.mulf %77, %81 : vector<16x32xf32>
    %83 = vector.broadcast %62 : vector<1x32xf32> to vector<16x32xf32>
    %84 = arith.mulf %82, %83 : vector<16x32xf32>
    %85 = vector.broadcast %64 : vector<1x32xf32> to vector<16x32xf32>
    %86 = arith.addf %84, %85 : vector<16x32xf32>
    %c0_46 = arith.constant 0 : index
    %c0_47 = arith.constant 0 : index
    %c0_48 = arith.constant 0 : index
    %87 = vector.load %arg12[%c0_46, %c0_47, %c0_48] : memref<2x32x64xf32, #tpu.memory_space<vmem>>, vector<1x32x64xf32>
    %88 = vector.shape_cast %87 : vector<1x32x64xf32> to vector<32x64xf32>
    %cst_49 = arith.constant dense<0.000000e+00> : vector<16x64xf32>
    %89 = tpu.matmul %86, %88, %cst_49 {dimension_numbers = #tpu.dot_dimension_numbers<[1], [0], [0], [1], [0, 0, 1, 1], [], []>} : vector<16x32xf32>, vector<32x64xf32>, vector<16x64xf32> -> vector<16x64xf32>
    %c0_50 = arith.constant 0 : index
    %c0_51 = arith.constant 0 : index
    %c0_52 = arith.constant 0 : index
    %90 = vector.load %arg13[%c0_50, %c0_51, %c0_52] : memref<2x1x64xf32, #tpu.memory_space<vmem>>, vector<1x1x64xf32>
    %91 = vector.shape_cast %90 : vector<1x1x64xf32> to vector<1x64xf32>
    %92 = vector.broadcast %91 : vector<1x64xf32> to vector<16x64xf32>
    %93 = arith.addf %89, %92 : vector<16x64xf32>
    %94 = arith.mulf %93, %93 : vector<16x64xf32>
    %95 = arith.mulf %93, %94 : vector<16x64xf32>
    %cst_53 = arith.constant 4.471500e-02 : f32
    %96 = vector.broadcast %cst_53 : f32 to vector<16x64xf32>
    %97 = arith.mulf %96, %95 : vector<16x64xf32>
    %98 = arith.addf %93, %97 : vector<16x64xf32>
    %cst_54 = arith.constant 0.797884583 : f32
    %99 = vector.broadcast %cst_54 : f32 to vector<16x64xf32>
    %100 = arith.mulf %99, %98 : vector<16x64xf32>
    %101 = math.tanh %100 : vector<16x64xf32>
    %cst_55 = arith.constant 1.000000e+00 : f32
    %102 = vector.broadcast %cst_55 : f32 to vector<16x64xf32>
    %103 = arith.addf %102, %101 : vector<16x64xf32>
    %cst_56 = arith.constant 5.000000e-01 : f32
    %104 = vector.broadcast %cst_56 : f32 to vector<16x64xf32>
    %105 = arith.mulf %104, %103 : vector<16x64xf32>
    %106 = arith.mulf %93, %105 : vector<16x64xf32>
    %c0_57 = arith.constant 0 : index
    %c0_58 = arith.constant 0 : index
    %c0_59 = arith.constant 0 : index
    %107 = vector.load %arg14[%c0_57, %c0_58, %c0_59] : memref<2x64x32xf32, #tpu.memory_space<vmem>>, vector<1x64x32xf32>
    %108 = vector.shape_cast %107 : vector<1x64x32xf32> to vector<64x32xf32>
    %cst_60 = arith.constant dense<0.000000e+00> : vector<16x32xf32>
    %109 = tpu.matmul %106, %108, %cst_60 {dimension_numbers = #tpu.dot_dimension_numbers<[1], [0], [0], [1], [0, 0, 1, 1], [], []>} : vector<16x64xf32>, vector<64x32xf32>, vector<16x32xf32> -> vector<16x32xf32>
    %c0_61 = arith.constant 0 : index
    %c0_62 = arith.constant 0 : index
    %c0_63 = arith.constant 0 : index
    %110 = vector.load %arg15[%c0_61, %c0_62, %c0_63] : memref<2x1x32xf32, #tpu.memory_space<vmem>>, vector<1x1x32xf32>
    %111 = vector.shape_cast %110 : vector<1x1x32xf32> to vector<1x32xf32>
    %112 = vector.broadcast %111 : vector<1x32xf32> to vector<16x32xf32>
    %113 = arith.addf %109, %112 : vector<16x32xf32>
    %114 = arith.addf %60, %113 : vector<16x32xf32>
    %c1 = arith.constant 1 : index
    %c0_64 = arith.constant 0 : index
    %c0_65 = arith.constant 0 : index
    %115 = vector.load %arg4[%c1, %c0_64, %c0_65] : memref<2x1x32xf32, #tpu.memory_space<vmem>>, vector<1x1x32xf32>
    %116 = vector.shape_cast %115 : vector<1x1x32xf32> to vector<1x32xf32>
    %c1_66 = arith.constant 1 : index
    %c0_67 = arith.constant 0 : index
    %c0_68 = arith.constant 0 : index
    %117 = vector.load %arg5[%c1_66, %c0_67, %c0_68] : memref<2x1x32xf32, #tpu.memory_space<vmem>>, vector<1x1x32xf32>
    %118 = vector.shape_cast %117 : vector<1x1x32xf32> to vector<1x32xf32>
    %cst_69 = arith.constant dense<0.000000e+00> : vector<16xf32>
    %119 = vector.multi_reduction <add>, %114, %cst_69 [1] : vector<16x32xf32> to vector<16xf32>
    %120 = vector.shape_cast %119 : vector<16xf32> to vector<16x1xf32>
    %cst_70 = arith.constant 3.200000e+01 : f32
    %121 = vector.broadcast %cst_70 : f32 to vector<16x1xf32>
    %122 = arith.divf %120, %121 : vector<16x1xf32>
    %123 = vector.broadcast %122 : vector<16x1xf32> to vector<16x32xf32>
    %124 = arith.subf %114, %123 : vector<16x32xf32>
    %125 = arith.mulf %124, %124 : vector<16x32xf32>
    %cst_71 = arith.constant dense<0.000000e+00> : vector<16xf32>
    %126 = vector.multi_reduction <add>, %125, %cst_71 [1] : vector<16x32xf32> to vector<16xf32>
    %127 = vector.shape_cast %126 : vector<16xf32> to vector<16x1xf32>
    %cst_72 = arith.constant 3.200000e+01 : f32
    %128 = vector.broadcast %cst_72 : f32 to vector<16x1xf32>
    %129 = arith.divf %127, %128 : vector<16x1xf32>
    %130 = vector.broadcast %122 : vector<16x1xf32> to vector<16x32xf32>
    %131 = arith.subf %114, %130 : vector<16x32xf32>
    %cst_73 = arith.constant 9.99999974E-6 : f32
    %132 = vector.broadcast %cst_73 : f32 to vector<16x1xf32>
    %133 = arith.addf %129, %132 : vector<16x1xf32>
    %134 = math.rsqrt %133 : vector<16x1xf32>
    %135 = vector.broadcast %134 : vector<16x1xf32> to vector<16x32xf32>
    %136 = arith.mulf %131, %135 : vector<16x32xf32>
    %137 = vector.broadcast %116 : vector<1x32xf32> to vector<16x32xf32>
    %138 = arith.mulf %136, %137 : vector<16x32xf32>
    %139 = vector.broadcast %118 : vector<1x32xf32> to vector<16x32xf32>
    %140 = arith.addf %138, %139 : vector<16x32xf32>
    %c1_74 = arith.constant 1 : index
    %c0_75 = arith.constant 0 : index
    %c0_76 = arith.constant 0 : index
    %141 = vector.load %arg6[%c1_74, %c0_75, %c0_76] : memref<2x16x16xf32, #tpu.memory_space<vmem>>, vector<1x16x16xf32>
    %142 = vector.shape_cast %141 : vector<1x16x16xf32> to vector<16x16xf32>
    %cst_77 = arith.constant dense<0.000000e+00> : vector<16x32xf32>
    %143 = tpu.matmul %142, %140, %cst_77 {dimension_numbers = #tpu.dot_dimension_numbers<[1], [0], [0], [1], [0, 0, 1, 1], [], []>} : vector<16x16xf32>, vector<16x32xf32>, vector<16x32xf32> -> vector<16x32xf32>
    %c1_78 = arith.constant 1 : index
    %c0_79 = arith.constant 0 : index
    %c0_80 = arith.constant 0 : index
    %144 = vector.load %arg7[%c1_78, %c0_79, %c0_80] : memref<2x16x1xf32, #tpu.memory_space<vmem>>, vector<1x16x1xf32>
    %145 = vector.shape_cast %144 : vector<1x16x1xf32> to vector<16x1xf32>
    %146 = vector.broadcast %145 : vector<16x1xf32> to vector<16x32xf32>
    %147 = arith.addf %143, %146 : vector<16x32xf32>
    %148 = arith.mulf %147, %147 : vector<16x32xf32>
    %149 = arith.mulf %147, %148 : vector<16x32xf32>
    %cst_81 = arith.constant 4.471500e-02 : f32
    %150 = vector.broadcast %cst_81 : f32 to vector<16x32xf32>
    %151 = arith.mulf %150, %149 : vector<16x32xf32>
    %152 = arith.addf %147, %151 : vector<16x32xf32>
    %cst_82 = arith.constant 0.797884583 : f32
    %153 = vector.broadcast %cst_82 : f32 to vector<16x32xf32>
    %154 = arith.mulf %153, %152 : vector<16x32xf32>
    %155 = math.tanh %154 : vector<16x32xf32>
    %cst_83 = arith.constant 1.000000e+00 : f32
    %156 = vector.broadcast %cst_83 : f32 to vector<16x32xf32>
    %157 = arith.addf %156, %155 : vector<16x32xf32>
    %cst_84 = arith.constant 5.000000e-01 : f32
    %158 = vector.broadcast %cst_84 : f32 to vector<16x32xf32>
    %159 = arith.mulf %158, %157 : vector<16x32xf32>
    %160 = arith.mulf %147, %159 : vector<16x32xf32>
    %c1_85 = arith.constant 1 : index
    %c0_86 = arith.constant 0 : index
    %c0_87 = arith.constant 0 : index
    %161 = vector.load %arg8[%c1_85, %c0_86, %c0_87] : memref<2x16x16xf32, #tpu.memory_space<vmem>>, vector<1x16x16xf32>
    %162 = vector.shape_cast %161 : vector<1x16x16xf32> to vector<16x16xf32>
    %cst_88 = arith.constant dense<0.000000e+00> : vector<16x32xf32>
    %163 = tpu.matmul %162, %160, %cst_88 {dimension_numbers = #tpu.dot_dimension_numbers<[1], [0], [0], [1], [0, 0, 1, 1], [], []>} : vector<16x16xf32>, vector<16x32xf32>, vector<16x32xf32> -> vector<16x32xf32>
    %c1_89 = arith.constant 1 : index
    %c0_90 = arith.constant 0 : index
    %c0_91 = arith.constant 0 : index
    %164 = vector.load %arg9[%c1_89, %c0_90, %c0_91] : memref<2x16x1xf32, #tpu.memory_space<vmem>>, vector<1x16x1xf32>
    %165 = vector.shape_cast %164 : vector<1x16x1xf32> to vector<16x1xf32>
    %166 = vector.broadcast %165 : vector<16x1xf32> to vector<16x32xf32>
    %167 = arith.addf %163, %166 : vector<16x32xf32>
    %168 = arith.addf %114, %167 : vector<16x32xf32>
    %c1_92 = arith.constant 1 : index
    %c0_93 = arith.constant 0 : index
    %c0_94 = arith.constant 0 : index
    %169 = vector.load %arg10[%c1_92, %c0_93, %c0_94] : memref<2x1x32xf32, #tpu.memory_space<vmem>>, vector<1x1x32xf32>
    %170 = vector.shape_cast %169 : vector<1x1x32xf32> to vector<1x32xf32>
    %c1_95 = arith.constant 1 : index
    %c0_96 = arith.constant 0 : index
    %c0_97 = arith.constant 0 : index
    %171 = vector.load %arg11[%c1_95, %c0_96, %c0_97] : memref<2x1x32xf32, #tpu.memory_space<vmem>>, vector<1x1x32xf32>
    %172 = vector.shape_cast %171 : vector<1x1x32xf32> to vector<1x32xf32>
    %cst_98 = arith.constant dense<0.000000e+00> : vector<16xf32>
    %173 = vector.multi_reduction <add>, %168, %cst_98 [1] : vector<16x32xf32> to vector<16xf32>
    %174 = vector.shape_cast %173 : vector<16xf32> to vector<16x1xf32>
    %cst_99 = arith.constant 3.200000e+01 : f32
    %175 = vector.broadcast %cst_99 : f32 to vector<16x1xf32>
    %176 = arith.divf %174, %175 : vector<16x1xf32>
    %177 = vector.broadcast %176 : vector<16x1xf32> to vector<16x32xf32>
    %178 = arith.subf %168, %177 : vector<16x32xf32>
    %179 = arith.mulf %178, %178 : vector<16x32xf32>
    %cst_100 = arith.constant dense<0.000000e+00> : vector<16xf32>
    %180 = vector.multi_reduction <add>, %179, %cst_100 [1] : vector<16x32xf32> to vector<16xf32>
    %181 = vector.shape_cast %180 : vector<16xf32> to vector<16x1xf32>
    %cst_101 = arith.constant 3.200000e+01 : f32
    %182 = vector.broadcast %cst_101 : f32 to vector<16x1xf32>
    %183 = arith.divf %181, %182 : vector<16x1xf32>
    %184 = vector.broadcast %176 : vector<16x1xf32> to vector<16x32xf32>
    %185 = arith.subf %168, %184 : vector<16x32xf32>
    %cst_102 = arith.constant 9.99999974E-6 : f32
    %186 = vector.broadcast %cst_102 : f32 to vector<16x1xf32>
    %187 = arith.addf %183, %186 : vector<16x1xf32>
    %188 = math.rsqrt %187 : vector<16x1xf32>
    %189 = vector.broadcast %188 : vector<16x1xf32> to vector<16x32xf32>
    %190 = arith.mulf %185, %189 : vector<16x32xf32>
    %191 = vector.broadcast %170 : vector<1x32xf32> to vector<16x32xf32>
    %192 = arith.mulf %190, %191 : vector<16x32xf32>
    %193 = vector.broadcast %172 : vector<1x32xf32> to vector<16x32xf32>
    %194 = arith.addf %192, %193 : vector<16x32xf32>
    %c1_103 = arith.constant 1 : index
    %c0_104 = arith.constant 0 : index
    %c0_105 = arith.constant 0 : index
    %195 = vector.load %arg12[%c1_103, %c0_104, %c0_105] : memref<2x32x64xf32, #tpu.memory_space<vmem>>, vector<1x32x64xf32>
    %196 = vector.shape_cast %195 : vector<1x32x64xf32> to vector<32x64xf32>
    %cst_106 = arith.constant dense<0.000000e+00> : vector<16x64xf32>
    %197 = tpu.matmul %194, %196, %cst_106 {dimension_numbers = #tpu.dot_dimension_numbers<[1], [0], [0], [1], [0, 0, 1, 1], [], []>} : vector<16x32xf32>, vector<32x64xf32>, vector<16x64xf32> -> vector<16x64xf32>
    %c1_107 = arith.constant 1 : index
    %c0_108 = arith.constant 0 : index
    %c0_109 = arith.constant 0 : index
    %198 = vector.load %arg13[%c1_107, %c0_108, %c0_109] : memref<2x1x64xf32, #tpu.memory_space<vmem>>, vector<1x1x64xf32>
    %199 = vector.shape_cast %198 : vector<1x1x64xf32> to vector<1x64xf32>
    %200 = vector.broadcast %199 : vector<1x64xf32> to vector<16x64xf32>
    %201 = arith.addf %197, %200 : vector<16x64xf32>
    %202 = arith.mulf %201, %201 : vector<16x64xf32>
    %203 = arith.mulf %201, %202 : vector<16x64xf32>
    %cst_110 = arith.constant 4.471500e-02 : f32
    %204 = vector.broadcast %cst_110 : f32 to vector<16x64xf32>
    %205 = arith.mulf %204, %203 : vector<16x64xf32>
    %206 = arith.addf %201, %205 : vector<16x64xf32>
    %cst_111 = arith.constant 0.797884583 : f32
    %207 = vector.broadcast %cst_111 : f32 to vector<16x64xf32>
    %208 = arith.mulf %207, %206 : vector<16x64xf32>
    %209 = math.tanh %208 : vector<16x64xf32>
    %cst_112 = arith.constant 1.000000e+00 : f32
    %210 = vector.broadcast %cst_112 : f32 to vector<16x64xf32>
    %211 = arith.addf %210, %209 : vector<16x64xf32>
    %cst_113 = arith.constant 5.000000e-01 : f32
    %212 = vector.broadcast %cst_113 : f32 to vector<16x64xf32>
    %213 = arith.mulf %212, %211 : vector<16x64xf32>
    %214 = arith.mulf %201, %213 : vector<16x64xf32>
    %c1_114 = arith.constant 1 : index
    %c0_115 = arith.constant 0 : index
    %c0_116 = arith.constant 0 : index
    %215 = vector.load %arg14[%c1_114, %c0_115, %c0_116] : memref<2x64x32xf32, #tpu.memory_space<vmem>>, vector<1x64x32xf32>
    %216 = vector.shape_cast %215 : vector<1x64x32xf32> to vector<64x32xf32>
    %cst_117 = arith.constant dense<0.000000e+00> : vector<16x32xf32>
    %217 = tpu.matmul %214, %216, %cst_117 {dimension_numbers = #tpu.dot_dimension_numbers<[1], [0], [0], [1], [0, 0, 1, 1], [], []>} : vector<16x64xf32>, vector<64x32xf32>, vector<16x32xf32> -> vector<16x32xf32>
    %c1_118 = arith.constant 1 : index
    %c0_119 = arith.constant 0 : index
    %c0_120 = arith.constant 0 : index
    %218 = vector.load %arg15[%c1_118, %c0_119, %c0_120] : memref<2x1x32xf32, #tpu.memory_space<vmem>>, vector<1x1x32xf32>
    %219 = vector.shape_cast %218 : vector<1x1x32xf32> to vector<1x32xf32>
    %220 = vector.broadcast %219 : vector<1x32xf32> to vector<16x32xf32>
    %221 = arith.addf %217, %220 : vector<16x32xf32>
    %222 = arith.addf %168, %221 : vector<16x32xf32>
    %c0_121 = arith.constant 0 : index
    %c0_122 = arith.constant 0 : index
    %223 = vector.load %arg16[%c0_121, %c0_122] : memref<1x32xf32, #tpu.memory_space<vmem>>, vector<1x32xf32>
    %c0_123 = arith.constant 0 : index
    %c0_124 = arith.constant 0 : index
    %224 = vector.load %arg17[%c0_123, %c0_124] : memref<1x32xf32, #tpu.memory_space<vmem>>, vector<1x32xf32>
    %cst_125 = arith.constant dense<0.000000e+00> : vector<16xf32>
    %225 = vector.multi_reduction <add>, %222, %cst_125 [1] : vector<16x32xf32> to vector<16xf32>
    %226 = vector.shape_cast %225 : vector<16xf32> to vector<16x1xf32>
    %cst_126 = arith.constant 3.200000e+01 : f32
    %227 = vector.broadcast %cst_126 : f32 to vector<16x1xf32>
    %228 = arith.divf %226, %227 : vector<16x1xf32>
    %229 = vector.broadcast %228 : vector<16x1xf32> to vector<16x32xf32>
    %230 = arith.subf %222, %229 : vector<16x32xf32>
    %231 = arith.mulf %230, %230 : vector<16x32xf32>
    %cst_127 = arith.constant dense<0.000000e+00> : vector<16xf32>
    %232 = vector.multi_reduction <add>, %231, %cst_127 [1] : vector<16x32xf32> to vector<16xf32>
    %233 = vector.shape_cast %232 : vector<16xf32> to vector<16x1xf32>
    %cst_128 = arith.constant 3.200000e+01 : f32
    %234 = vector.broadcast %cst_128 : f32 to vector<16x1xf32>
    %235 = arith.divf %233, %234 : vector<16x1xf32>
    %236 = vector.broadcast %228 : vector<16x1xf32> to vector<16x32xf32>
    %237 = arith.subf %222, %236 : vector<16x32xf32>
    %cst_129 = arith.constant 9.99999974E-6 : f32
    %238 = vector.broadcast %cst_129 : f32 to vector<16x1xf32>
    %239 = arith.addf %235, %238 : vector<16x1xf32>
    %240 = math.rsqrt %239 : vector<16x1xf32>
    %241 = vector.broadcast %240 : vector<16x1xf32> to vector<16x32xf32>
    %242 = arith.mulf %237, %241 : vector<16x32xf32>
    %243 = vector.broadcast %223 : vector<1x32xf32> to vector<16x32xf32>
    %244 = arith.mulf %242, %243 : vector<16x32xf32>
    %245 = vector.broadcast %224 : vector<1x32xf32> to vector<16x32xf32>
    %246 = arith.addf %244, %245 : vector<16x32xf32>
    %cst_130 = arith.constant dense<0.000000e+00> : vector<32xf32>
    %247 = vector.multi_reduction <add>, %246, %cst_130 [0] : vector<16x32xf32> to vector<32xf32>
    %248 = vector.shape_cast %247 : vector<32xf32> to vector<1x32xf32>
    %cst_131 = arith.constant 1.600000e+01 : f32
    %249 = vector.broadcast %cst_131 : f32 to vector<1x32xf32>
    %250 = arith.divf %248, %249 : vector<1x32xf32>
    %c0_132 = arith.constant 0 : index
    %c0_133 = arith.constant 0 : index
    %251 = vector.load %arg18[%c0_132, %c0_133] : memref<32x128xf32, #tpu.memory_space<vmem>>, vector<32x128xf32>
    %cst_134 = arith.constant dense<0.000000e+00> : vector<1x128xf32>
    %252 = tpu.matmul %250, %251, %cst_134 {dimension_numbers = #tpu.dot_dimension_numbers<[1], [0], [0], [1], [0, 0, 1, 1], [], []>} : vector<1x32xf32>, vector<32x128xf32>, vector<1x128xf32> -> vector<1x128xf32>
    %c0_135 = arith.constant 0 : index
    %c0_136 = arith.constant 0 : index
    %253 = vector.load %arg19[%c0_135, %c0_136] : memref<1x128xf32, #tpu.memory_space<vmem>>, vector<1x128xf32>
    %254 = arith.addf %252, %253 : vector<1x128xf32>
    %c0_137 = arith.constant 0 : index
    %c0_138 = arith.constant 0 : index
    %c0_139 = arith.constant 0 : index
    %255 = vector.load %arg20[%c0_137, %c0_138, %c0_139] : memref<2x1x128xf32, #tpu.memory_space<vmem>>, vector<1x1x128xf32>
    %256 = vector.shape_cast %255 : vector<1x1x128xf32> to vector<1x128xf32>
    %257 = vector.shape_cast %254 : vector<1x128xf32> to vector<1x1x128xf32>
    tpu.vector_store %arg20[%c0_137, %c0_138, %c0_139], %257 {strides = array<i32>} : memref<2x1x128xf32, #tpu.memory_space<vmem>>, vector<1x1x128xf32>,
    %c1_140 = arith.constant 1 : index
    %c0_141 = arith.constant 0 : index
    %c0_142 = arith.constant 0 : index
    %258 = vector.load %arg1[%c1_140, %c0_141, %c0_142] : memref<2x16x64xf32, #tpu.memory_space<vmem>>, vector<1x16x64xf32>
    %259 = vector.shape_cast %258 : vector<1x16x64xf32> to vector<16x64xf32>
    %c0_143 = arith.constant 0 : index
    %c0_144 = arith.constant 0 : index
    %260 = vector.load %arg2[%c0_143, %c0_144] : memref<64x32xf32, #tpu.memory_space<vmem>>, vector<64x32xf32>
    %cst_145 = arith.constant dense<0.000000e+00> : vector<16x32xf32>
    %261 = tpu.matmul %259, %260, %cst_145 {dimension_numbers = #tpu.dot_dimension_numbers<[1], [0], [0], [1], [0, 0, 1, 1], [], []>} : vector<16x64xf32>, vector<64x32xf32>, vector<16x32xf32> -> vector<16x32xf32>
    %c0_146 = arith.constant 0 : index
    %c0_147 = arith.constant 0 : index
    %262 = vector.load %arg3[%c0_146, %c0_147] : memref<1x32xf32, #tpu.memory_space<vmem>>, vector<1x32xf32>
    %263 = vector.broadcast %262 : vector<1x32xf32> to vector<16x32xf32>
    %264 = arith.addf %261, %263 : vector<16x32xf32>
    %c0_148 = arith.constant 0 : index
    %c0_149 = arith.constant 0 : index
    %c0_150 = arith.constant 0 : index
    %265 = vector.load %arg4[%c0_148, %c0_149, %c0_150] : memref<2x1x32xf32, #tpu.memory_space<vmem>>, vector<1x1x32xf32>
    %266 = vector.shape_cast %265 : vector<1x1x32xf32> to vector<1x32xf32>
    %c0_151 = arith.constant 0 : index
    %c0_152 = arith.constant 0 : index
    %c0_153 = arith.constant 0 : index
    %267 = vector.load %arg5[%c0_151, %c0_152, %c0_153] : memref<2x1x32xf32, #tpu.memory_space<vmem>>, vector<1x1x32xf32>
    %268 = vector.shape_cast %267 : vector<1x1x32xf32> to vector<1x32xf32>
    %cst_154 = arith.constant dense<0.000000e+00> : vector<16xf32>
    %269 = vector.multi_reduction <add>, %264, %cst_154 [1] : vector<16x32xf32> to vector<16xf32>
    %270 = vector.shape_cast %269 : vector<16xf32> to vector<16x1xf32>
    %cst_155 = arith.constant 3.200000e+01 : f32
    %271 = vector.broadcast %cst_155 : f32 to vector<16x1xf32>
    %272 = arith.divf %270, %271 : vector<16x1xf32>
    %273 = vector.broadcast %272 : vector<16x1xf32> to vector<16x32xf32>
    %274 = arith.subf %264, %273 : vector<16x32xf32>
    %275 = arith.mulf %274, %274 : vector<16x32xf32>
    %cst_156 = arith.constant dense<0.000000e+00> : vector<16xf32>
    %276 = vector.multi_reduction <add>, %275, %cst_156 [1] : vector<16x32xf32> to vector<16xf32>
    %277 = vector.shape_cast %276 : vector<16xf32> to vector<16x1xf32>
    %cst_157 = arith.constant 3.200000e+01 : f32
    %278 = vector.broadcast %cst_157 : f32 to vector<16x1xf32>
    %279 = arith.divf %277, %278 : vector<16x1xf32>
    %280 = vector.broadcast %272 : vector<16x1xf32> to vector<16x32xf32>
    %281 = arith.subf %264, %280 : vector<16x32xf32>
    %cst_158 = arith.constant 9.99999974E-6 : f32
    %282 = vector.broadcast %cst_158 : f32 to vector<16x1xf32>
    %283 = arith.addf %279, %282 : vector<16x1xf32>
    %284 = math.rsqrt %283 : vector<16x1xf32>
    %285 = vector.broadcast %284 : vector<16x1xf32> to vector<16x32xf32>
    %286 = arith.mulf %281, %285 : vector<16x32xf32>
    %287 = vector.broadcast %266 : vector<1x32xf32> to vector<16x32xf32>
    %288 = arith.mulf %286, %287 : vector<16x32xf32>
    %289 = vector.broadcast %268 : vector<1x32xf32> to vector<16x32xf32>
    %290 = arith.addf %288, %289 : vector<16x32xf32>
    %c0_159 = arith.constant 0 : index
    %c0_160 = arith.constant 0 : index
    %c0_161 = arith.constant 0 : index
    %291 = vector.load %arg6[%c0_159, %c0_160, %c0_161] : memref<2x16x16xf32, #tpu.memory_space<vmem>>, vector<1x16x16xf32>
    %292 = vector.shape_cast %291 : vector<1x16x16xf32> to vector<16x16xf32>
    %cst_162 = arith.constant dense<0.000000e+00> : vector<16x32xf32>
    %293 = tpu.matmul %292, %290, %cst_162 {dimension_numbers = #tpu.dot_dimension_numbers<[1], [0], [0], [1], [0, 0, 1, 1], [], []>} : vector<16x16xf32>, vector<16x32xf32>, vector<16x32xf32> -> vector<16x32xf32>
    %c0_163 = arith.constant 0 : index
    %c0_164 = arith.constant 0 : index
    %c0_165 = arith.constant 0 : index
    %294 = vector.load %arg7[%c0_163, %c0_164, %c0_165] : memref<2x16x1xf32, #tpu.memory_space<vmem>>, vector<1x16x1xf32>
    %295 = vector.shape_cast %294 : vector<1x16x1xf32> to vector<16x1xf32>
    %296 = vector.broadcast %295 : vector<16x1xf32> to vector<16x32xf32>
    %297 = arith.addf %293, %296 : vector<16x32xf32>
    %298 = arith.mulf %297, %297 : vector<16x32xf32>
    %299 = arith.mulf %297, %298 : vector<16x32xf32>
    %cst_166 = arith.constant 4.471500e-02 : f32
    %300 = vector.broadcast %cst_166 : f32 to vector<16x32xf32>
    %301 = arith.mulf %300, %299 : vector<16x32xf32>
    %302 = arith.addf %297, %301 : vector<16x32xf32>
    %cst_167 = arith.constant 0.797884583 : f32
    %303 = vector.broadcast %cst_167 : f32 to vector<16x32xf32>
    %304 = arith.mulf %303, %302 : vector<16x32xf32>
    %305 = math.tanh %304 : vector<16x32xf32>
    %cst_168 = arith.constant 1.000000e+00 : f32
    %306 = vector.broadcast %cst_168 : f32 to vector<16x32xf32>
    %307 = arith.addf %306, %305 : vector<16x32xf32>
    %cst_169 = arith.constant 5.000000e-01 : f32
    %308 = vector.broadcast %cst_169 : f32 to vector<16x32xf32>
    %309 = arith.mulf %308, %307 : vector<16x32xf32>
    %310 = arith.mulf %297, %309 : vector<16x32xf32>
    %c0_170 = arith.constant 0 : index
    %c0_171 = arith.constant 0 : index
    %c0_172 = arith.constant 0 : index
    %311 = vector.load %arg8[%c0_170, %c0_171, %c0_172] : memref<2x16x16xf32, #tpu.memory_space<vmem>>, vector<1x16x16xf32>
    %312 = vector.shape_cast %311 : vector<1x16x16xf32> to vector<16x16xf32>
    %cst_173 = arith.constant dense<0.000000e+00> : vector<16x32xf32>
    %313 = tpu.matmul %312, %310, %cst_173 {dimension_numbers = #tpu.dot_dimension_numbers<[1], [0], [0], [1], [0, 0, 1, 1], [], []>} : vector<16x16xf32>, vector<16x32xf32>, vector<16x32xf32> -> vector<16x32xf32>
    %c0_174 = arith.constant 0 : index
    %c0_175 = arith.constant 0 : index
    %c0_176 = arith.constant 0 : index
    %314 = vector.load %arg9[%c0_174, %c0_175, %c0_176] : memref<2x16x1xf32, #tpu.memory_space<vmem>>, vector<1x16x1xf32>
    %315 = vector.shape_cast %314 : vector<1x16x1xf32> to vector<16x1xf32>
    %316 = vector.broadcast %315 : vector<16x1xf32> to vector<16x32xf32>
    %317 = arith.addf %313, %316 : vector<16x32xf32>
    %318 = arith.addf %264, %317 : vector<16x32xf32>
    %c0_177 = arith.constant 0 : index
    %c0_178 = arith.constant 0 : index
    %c0_179 = arith.constant 0 : index
    %319 = vector.load %arg10[%c0_177, %c0_178, %c0_179] : memref<2x1x32xf32, #tpu.memory_space<vmem>>, vector<1x1x32xf32>
    %320 = vector.shape_cast %319 : vector<1x1x32xf32> to vector<1x32xf32>
    %c0_180 = arith.constant 0 : index
    %c0_181 = arith.constant 0 : index
    %c0_182 = arith.constant 0 : index
    %321 = vector.load %arg11[%c0_180, %c0_181, %c0_182] : memref<2x1x32xf32, #tpu.memory_space<vmem>>, vector<1x1x32xf32>
    %322 = vector.shape_cast %321 : vector<1x1x32xf32> to vector<1x32xf32>
    %cst_183 = arith.constant dense<0.000000e+00> : vector<16xf32>
    %323 = vector.multi_reduction <add>, %318, %cst_183 [1] : vector<16x32xf32> to vector<16xf32>
    %324 = vector.shape_cast %323 : vector<16xf32> to vector<16x1xf32>
    %cst_184 = arith.constant 3.200000e+01 : f32
    %325 = vector.broadcast %cst_184 : f32 to vector<16x1xf32>
    %326 = arith.divf %324, %325 : vector<16x1xf32>
    %327 = vector.broadcast %326 : vector<16x1xf32> to vector<16x32xf32>
    %328 = arith.subf %318, %327 : vector<16x32xf32>
    %329 = arith.mulf %328, %328 : vector<16x32xf32>
    %cst_185 = arith.constant dense<0.000000e+00> : vector<16xf32>
    %330 = vector.multi_reduction <add>, %329, %cst_185 [1] : vector<16x32xf32> to vector<16xf32>
    %331 = vector.shape_cast %330 : vector<16xf32> to vector<16x1xf32>
    %cst_186 = arith.constant 3.200000e+01 : f32
    %332 = vector.broadcast %cst_186 : f32 to vector<16x1xf32>
    %333 = arith.divf %331, %332 : vector<16x1xf32>
    %334 = vector.broadcast %326 : vector<16x1xf32> to vector<16x32xf32>
    %335 = arith.subf %318, %334 : vector<16x32xf32>
    %cst_187 = arith.constant 9.99999974E-6 : f32
    %336 = vector.broadcast %cst_187 : f32 to vector<16x1xf32>
    %337 = arith.addf %333, %336 : vector<16x1xf32>
    %338 = math.rsqrt %337 : vector<16x1xf32>
    %339 = vector.broadcast %338 : vector<16x1xf32> to vector<16x32xf32>
    %340 = arith.mulf %335, %339 : vector<16x32xf32>
    %341 = vector.broadcast %320 : vector<1x32xf32> to vector<16x32xf32>
    %342 = arith.mulf %340, %341 : vector<16x32xf32>
    %343 = vector.broadcast %322 : vector<1x32xf32> to vector<16x32xf32>
    %344 = arith.addf %342, %343 : vector<16x32xf32>
    %c0_188 = arith.constant 0 : index
    %c0_189 = arith.constant 0 : index
    %c0_190 = arith.constant 0 : index
    %345 = vector.load %arg12[%c0_188, %c0_189, %c0_190] : memref<2x32x64xf32, #tpu.memory_space<vmem>>, vector<1x32x64xf32>
    %346 = vector.shape_cast %345 : vector<1x32x64xf32> to vector<32x64xf32>
    %cst_191 = arith.constant dense<0.000000e+00> : vector<16x64xf32>
    %347 = tpu.matmul %344, %346, %cst_191 {dimension_numbers = #tpu.dot_dimension_numbers<[1], [0], [0], [1], [0, 0, 1, 1], [], []>} : vector<16x32xf32>, vector<32x64xf32>, vector<16x64xf32> -> vector<16x64xf32>
    %c0_192 = arith.constant 0 : index
    %c0_193 = arith.constant 0 : index
    %c0_194 = arith.constant 0 : index
    %348 = vector.load %arg13[%c0_192, %c0_193, %c0_194] : memref<2x1x64xf32, #tpu.memory_space<vmem>>, vector<1x1x64xf32>
    %349 = vector.shape_cast %348 : vector<1x1x64xf32> to vector<1x64xf32>
    %350 = vector.broadcast %349 : vector<1x64xf32> to vector<16x64xf32>
    %351 = arith.addf %347, %350 : vector<16x64xf32>
    %352 = arith.mulf %351, %351 : vector<16x64xf32>
    %353 = arith.mulf %351, %352 : vector<16x64xf32>
    %cst_195 = arith.constant 4.471500e-02 : f32
    %354 = vector.broadcast %cst_195 : f32 to vector<16x64xf32>
    %355 = arith.mulf %354, %353 : vector<16x64xf32>
    %356 = arith.addf %351, %355 : vector<16x64xf32>
    %cst_196 = arith.constant 0.797884583 : f32
    %357 = vector.broadcast %cst_196 : f32 to vector<16x64xf32>
    %358 = arith.mulf %357, %356 : vector<16x64xf32>
    %359 = math.tanh %358 : vector<16x64xf32>
    %cst_197 = arith.constant 1.000000e+00 : f32
    %360 = vector.broadcast %cst_197 : f32 to vector<16x64xf32>
    %361 = arith.addf %360, %359 : vector<16x64xf32>
    %cst_198 = arith.constant 5.000000e-01 : f32
    %362 = vector.broadcast %cst_198 : f32 to vector<16x64xf32>
    %363 = arith.mulf %362, %361 : vector<16x64xf32>
    %364 = arith.mulf %351, %363 : vector<16x64xf32>
    %c0_199 = arith.constant 0 : index
    %c0_200 = arith.constant 0 : index
    %c0_201 = arith.constant 0 : index
    %365 = vector.load %arg14[%c0_199, %c0_200, %c0_201] : memref<2x64x32xf32, #tpu.memory_space<vmem>>, vector<1x64x32xf32>
    %366 = vector.shape_cast %365 : vector<1x64x32xf32> to vector<64x32xf32>
    %cst_202 = arith.constant dense<0.000000e+00> : vector<16x32xf32>
    %367 = tpu.matmul %364, %366, %cst_202 {dimension_numbers = #tpu.dot_dimension_numbers<[1], [0], [0], [1], [0, 0, 1, 1], [], []>} : vector<16x64xf32>, vector<64x32xf32>, vector<16x32xf32> -> vector<16x32xf32>
    %c0_203 = arith.constant 0 : index
    %c0_204 = arith.constant 0 : index
    %c0_205 = arith.constant 0 : index
    %368 = vector.load %arg15[%c0_203, %c0_204, %c0_205] : memref<2x1x32xf32, #tpu.memory_space<vmem>>, vector<1x1x32xf32>
    %369 = vector.shape_cast %368 : vector<1x1x32xf32> to vector<1x32xf32>
    %370 = vector.broadcast %369 : vector<1x32xf32> to vector<16x32xf32>
    %371 = arith.addf %367, %370 : vector<16x32xf32>
    %372 = arith.addf %318, %371 : vector<16x32xf32>
    %c1_206 = arith.constant 1 : index
    %c0_207 = arith.constant 0 : index
    %c0_208 = arith.constant 0 : index
    %373 = vector.load %arg4[%c1_206, %c0_207, %c0_208] : memref<2x1x32xf32, #tpu.memory_space<vmem>>, vector<1x1x32xf32>
    %374 = vector.shape_cast %373 : vector<1x1x32xf32> to vector<1x32xf32>
    %c1_209 = arith.constant 1 : index
    %c0_210 = arith.constant 0 : index
    %c0_211 = arith.constant 0 : index
    %375 = vector.load %arg5[%c1_209, %c0_210, %c0_211] : memref<2x1x32xf32, #tpu.memory_space<vmem>>, vector<1x1x32xf32>
    %376 = vector.shape_cast %375 : vector<1x1x32xf32> to vector<1x32xf32>
    %cst_212 = arith.constant dense<0.000000e+00> : vector<16xf32>
    %377 = vector.multi_reduction <add>, %372, %cst_212 [1] : vector<16x32xf32> to vector<16xf32>
    %378 = vector.shape_cast %377 : vector<16xf32> to vector<16x1xf32>
    %cst_213 = arith.constant 3.200000e+01 : f32
    %379 = vector.broadcast %cst_213 : f32 to vector<16x1xf32>
    %380 = arith.divf %378, %379 : vector<16x1xf32>
    %381 = vector.broadcast %380 : vector<16x1xf32> to vector<16x32xf32>
    %382 = arith.subf %372, %381 : vector<16x32xf32>
    %383 = arith.mulf %382, %382 : vector<16x32xf32>
    %cst_214 = arith.constant dense<0.000000e+00> : vector<16xf32>
    %384 = vector.multi_reduction <add>, %383, %cst_214 [1] : vector<16x32xf32> to vector<16xf32>
    %385 = vector.shape_cast %384 : vector<16xf32> to vector<16x1xf32>
    %cst_215 = arith.constant 3.200000e+01 : f32
    %386 = vector.broadcast %cst_215 : f32 to vector<16x1xf32>
    %387 = arith.divf %385, %386 : vector<16x1xf32>
    %388 = vector.broadcast %380 : vector<16x1xf32> to vector<16x32xf32>
    %389 = arith.subf %372, %388 : vector<16x32xf32>
    %cst_216 = arith.constant 9.99999974E-6 : f32
    %390 = vector.broadcast %cst_216 : f32 to vector<16x1xf32>
    %391 = arith.addf %387, %390 : vector<16x1xf32>
    %392 = math.rsqrt %391 : vector<16x1xf32>
    %393 = vector.broadcast %392 : vector<16x1xf32> to vector<16x32xf32>
    %394 = arith.mulf %389, %393 : vector<16x32xf32>
    %395 = vector.broadcast %374 : vector<1x32xf32> to vector<16x32xf32>
    %396 = arith.mulf %394, %395 : vector<16x32xf32>
    %397 = vector.broadcast %376 : vector<1x32xf32> to vector<16x32xf32>
    %398 = arith.addf %396, %397 : vector<16x32xf32>
    %c1_217 = arith.constant 1 : index
    %c0_218 = arith.constant 0 : index
    %c0_219 = arith.constant 0 : index
    %399 = vector.load %arg6[%c1_217, %c0_218, %c0_219] : memref<2x16x16xf32, #tpu.memory_space<vmem>>, vector<1x16x16xf32>
    %400 = vector.shape_cast %399 : vector<1x16x16xf32> to vector<16x16xf32>
    %cst_220 = arith.constant dense<0.000000e+00> : vector<16x32xf32>
    %401 = tpu.matmul %400, %398, %cst_220 {dimension_numbers = #tpu.dot_dimension_numbers<[1], [0], [0], [1], [0, 0, 1, 1], [], []>} : vector<16x16xf32>, vector<16x32xf32>, vector<16x32xf32> -> vector<16x32xf32>
    %c1_221 = arith.constant 1 : index
    %c0_222 = arith.constant 0 : index
    %c0_223 = arith.constant 0 : index
    %402 = vector.load %arg7[%c1_221, %c0_222, %c0_223] : memref<2x16x1xf32, #tpu.memory_space<vmem>>, vector<1x16x1xf32>
    %403 = vector.shape_cast %402 : vector<1x16x1xf32> to vector<16x1xf32>
    %404 = vector.broadcast %403 : vector<16x1xf32> to vector<16x32xf32>
    %405 = arith.addf %401, %404 : vector<16x32xf32>
    %406 = arith.mulf %405, %405 : vector<16x32xf32>
    %407 = arith.mulf %405, %406 : vector<16x32xf32>
    %cst_224 = arith.constant 4.471500e-02 : f32
    %408 = vector.broadcast %cst_224 : f32 to vector<16x32xf32>
    %409 = arith.mulf %408, %407 : vector<16x32xf32>
    %410 = arith.addf %405, %409 : vector<16x32xf32>
    %cst_225 = arith.constant 0.797884583 : f32
    %411 = vector.broadcast %cst_225 : f32 to vector<16x32xf32>
    %412 = arith.mulf %411, %410 : vector<16x32xf32>
    %413 = math.tanh %412 : vector<16x32xf32>
    %cst_226 = arith.constant 1.000000e+00 : f32
    %414 = vector.broadcast %cst_226 : f32 to vector<16x32xf32>
    %415 = arith.addf %414, %413 : vector<16x32xf32>
    %cst_227 = arith.constant 5.000000e-01 : f32
    %416 = vector.broadcast %cst_227 : f32 to vector<16x32xf32>
    %417 = arith.mulf %416, %415 : vector<16x32xf32>
    %418 = arith.mulf %405, %417 : vector<16x32xf32>
    %c1_228 = arith.constant 1 : index
    %c0_229 = arith.constant 0 : index
    %c0_230 = arith.constant 0 : index
    %419 = vector.load %arg8[%c1_228, %c0_229, %c0_230] : memref<2x16x16xf32, #tpu.memory_space<vmem>>, vector<1x16x16xf32>
    %420 = vector.shape_cast %419 : vector<1x16x16xf32> to vector<16x16xf32>
    %cst_231 = arith.constant dense<0.000000e+00> : vector<16x32xf32>
    %421 = tpu.matmul %420, %418, %cst_231 {dimension_numbers = #tpu.dot_dimension_numbers<[1], [0], [0], [1], [0, 0, 1, 1], [], []>} : vector<16x16xf32>, vector<16x32xf32>, vector<16x32xf32> -> vector<16x32xf32>
    %c1_232 = arith.constant 1 : index
    %c0_233 = arith.constant 0 : index
    %c0_234 = arith.constant 0 : index
    %422 = vector.load %arg9[%c1_232, %c0_233, %c0_234] : memref<2x16x1xf32, #tpu.memory_space<vmem>>, vector<1x16x1xf32>
    %423 = vector.shape_cast %422 : vector<1x16x1xf32> to vector<16x1xf32>
    %424 = vector.broadcast %423 : vector<16x1xf32> to vector<16x32xf32>
    %425 = arith.addf %421, %424 : vector<16x32xf32>
    %426 = arith.addf %372, %425 : vector<16x32xf32>
    %c1_235 = arith.constant 1 : index
    %c0_236 = arith.constant 0 : index
    %c0_237 = arith.constant 0 : index
    %427 = vector.load %arg10[%c1_235, %c0_236, %c0_237] : memref<2x1x32xf32, #tpu.memory_space<vmem>>, vector<1x1x32xf32>
    %428 = vector.shape_cast %427 : vector<1x1x32xf32> to vector<1x32xf32>
    %c1_238 = arith.constant 1 : index
    %c0_239 = arith.constant 0 : index
    %c0_240 = arith.constant 0 : index
    %429 = vector.load %arg11[%c1_238, %c0_239, %c0_240] : memref<2x1x32xf32, #tpu.memory_space<vmem>>, vector<1x1x32xf32>
    %430 = vector.shape_cast %429 : vector<1x1x32xf32> to vector<1x32xf32>
    %cst_241 = arith.constant dense<0.000000e+00> : vector<16xf32>
    %431 = vector.multi_reduction <add>, %426, %cst_241 [1] : vector<16x32xf32> to vector<16xf32>
    %432 = vector.shape_cast %431 : vector<16xf32> to vector<16x1xf32>
    %cst_242 = arith.constant 3.200000e+01 : f32
    %433 = vector.broadcast %cst_242 : f32 to vector<16x1xf32>
    %434 = arith.divf %432, %433 : vector<16x1xf32>
    %435 = vector.broadcast %434 : vector<16x1xf32> to vector<16x32xf32>
    %436 = arith.subf %426, %435 : vector<16x32xf32>
    %437 = arith.mulf %436, %436 : vector<16x32xf32>
    %cst_243 = arith.constant dense<0.000000e+00> : vector<16xf32>
    %438 = vector.multi_reduction <add>, %437, %cst_243 [1] : vector<16x32xf32> to vector<16xf32>
    %439 = vector.shape_cast %438 : vector<16xf32> to vector<16x1xf32>
    %cst_244 = arith.constant 3.200000e+01 : f32
    %440 = vector.broadcast %cst_244 : f32 to vector<16x1xf32>
    %441 = arith.divf %439, %440 : vector<16x1xf32>
    %442 = vector.broadcast %434 : vector<16x1xf32> to vector<16x32xf32>
    %443 = arith.subf %426, %442 : vector<16x32xf32>
    %cst_245 = arith.constant 9.99999974E-6 : f32
    %444 = vector.broadcast %cst_245 : f32 to vector<16x1xf32>
    %445 = arith.addf %441, %444 : vector<16x1xf32>
    %446 = math.rsqrt %445 : vector<16x1xf32>
    %447 = vector.broadcast %446 : vector<16x1xf32> to vector<16x32xf32>
    %448 = arith.mulf %443, %447 : vector<16x32xf32>
    %449 = vector.broadcast %428 : vector<1x32xf32> to vector<16x32xf32>
    %450 = arith.mulf %448, %449 : vector<16x32xf32>
    %451 = vector.broadcast %430 : vector<1x32xf32> to vector<16x32xf32>
    %452 = arith.addf %450, %451 : vector<16x32xf32>
    %c1_246 = arith.constant 1 : index
    %c0_247 = arith.constant 0 : index
    %c0_248 = arith.constant 0 : index
    %453 = vector.load %arg12[%c1_246, %c0_247, %c0_248] : memref<2x32x64xf32, #tpu.memory_space<vmem>>, vector<1x32x64xf32>
    %454 = vector.shape_cast %453 : vector<1x32x64xf32> to vector<32x64xf32>
    %cst_249 = arith.constant dense<0.000000e+00> : vector<16x64xf32>
    %455 = tpu.matmul %452, %454, %cst_249 {dimension_numbers = #tpu.dot_dimension_numbers<[1], [0], [0], [1], [0, 0, 1, 1], [], []>} : vector<16x32xf32>, vector<32x64xf32>, vector<16x64xf32> -> vector<16x64xf32>
    %c1_250 = arith.constant 1 : index
    %c0_251 = arith.constant 0 : index
    %c0_252 = arith.constant 0 : index
    %456 = vector.load %arg13[%c1_250, %c0_251, %c0_252] : memref<2x1x64xf32, #tpu.memory_space<vmem>>, vector<1x1x64xf32>
    %457 = vector.shape_cast %456 : vector<1x1x64xf32> to vector<1x64xf32>
    %458 = vector.broadcast %457 : vector<1x64xf32> to vector<16x64xf32>
    %459 = arith.addf %455, %458 : vector<16x64xf32>
    %460 = arith.mulf %459, %459 : vector<16x64xf32>
    %461 = arith.mulf %459, %460 : vector<16x64xf32>
    %cst_253 = arith.constant 4.471500e-02 : f32
    %462 = vector.broadcast %cst_253 : f32 to vector<16x64xf32>
    %463 = arith.mulf %462, %461 : vector<16x64xf32>
    %464 = arith.addf %459, %463 : vector<16x64xf32>
    %cst_254 = arith.constant 0.797884583 : f32
    %465 = vector.broadcast %cst_254 : f32 to vector<16x64xf32>
    %466 = arith.mulf %465, %464 : vector<16x64xf32>
    %467 = math.tanh %466 : vector<16x64xf32>
    %cst_255 = arith.constant 1.000000e+00 : f32
    %468 = vector.broadcast %cst_255 : f32 to vector<16x64xf32>
    %469 = arith.addf %468, %467 : vector<16x64xf32>
    %cst_256 = arith.constant 5.000000e-01 : f32
    %470 = vector.broadcast %cst_256 : f32 to vector<16x64xf32>
    %471 = arith.mulf %470, %469 : vector<16x64xf32>
    %472 = arith.mulf %459, %471 : vector<16x64xf32>
    %c1_257 = arith.constant 1 : index
    %c0_258 = arith.constant 0 : index
    %c0_259 = arith.constant 0 : index
    %473 = vector.load %arg14[%c1_257, %c0_258, %c0_259] : memref<2x64x32xf32, #tpu.memory_space<vmem>>, vector<1x64x32xf32>
    %474 = vector.shape_cast %473 : vector<1x64x32xf32> to vector<64x32xf32>
    %cst_260 = arith.constant dense<0.000000e+00> : vector<16x32xf32>
    %475 = tpu.matmul %472, %474, %cst_260 {dimension_numbers = #tpu.dot_dimension_numbers<[1], [0], [0], [1], [0, 0, 1, 1], [], []>} : vector<16x64xf32>, vector<64x32xf32>, vector<16x32xf32> -> vector<16x32xf32>
    %c1_261 = arith.constant 1 : index
    %c0_262 = arith.constant 0 : index
    %c0_263 = arith.constant 0 : index
    %476 = vector.load %arg15[%c1_261, %c0_262, %c0_263] : memref<2x1x32xf32, #tpu.memory_space<vmem>>, vector<1x1x32xf32>
    %477 = vector.shape_cast %476 : vector<1x1x32xf32> to vector<1x32xf32>
    %478 = vector.broadcast %477 : vector<1x32xf32> to vector<16x32xf32>
    %479 = arith.addf %475, %478 : vector<16x32xf32>
    %480 = arith.addf %426, %479 : vector<16x32xf32>
    %c0_264 = arith.constant 0 : index
    %c0_265 = arith.constant 0 : index
    %481 = vector.load %arg16[%c0_264, %c0_265] : memref<1x32xf32, #tpu.memory_space<vmem>>, vector<1x32xf32>
    %c0_266 = arith.constant 0 : index
    %c0_267 = arith.constant 0 : index
    %482 = vector.load %arg17[%c0_266, %c0_267] : memref<1x32xf32, #tpu.memory_space<vmem>>, vector<1x32xf32>
    %cst_268 = arith.constant dense<0.000000e+00> : vector<16xf32>
    %483 = vector.multi_reduction <add>, %480, %cst_268 [1] : vector<16x32xf32> to vector<16xf32>
    %484 = vector.shape_cast %483 : vector<16xf32> to vector<16x1xf32>
    %cst_269 = arith.constant 3.200000e+01 : f32
    %485 = vector.broadcast %cst_269 : f32 to vector<16x1xf32>
    %486 = arith.divf %484, %485 : vector<16x1xf32>
    %487 = vector.broadcast %486 : vector<16x1xf32> to vector<16x32xf32>
    %488 = arith.subf %480, %487 : vector<16x32xf32>
    %489 = arith.mulf %488, %488 : vector<16x32xf32>
    %cst_270 = arith.constant dense<0.000000e+00> : vector<16xf32>
    %490 = vector.multi_reduction <add>, %489, %cst_270 [1] : vector<16x32xf32> to vector<16xf32>
    %491 = vector.shape_cast %490 : vector<16xf32> to vector<16x1xf32>
    %cst_271 = arith.constant 3.200000e+01 : f32
    %492 = vector.broadcast %cst_271 : f32 to vector<16x1xf32>
    %493 = arith.divf %491, %492 : vector<16x1xf32>
    %494 = vector.broadcast %486 : vector<16x1xf32> to vector<16x32xf32>
    %495 = arith.subf %480, %494 : vector<16x32xf32>
    %cst_272 = arith.constant 9.99999974E-6 : f32
    %496 = vector.broadcast %cst_272 : f32 to vector<16x1xf32>
    %497 = arith.addf %493, %496 : vector<16x1xf32>
    %498 = math.rsqrt %497 : vector<16x1xf32>
    %499 = vector.broadcast %498 : vector<16x1xf32> to vector<16x32xf32>
    %500 = arith.mulf %495, %499 : vector<16x32xf32>
    %501 = vector.broadcast %481 : vector<1x32xf32> to vector<16x32xf32>
    %502 = arith.mulf %500, %501 : vector<16x32xf32>
    %503 = vector.broadcast %482 : vector<1x32xf32> to vector<16x32xf32>
    %504 = arith.addf %502, %503 : vector<16x32xf32>
    %cst_273 = arith.constant dense<0.000000e+00> : vector<32xf32>
    %505 = vector.multi_reduction <add>, %504, %cst_273 [0] : vector<16x32xf32> to vector<32xf32>
    %506 = vector.shape_cast %505 : vector<32xf32> to vector<1x32xf32>
    %cst_274 = arith.constant 1.600000e+01 : f32
    %507 = vector.broadcast %cst_274 : f32 to vector<1x32xf32>
    %508 = arith.divf %506, %507 : vector<1x32xf32>
    %c0_275 = arith.constant 0 : index
    %c0_276 = arith.constant 0 : index
    %509 = vector.load %arg18[%c0_275, %c0_276] : memref<32x128xf32, #tpu.memory_space<vmem>>, vector<32x128xf32>
    %cst_277 = arith.constant dense<0.000000e+00> : vector<1x128xf32>
    %510 = tpu.matmul %508, %509, %cst_277 {dimension_numbers = #tpu.dot_dimension_numbers<[1], [0], [0], [1], [0, 0, 1, 1], [], []>} : vector<1x32xf32>, vector<32x128xf32>, vector<1x128xf32> -> vector<1x128xf32>
    %c0_278 = arith.constant 0 : index
    %c0_279 = arith.constant 0 : index
    %511 = vector.load %arg19[%c0_278, %c0_279] : memref<1x128xf32, #tpu.memory_space<vmem>>, vector<1x128xf32>
    %512 = arith.addf %510, %511 : vector<1x128xf32>
    %c1_280 = arith.constant 1 : index
    %c0_281 = arith.constant 0 : index
    %c0_282 = arith.constant 0 : index
    %513 = vector.load %arg20[%c1_280, %c0_281, %c0_282] : memref<2x1x128xf32, #tpu.memory_space<vmem>>, vector<1x1x128xf32>
    %514 = vector.shape_cast %513 : vector<1x1x128xf32> to vector<1x128xf32>
    %515 = vector.shape_cast %512 : vector<1x128xf32> to vector<1x1x128xf32>
    tpu.vector_store %arg20[%c1_280, %c0_281, %c0_282], %515 {strides = array<i32>} : memref<2x1x128xf32, #tpu.memory_space<vmem>>, vector<1x1x128xf32>,
    return
  }
  func.func @transform_0(%arg0: i32) -> (i32, i32, i32) {
    %c0_i32 = arith.constant 0 : i32
    %c0_i32_0 = arith.constant 0 : i32
    %c0_i32_1 = arith.constant 0 : i32
    return %arg0, %c0_i32, %c0_i32_0 : i32, i32, i32
  }
  func.func @transform_1(%arg0: i32) -> (i32, i32) {
    %c0_i32 = arith.constant 0 : i32
    %c0_i32_0 = arith.constant 0 : i32
    %c0_i32_1 = arith.constant 0 : i32
    return %c0_i32, %c0_i32_0 : i32, i32
  }
  func.func @transform_2(%arg0: i32) -> (i32, i32) {
    %c0_i32 = arith.constant 0 : i32
    %c0_i32_0 = arith.constant 0 : i32
    %c0_i32_1 = arith.constant 0 : i32
    return %c0_i32, %c0_i32_0 : i32, i32
  }
  func.func @transform_3(%arg0: i32) -> (i32, i32, i32) {
    %c0_i32 = arith.constant 0 : i32
    %c0_i32_0 = arith.constant 0 : i32
    %c0_i32_1 = arith.constant 0 : i32
    %c0_i32_2 = arith.constant 0 : i32
    return %c0_i32, %c0_i32_0, %c0_i32_1 : i32, i32, i32
  }
  func.func @transform_4(%arg0: i32) -> (i32, i32, i32) {
    %c0_i32 = arith.constant 0 : i32
    %c0_i32_0 = arith.constant 0 : i32
    %c0_i32_1 = arith.constant 0 : i32
    %c0_i32_2 = arith.constant 0 : i32
    return %c0_i32, %c0_i32_0, %c0_i32_1 : i32, i32, i32
  }
  func.func @transform_5(%arg0: i32) -> (i32, i32, i32) {
    %c0_i32 = arith.constant 0 : i32
    %c0_i32_0 = arith.constant 0 : i32
    %c0_i32_1 = arith.constant 0 : i32
    %c0_i32_2 = arith.constant 0 : i32
    return %c0_i32, %c0_i32_0, %c0_i32_1 : i32, i32, i32
  }
  func.func @transform_6(%arg0: i32) -> (i32, i32, i32) {
    %c0_i32 = arith.constant 0 : i32
    %c0_i32_0 = arith.constant 0 : i32
    %c0_i32_1 = arith.constant 0 : i32
    %c0_i32_2 = arith.constant 0 : i32
    return %c0_i32, %c0_i32_0, %c0_i32_1 : i32, i32, i32
  }
  func.func @transform_7(%arg0: i32) -> (i32, i32, i32) {
    %c0_i32 = arith.constant 0 : i32
    %c0_i32_0 = arith.constant 0 : i32
    %c0_i32_1 = arith.constant 0 : i32
    %c0_i32_2 = arith.constant 0 : i32
    return %c0_i32, %c0_i32_0, %c0_i32_1 : i32, i32, i32
  }
  func.func @transform_8(%arg0: i32) -> (i32, i32, i32) {
    %c0_i32 = arith.constant 0 : i32
    %c0_i32_0 = arith.constant 0 : i32
    %c0_i32_1 = arith.constant 0 : i32
    %c0_i32_2 = arith.constant 0 : i32
    return %c0_i32, %c0_i32_0, %c0_i32_1 : i32, i32, i32
  }
  func.func @transform_9(%arg0: i32) -> (i32, i32, i32) {
    %c0_i32 = arith.constant 0 : i32
    %c0_i32_0 = arith.constant 0 : i32
    %c0_i32_1 = arith.constant 0 : i32
    %c0_i32_2 = arith.constant 0 : i32
    return %c0_i32, %c0_i32_0, %c0_i32_1 : i32, i32, i32
  }
  func.func @transform_10(%arg0: i32) -> (i32, i32, i32) {
    %c0_i32 = arith.constant 0 : i32
    %c0_i32_0 = arith.constant 0 : i32
    %c0_i32_1 = arith.constant 0 : i32
    %c0_i32_2 = arith.constant 0 : i32
    return %c0_i32, %c0_i32_0, %c0_i32_1 : i32, i32, i32
  }
  func.func @transform_11(%arg0: i32) -> (i32, i32, i32) {
    %c0_i32 = arith.constant 0 : i32
    %c0_i32_0 = arith.constant 0 : i32
    %c0_i32_1 = arith.constant 0 : i32
    %c0_i32_2 = arith.constant 0 : i32
    return %c0_i32, %c0_i32_0, %c0_i32_1 : i32, i32, i32
  }
  func.func @transform_12(%arg0: i32) -> (i32, i32, i32) {
    %c0_i32 = arith.constant 0 : i32
    %c0_i32_0 = arith.constant 0 : i32
    %c0_i32_1 = arith.constant 0 : i32
    %c0_i32_2 = arith.constant 0 : i32
    return %c0_i32, %c0_i32_0, %c0_i32_1 : i32, i32, i32
  }
  func.func @transform_13(%arg0: i32) -> (i32, i32, i32) {
    %c0_i32 = arith.constant 0 : i32
    %c0_i32_0 = arith.constant 0 : i32
    %c0_i32_1 = arith.constant 0 : i32
    %c0_i32_2 = arith.constant 0 : i32
    return %c0_i32, %c0_i32_0, %c0_i32_1 : i32, i32, i32
  }
  func.func @transform_14(%arg0: i32) -> (i32, i32, i32) {
    %c0_i32 = arith.constant 0 : i32
    %c0_i32_0 = arith.constant 0 : i32
    %c0_i32_1 = arith.constant 0 : i32
    %c0_i32_2 = arith.constant 0 : i32
    return %c0_i32, %c0_i32_0, %c0_i32_1 : i32, i32, i32
  }
  func.func @transform_15(%arg0: i32) -> (i32, i32) {
    %c0_i32 = arith.constant 0 : i32
    %c0_i32_0 = arith.constant 0 : i32
    %c0_i32_1 = arith.constant 0 : i32
    return %c0_i32, %c0_i32_0 : i32, i32
  }
  func.func @transform_16(%arg0: i32) -> (i32, i32) {
    %c0_i32 = arith.constant 0 : i32
    %c0_i32_0 = arith.constant 0 : i32
    %c0_i32_1 = arith.constant 0 : i32
    return %c0_i32, %c0_i32_0 : i32, i32
  }
  func.func @transform_17(%arg0: i32) -> (i32, i32) {
    %c0_i32 = arith.constant 0 : i32
    %c0_i32_0 = arith.constant 0 : i32
    %c0_i32_1 = arith.constant 0 : i32
    return %c0_i32, %c0_i32_0 : i32, i32
  }
  func.func @transform_18(%arg0: i32) -> (i32, i32) {
    %c0_i32 = arith.constant 0 : i32
    %c0_i32_0 = arith.constant 0 : i32
    %c0_i32_1 = arith.constant 0 : i32
    return %c0_i32, %c0_i32_0 : i32, i32
  }
  func.func @transform_19(%arg0: i32) -> (i32, i32, i32) {
    %c0_i32 = arith.constant 0 : i32
    %c0_i32_0 = arith.constant 0 : i32
    %c0_i32_1 = arith.constant 0 : i32
    return %arg0, %c0_i32, %c0_i32_0 : i32, i32, i32
  }
}

</mosaic_0001>

<llo_original>
// kernel: forward.1
$region0: #{forward.1}
  #allocation0 [shape = 'u32[]', space=smem, size = 0x4, offset = 0x4, fixed_abs, tag = 'smem constant byte address 0x4 - core index']
  #allocation1 [shape = 'u32[144,128]{1,0:T(1,128)}', space=vmem, size = 0x12000, scoped, tag = 'internal scratch']
  %s0 = inlined_call_operand.vmem [shape: f32[2,16,64], index: 0, kind: input, shape index: {}]
  %s1 = inlined_call_operand.vmem [shape: f32[64,32], index: 1, kind: input, shape index: {}]
  %s2 = inlined_call_operand.vmem [shape: f32[1,32], index: 2, kind: input, shape index: {}]
  %s3 = inlined_call_operand.vmem [shape: f32[2,1,32], index: 3, kind: input, shape index: {}]
  %s4 = inlined_call_operand.vmem [shape: f32[2,1,32], index: 4, kind: input, shape index: {}]
  %s5 = inlined_call_operand.vmem [shape: f32[2,16,16], index: 5, kind: input, shape index: {}]
  %s6 = inlined_call_operand.vmem [shape: f32[2,16,1], index: 6, kind: input, shape index: {}]
  %s7 = inlined_call_operand.vmem [shape: f32[2,16,16], index: 7, kind: input, shape index: {}]
  %s8 = inlined_call_operand.vmem [shape: f32[2,16,1], index: 8, kind: input, shape index: {}]
  %s9 = inlined_call_operand.vmem [shape: f32[2,1,32], index: 9, kind: input, shape index: {}]
  %s10 = inlined_call_operand.vmem [shape: f32[2,1,32], index: 10, kind: input, shape index: {}]
  %s11 = inlined_call_operand.vmem [shape: f32[2,32,64], index: 11, kind: input, shape index: {}]
  %s12 = inlined_call_operand.vmem [shape: f32[2,1,64], index: 12, kind: input, shape index: {}]
  %s13 = inlined_call_operand.vmem [shape: f32[2,64,32], index: 13, kind: input, shape index: {}]
  %s14 = inlined_call_operand.vmem [shape: f32[2,1,32], index: 14, kind: input, shape index: {}]
  %s15 = inlined_call_operand.vmem [shape: f32[1,32], index: 15, kind: input, shape index: {}]
  %s16 = inlined_call_operand.vmem [shape: f32[1,32], index: 16, kind: input, shape index: {}]
  %s17 = inlined_call_operand.vmem [shape: f32[32,128], index: 17, kind: input, shape index: {}]
  %s18 = inlined_call_operand.vmem [shape: f32[1,128], index: 18, kind: input, shape index: {}]
  %s19 = inlined_call_operand.hbm [shape: f32[2,1,128], index: 19, kind: output, shape index: {}]
  %s20 = sld [smem:[#allocation0]]
  $region86: #{forward.1} parent=0
    _
  %s22 = ssub.s32 1, %s20
  %s23 = scalar_select 0, %s22, %s20
  $region1: #{forward.1} parent=0
    #allocation2 [shape = 'u8[1024]{0}', space=vmem, size = 0x400, scoped, tag = 'output window, operand 0, single buffered']
    #allocation3 [shape = 's32[1]{0}', space=sflag, size = 0x4, scoped, tag = 'scoped memory for forward.1']
    %24 = vsyncpa [#allocation3], 0
    // Predicated region
    $region2: #{forward.1} parent=1 // pred_check
      _
    $region3: #{forward.1} parent=1 // pred_check_branch
      %26 = sbr.rel (0) target = $region5
    $region4: #{forward.1} parent=1 // pred_region
      _
    $region5: #{forward.1} parent=1 // pred_fallthru
      _
    // Predicated region
    $region6: #{forward.1} parent=1 // pred_check
      _
    $region7: #{forward.1} parent=1 // pred_check_branch
      %28 = sbr.rel (0) target = $region9
    $region8: #{forward.1} parent=1 // pred_region
      _
    $region9: #{forward.1} parent=1 // pred_fallthru
      _
    // Predicated region
    $region10: #{forward.1} parent=1 // pred_check
      _
    $region11: #{forward.1} parent=1 // pred_check_branch
      %30 = sbr.rel (0) target = $region13
    $region12: #{forward.1} parent=1 // pred_region
      _
    $region13: #{forward.1} parent=1 // pred_fallthru
      _
    // Predicated region
    $region14: #{forward.1} parent=1 // pred_check
      _
    $region15: #{forward.1} parent=1 // pred_check_branch
      %32 = sbr.rel (0) target = $region17
    $region16: #{forward.1} parent=1 // pred_region
      _
    $region17: #{forward.1} parent=1 // pred_fallthru
      _
    // Predicated region
    $region18: #{forward.1} parent=1 // pred_check
      _
    $region19: #{forward.1} parent=1 // pred_check_branch
      %34 = sbr.rel (0) target = $region21
    $region20: #{forward.1} parent=1 // pred_region
      _
    $region21: #{forward.1} parent=1 // pred_fallthru
      _
    // Predicated region
    $region22: #{forward.1} parent=1 // pred_check
      _
    $region23: #{forward.1} parent=1 // pred_check_branch
      %36 = sbr.rel (0) target = $region25
    $region24: #{forward.1} parent=1 // pred_region
      _
    $region25: #{forward.1} parent=1 // pred_fallthru
      _
    // Predicated region
    $region26: #{forward.1} parent=1 // pred_check
      _
    $region27: #{forward.1} parent=1 // pred_check_branch
      %38 = sbr.rel (0) target = $region29
    $region28: #{forward.1} parent=1 // pred_region
      _
    $region29: #{forward.1} parent=1 // pred_fallthru
      _
    // Predicated region
    $region30: #{forward.1} parent=1 // pred_check
      _
    $region31: #{forward.1} parent=1 // pred_check_branch
      %40 = sbr.rel (0) target = $region33
    $region32: #{forward.1} parent=1 // pred_region
      _
    $region33: #{forward.1} parent=1 // pred_fallthru
      _
    // Predicated region
    $region34: #{forward.1} parent=1 // pred_check
      _
    $region35: #{forward.1} parent=1 // pred_check_branch
      %42 = sbr.rel (0) target = $region37
    $region36: #{forward.1} parent=1 // pred_region
      _
    $region37: #{forward.1} parent=1 // pred_fallthru
      _
    // Predicated region
    $region38: #{forward.1} parent=1 // pred_check
      _
    $region39: #{forward.1} parent=1 // pred_check_branch
      %44 = sbr.rel (0) target = $region41
    $region40: #{forward.1} parent=1 // pred_region
      _
    $region41: #{forward.1} parent=1 // pred_fallthru
      _
    // Predicated region
    $region42: #{forward.1} parent=1 // pred_check
      _
    $region43: #{forward.1} parent=1 // pred_check_branch
      %46 = sbr.rel (0) target = $region45
    $region44: #{forward.1} parent=1 // pred_region
      _
    $region45: #{forward.1} parent=1 // pred_fallthru
      _
    // Predicated region
    $region46: #{forward.1} parent=1 // pred_check
      _
    $region47: #{forward.1} parent=1 // pred_check_branch
      %48 = sbr.rel (0) target = $region49
    $region48: #{forward.1} parent=1 // pred_region
      _
    $region49: #{forward.1} parent=1 // pred_fallthru
      _
    // Predicated region
    $region50: #{forward.1} parent=1 // pred_check
      _
    $region51: #{forward.1} parent=1 // pred_check_branch
      %50 = sbr.rel (0) target = $region53
    $region52: #{forward.1} parent=1 // pred_region
      _
    $region53: #{forward.1} parent=1 // pred_fallthru
      _
    // Predicated region
    $region54: #{forward.1} parent=1 // pred_check
      _
    $region55: #{forward.1} parent=1 // pred_check_branch
      %52 = sbr.rel (0) target = $region57
    $region56: #{forward.1} parent=1 // pred_region
      _
    $region57: #{forward.1} parent=1 // pred_fallthru
      _
    // Predicated region
    $region58: #{forward.1} parent=1 // pred_check
      _
    $region59: #{forward.1} parent=1 // pred_check_branch
      %54 = sbr.rel (0) target = $region61
    $region60: #{forward.1} parent=1 // pred_region
      _
    $region61: #{forward.1} parent=1 // pred_fallthru
      _
    // Predicated region
    $region62: #{forward.1} parent=1 // pred_check
      _
    $region63: #{forward.1} parent=1 // pred_check_branch
      %56 = sbr.rel (0) target = $region65
    $region64: #{forward.1} parent=1 // pred_region
      _
    $region65: #{forward.1} parent=1 // pred_fallthru
      _
    // Predicated region
    $region66: #{forward.1} parent=1 // pred_check
      _
    $region67: #{forward.1} parent=1 // pred_check_branch
      %58 = sbr.rel (0) target = $region69
    $region68: #{forward.1} parent=1 // pred_region
      _
    $region69: #{forward.1} parent=1 // pred_fallthru
      _
    // Predicated region
    $region70: #{forward.1} parent=1 // pred_check
      _
    $region71: #{forward.1} parent=1 // pred_check_branch
      %60 = sbr.rel (0) target = $region73
    $region72: #{forward.1} parent=1 // pred_region
      _
    $region73: #{forward.1} parent=1 // pred_fallthru
      _
    // Predicated region
    $region74: #{forward.1} parent=1 // pred_check
      _
    $region75: #{forward.1} parent=1 // pred_check_branch
      %62 = sbr.rel (0) target = $region77
    $region76: #{forward.1} parent=1 // pred_region
      _
    $region77: #{forward.1} parent=1 // pred_fallthru
      _
    %v63 = vld [vmem:[%s0] sm:$0xff]
    %v64 = vld [vmem:[%s0 + $0x8] sm:$0xff]
    %v65 = vld [vmem:[%s1] sm:$0xff]
    %v66 = vld [vmem:[%s1 + $0x8] sm:$0xff]
    %v67 = vld [vmem:[%s1 + $0x10] sm:$0xff]
    %v68 = vld [vmem:[%s1 + $0x18] sm:$0xff]
    %v69 = vld [vmem:[%s1 + $0x20] sm:$0xff]
    %v70 = vld [vmem:[%s1 + $0x28] sm:$0xff]
    %v71 = vld [vmem:[%s1 + $0x30] sm:$0xff]
    %v72 = vld [vmem:[%s1 + $0x38] sm:$0xff]
    %v73 = vld [vmem:[%s2] sm:$0x1]
    %v75 = vlaneseq
    %v76 = vshrl.u32 %v75, 7
    %v77 = vsub.s32 0, %v76
    %v78 = vrot.slane %v73, %v77
    %vm80 = vcmask 523264
    %v82 = vsel %vm80, %v63, 0
    %v85 = vsel %vm80, %v64, 0
    %87 = vmatprep.subr.mxu0 0.0
    %88 = vmatpush1.msra.mxu0 %v65
    %89 = vmatprep.subr.mxu0 0.0
    %90 = vmatpush1.msra.mxu0 %v66
    %91 = vmatprep.subr.mxu0 0.0
    %92 = vmatpush1.msra.mxu0 %v67
    %93 = vmatprep.subr.mxu0 0.0
    %94 = vmatpush1.msra.mxu0 %v68
    %95 = vmatprep.subr.mxu0 0.0
    %96 = vmatpush1.msra.mxu0 %v69
    %97 = vmatprep.subr.mxu0 0.0
    %98 = vmatpush1.msra.mxu0 %v70
    %99 = vmatprep.subr.mxu0 0.0
    %100 = vmatpush1.msra.mxu0 %v71
    %101 = vmatprep.subr.mxu0 0.0
    %102 = vmatpush1.msra.mxu0 %v72
    %103 = vmatprep.subr.mxu0 0.0
    %104 = vmatpush1.msra.mxu0 0.0
    %105 = vmatprep.subr.mxu0 0.0
    %106 = vmatpush1.msra.mxu0 0.0
    %107 = vmatprep.subr.mxu0 0.0
    %108 = vmatpush1.msra.mxu0 0.0
    %109 = vmatprep.subr.mxu0 0.0
    %110 = vmatpush1.msra.mxu0 0.0
    %111 = vmatprep.subr.mxu0 0.0
    %112 = vmatpush1.msra.mxu0 0.0
    %113 = vmatprep.subr.mxu0 0.0
    %114 = vmatpush1.msra.mxu0 0.0
    %115 = vmatprep.subr.mxu0 0.0
    %116 = vmatpush1.msra.mxu0 0.0
    %117 = vmatprep.subr.mxu0 0.0
    %118 = vmatpush1.msra.mxu0 0.0
    %119 = vmatprep.subr.mxu0 0.0
    %120 = vmatpush1.msra.mxu0 0.0
    %121 = vmatprep.subr.mxu0 0.0
    %122 = vmatpush1.msra.mxu0 0.0
    %123 = vmatprep.subr.mxu0 0.0
    %124 = vmatpush1.msra.mxu0 0.0
    %125 = vmatprep.subr.mxu0 0.0
    %126 = vmatpush1.msra.mxu0 0.0
    %127 = vmatprep.subr.mxu0 0.0
    %128 = vmatpush1.msra.mxu0 0.0
    %129 = vmatprep.subr.mxu0 0.0
    %130 = vmatpush1.msra.mxu0 0.0
    %131 = vmatprep.subr.mxu0 0.0
    %132 = vmatpush1.msra.mxu0 0.0
    %133 = vmatprep.subr.mxu0 0.0
    %134 = vmatpush1.msra.mxu0 0.0
    %135 = vmatprep.subr.mxu0 0.0
    %136 = vmatpush1.msra.mxu0 0.0
    %137 = vmatprep.subr.mxu0 0.0
    %138 = vmatpush1.msra.mxu0 0.0
    %139 = vmatprep.subr.mxu0 0.0
    %140 = vmatpush1.msra.mxu0 0.0
    %141 = vmatprep.subr.mxu0 0.0
    %142 = vmatpush1.msra.mxu0 0.0
    %143 = vmatprep.subr.mxu0 0.0
    %144 = vmatpush1.msra.mxu0 0.0
    %145 = vmatprep.subr.mxu0 0.0
    %146 = vmatpush1.msra.mxu0 0.0
    %147 = vmatprep.subr.mxu0 0.0
    %148 = vmatpush1.msra.mxu0 0.0
    %149 = vmatprep.subr.mxu0 0.0
    %150 = vmatpush1.msra.mxu0 0.0
    %151 = vmatprep.mubr.f32.mxu0 0.0
    %152 = vmatmul.mubr.f32.gmra.mrb[0].mxu0 %v82
    %v153 = vpop.f32.mrb[0].mxu0
    %v154 = vadd.f32 %v78, %v153
    %v155 = vpop.f32.mrb[0].mxu0
    %156 = vmatprep.mubr.f32.mxu0 0.0
    %157 = vmatmul.mubr.f32.gmra.mrb[0].mxu0 %v85
    %v158 = vpop.f32.mrb[0].mxu0
    %v159 = vadd.f32 %v78, %v158
    %v160 = vpop.f32.mrb[0].mxu0
    %161 = vdwg.mxu0
    %v162 = vld [vmem:[%s3] sm:$0x1]
    %v163 = vld [vmem:[%s4] sm:$0x1]
    %vm164 = vcmask 261120
    %v165 = vsel %vm164, %v154, 0.0
    %166 = vadd.xlane.f32.xlu0 %v165
    %v167 = vpop.xlane.xlu0 %166
    %v168 = vsel %vm164, %v159, 0.0
    %169 = vadd.xlane.f32.xlu0 %v168
    %v170 = vpop.xlane.xlu0 %169
    %v171 = vrcp.pop 32.0
    %v172 = vmul.f32 %v167, %v171
    %v173 = vmul.f32 %v170, %v171
    %v174 = vsub.f32 %v154, %v172
    %v175 = vsub.f32 %v159, %v173
    %v176 = vmul.f32 %v174, %v174
    %v177 = vmul.f32 %v175, %v175
    %v178 = vsel %vm164, %v176, 0.0
    %179 = vadd.xlane.f32.xlu0 %v178
    %v180 = vpop.xlane.xlu0 %179
    %v181 = vsel %vm164, %v177, 0.0
    %182 = vadd.xlane.f32.xlu0 %v181
    %v183 = vpop.xlane.xlu0 %182
    %v184 = vmul.f32 %v180, %v171
    %v185 = vmul.f32 %v183, %v171
    %v186 = vadd.f32 %v184, 1e-05
    %v187 = vadd.f32 %v185, 1e-05
    %v188 = vrsqrt.pop %v186
    %v189 = vrsqrt.pop %v187
    %v190 = vmul.f32 %v174, %v188
    %v191 = vmul.f32 %v175, %v189
    %v193 = vlaneseq
    %v194 = vshrl.u32 %v193, 7
    %v195 = vsub.s32 0, %v194
    %v196 = vrot.slane %v162, %v195
    %v198 = vmul.f32 %v190, %v196
    %v199 = vmul.f32 %v191, %v196
    %v201 = vlaneseq
    %v202 = vshrl.u32 %v201, 7
    %v203 = vsub.s32 0, %v202
    %v204 = vrot.slane %v163, %v203
    %v206 = vadd.f32 %v198, %v204
    %v207 = vadd.f32 %v199, %v204
    %v208 = vld [vmem:[%s5] sm:$0xff]
    %v209 = vld [vmem:[%s5 + $0x8] sm:$0xff]
    %v210 = vld [vmem:[%s6] sm:$0xff]
    %v211 = vld [vmem:[%s6 + $0x8] sm:$0xff]
    %213 = vset.pattern.permute.xlu0 0
    %214 = vperm.xlu0 %213, %v210
    %v215 = vpop.permute.xlu0 %214
    %218 = vset.pattern.permute.xlu0 0
    %219 = vperm.xlu0 %218, %v211
    %v220 = vpop.permute.xlu0 %219
    %vm222 = vcmask 130048
    %v224 = vsel %vm222, %v208, 0
    %v227 = vsel %vm222, %v209, 0
    %229 = vmatprep.subr.mxu0 0.0
    %230 = vmatpush1.msra.mxu0 %v206
    %231 = vmatprep.subr.mxu0 0.0
    %232 = vmatpush1.msra.mxu0 %v207
    %233 = vmatprep.subr.mxu0 0.0
    %234 = vmatpush1.msra.mxu0 0.0
    %235 = vmatprep.subr.mxu0 0.0
    %236 = vmatpush1.msra.mxu0 0.0
    %237 = vmatprep.subr.mxu0 0.0
    %238 = vmatpush1.msra.mxu0 0.0
    %239 = vmatprep.subr.mxu0 0.0
    %240 = vmatpush1.msra.mxu0 0.0
    %241 = vmatprep.subr.mxu0 0.0
    %242 = vmatpush1.msra.mxu0 0.0
    %243 = vmatprep.subr.mxu0 0.0
    %244 = vmatpush1.msra.mxu0 0.0
    %245 = vmatprep.subr.mxu0 0.0
    %246 = vmatpush1.msra.mxu0 0.0
    %247 = vmatprep.subr.mxu0 0.0
    %248 = vmatpush1.msra.mxu0 0.0
    %249 = vmatprep.subr.mxu0 0.0
    %250 = vmatpush1.msra.mxu0 0.0
    %251 = vmatprep.subr.mxu0 0.0
    %252 = vmatpush1.msra.mxu0 0.0
    %253 = vmatprep.subr.mxu0 0.0
    %254 = vmatpush1.msra.mxu0 0.0
    %255 = vmatprep.subr.mxu0 0.0
    %256 = vmatpush1.msra.mxu0 0.0
    %257 = vmatprep.subr.mxu0 0.0
    %258 = vmatpush1.msra.mxu0 0.0
    %259 = vmatprep.subr.mxu0 0.0
    %260 = vmatpush1.msra.mxu0 0.0
    %261 = vmatprep.subr.mxu0 0.0
    %262 = vmatpush1.msra.mxu0 0.0
    %263 = vmatprep.subr.mxu0 0.0
    %264 = vmatpush1.msra.mxu0 0.0
    %265 = vmatprep.subr.mxu0 0.0
    %266 = vmatpush1.msra.mxu0 0.0
    %267 = vmatprep.subr.mxu0 0.0
    %268 = vmatpush1.msra.mxu0 0.0
    %269 = vmatprep.subr.mxu0 0.0
    %270 = vmatpush1.msra.mxu0 0.0
    %271 = vmatprep.subr.mxu0 0.0
    %272 = vmatpush1.msra.mxu0 0.0
    %273 = vmatprep.subr.mxu0 0.0
    %274 = vmatpush1.msra.mxu0 0.0
    %275 = vmatprep.subr.mxu0 0.0
    %276 = vmatpush1.msra.mxu0 0.0
    %277 = vmatprep.subr.mxu0 0.0
    %278 = vmatpush1.msra.mxu0 0.0
    %279 = vmatprep.subr.mxu0 0.0
    %280 = vmatpush1.msra.mxu0 0.0
    %281 = vmatprep.subr.mxu0 0.0
    %282 = vmatpush1.msra.mxu0 0.0
    %283 = vmatprep.subr.mxu0 0.0
    %284 = vmatpush1.msra.mxu0 0.0
    %285 = vmatprep.subr.mxu0 0.0
    %286 = vmatpush1.msra.mxu0 0.0
    %287 = vmatprep.subr.mxu0 0.0
    %288 = vmatpush1.msra.mxu0 0.0
    %289 = vmatprep.subr.mxu0 0.0
    %290 = vmatpush1.msra.mxu0 0.0
    %291 = vmatprep.subr.mxu0 0.0
    %292 = vmatpush1.msra.mxu0 0.0
    %293 = vmatprep.mubr.f32.mxu0 0.0
    %294 = vmatmul.mubr.f32.gmra.mrb[0].mxu0 %v224
    %v295 = vpop.f32.mrb[0].mxu0
    %v296 = vadd.f32 %v215, %v295
    %v297 = vpop.f32.mrb[0].mxu0
    %298 = vmatprep.mubr.f32.mxu0 0.0
    %299 = vmatmul.mubr.f32.gmra.mrb[0].mxu0 %v227
    %v300 = vpop.f32.mrb[0].mxu0
    %v301 = vadd.f32 %v220, %v300
    %v302 = vpop.f32.mrb[0].mxu0
    %303 = vdwg.mxu0
    %v304 = vmul.f32 %v296, %v296
    %v305 = vmul.f32 %v301, %v301
    %v306 = vmul.f32 %v296, %v304
    %v307 = vmul.f32 %v301, %v305
    %v308 = vmul.f32 %v306, 0.044715
    %v309 = vmul.f32 %v307, 0.044715
    %v310 = vadd.f32 %v296, %v308
    %v311 = vadd.f32 %v301, %v309
    %v312 = vmul.f32 %v310, 0.7978846
    %v313 = vmul.f32 %v311, 0.7978846
    %v314 = vtanh.pop %v312
    %v315 = vtanh.pop %v313
    %v316 = vadd.f32 %v314, 1.0
    %v317 = vadd.f32 %v315, 1.0
    %v318 = vmul.f32 %v316, 0.5
    %v319 = vmul.f32 %v317, 0.5
    %v320 = vmul.f32 %v296, %v318
    %v321 = vmul.f32 %v301, %v319
    %v322 = vld [vmem:[%s7] sm:$0xff]
    %v323 = vld [vmem:[%s7 + $0x8] sm:$0xff]
    %v324 = vld [vmem:[%s8] sm:$0xff]
    %v325 = vld [vmem:[%s8 + $0x8] sm:$0xff]
    %327 = vset.pattern.permute.xlu0 0
    %328 = vperm.xlu0 %327, %v324
    %v329 = vpop.permute.xlu0 %328
    %332 = vset.pattern.permute.xlu0 0
    %333 = vperm.xlu0 %332, %v325
    %v334 = vpop.permute.xlu0 %333
    %v337 = vsel %vm222, %v322, 0
    %v340 = vsel %vm222, %v323, 0
    %342 = vmatprep.subr.mxu0 0.0
    %343 = vmatpush1.msra.mxu0 %v320
    %344 = vmatprep.subr.mxu0 0.0
    %345 = vmatpush1.msra.mxu0 %v321
    %346 = vmatprep.subr.mxu0 0.0
    %347 = vmatpush1.msra.mxu0 0.0
    %348 = vmatprep.subr.mxu0 0.0
    %349 = vmatpush1.msra.mxu0 0.0
    %350 = vmatprep.subr.mxu0 0.0
    %351 = vmatpush1.msra.mxu0 0.0
    %352 = vmatprep.subr.mxu0 0.0
    %353 = vmatpush1.msra.mxu0 0.0
    %354 = vmatprep.subr.mxu0 0.0
    %355 = vmatpush1.msra.mxu0 0.0
    %356 = vmatprep.subr.mxu0 0.0
    %357 = vmatpush1.msra.mxu0 0.0
    %358 = vmatprep.subr.mxu0 0.0
    %359 = vmatpush1.msra.mxu0 0.0
    %360 = vmatprep.subr.mxu0 0.0
    %361 = vmatpush1.msra.mxu0 0.0
    %362 = vmatprep.subr.mxu0 0.0
    %363 = vmatpush1.msra.mxu0 0.0
    %364 = vmatprep.subr.mxu0 0.0
    %365 = vmatpush1.msra.mxu0 0.0
    %366 = vmatprep.subr.mxu0 0.0
    %367 = vmatpush1.msra.mxu0 0.0
    %368 = vmatprep.subr.mxu0 0.0
    %369 = vmatpush1.msra.mxu0 0.0
    %370 = vmatprep.subr.mxu0 0.0
    %371 = vmatpush1.msra.mxu0 0.0
    %372 = vmatprep.subr.mxu0 0.0
    %373 = vmatpush1.msra.mxu0 0.0
    %374 = vmatprep.subr.mxu0 0.0
    %375 = vmatpush1.msra.mxu0 0.0
    %376 = vmatprep.subr.mxu0 0.0
    %377 = vmatpush1.msra.mxu0 0.0
    %378 = vmatprep.subr.mxu0 0.0
    %379 = vmatpush1.msra.mxu0 0.0
    %380 = vmatprep.subr.mxu0 0.0
    %381 = vmatpush1.msra.mxu0 0.0
    %382 = vmatprep.subr.mxu0 0.0
    %383 = vmatpush1.msra.mxu0 0.0
    %384 = vmatprep.subr.mxu0 0.0
    %385 = vmatpush1.msra.mxu0 0.0
    %386 = vmatprep.subr.mxu0 0.0
    %387 = vmatpush1.msra.mxu0 0.0
    %388 = vmatprep.subr.mxu0 0.0
    %389 = vmatpush1.msra.mxu0 0.0
    %390 = vmatprep.subr.mxu0 0.0
    %391 = vmatpush1.msra.mxu0 0.0
    %392 = vmatprep.subr.mxu0 0.0
    %393 = vmatpush1.msra.mxu0 0.0
    %394 = vmatprep.subr.mxu0 0.0
    %395 = vmatpush1.msra.mxu0 0.0
    %396 = vmatprep.subr.mxu0 0.0
    %397 = vmatpush1.msra.mxu0 0.0
    %398 = vmatprep.subr.mxu0 0.0
    %399 = vmatpush1.msra.mxu0 0.0
    %400 = vmatprep.subr.mxu0 0.0
    %401 = vmatpush1.msra.mxu0 0.0
    %402 = vmatprep.subr.mxu0 0.0
    %403 = vmatpush1.msra.mxu0 0.0
    %404 = vmatprep.subr.mxu0 0.0
    %405 = vmatpush1.msra.mxu0 0.0
    %406 = vmatprep.mubr.f32.mxu0 0.0
    %407 = vmatmul.mubr.f32.gmra.mrb[0].mxu0 %v337
    %v408 = vpop.f32.mrb[0].mxu0
    %v409 = vadd.f32 %v329, %v408
    %v410 = vpop.f32.mrb[0].mxu0
    %411 = vmatprep.mubr.f32.mxu0 0.0
    %412 = vmatmul.mubr.f32.gmra.mrb[0].mxu0 %v340
    %v413 = vpop.f32.mrb[0].mxu0
    %v414 = vadd.f32 %v334, %v413
    %v415 = vpop.f32.mrb[0].mxu0
    %416 = vdwg.mxu0
    %v417 = vadd.f32 %v154, %v409
    %v418 = vadd.f32 %v159, %v414
    %v419 = vld [vmem:[%s9] sm:$0x1]
    %v420 = vld [vmem:[%s10] sm:$0x1]
    %v421 = vsel %vm164, %v417, 0.0
    %422 = vadd.xlane.f32.xlu0 %v421
    %v423 = vpop.xlane.xlu0 %422
    %v424 = vsel %vm164, %v418, 0.0
    %425 = vadd.xlane.f32.xlu0 %v424
    %v426 = vpop.xlane.xlu0 %425
    %v427 = vmul.f32 %v423, %v171
    %v428 = vmul.f32 %v426, %v171
    %v429 = vsub.f32 %v417, %v427
    %v430 = vsub.f32 %v418, %v428
    %v431 = vmul.f32 %v429, %v429
    %v432 = vmul.f32 %v430, %v430
    %v433 = vsel %vm164, %v431, 0.0
    %434 = vadd.xlane.f32.xlu0 %v433
    %v435 = vpop.xlane.xlu0 %434
    %v436 = vsel %vm164, %v432, 0.0
    %437 = vadd.xlane.f32.xlu0 %v436
    %v438 = vpop.xlane.xlu0 %437
    %v439 = vmul.f32 %v435, %v171
    %v440 = vmul.f32 %v438, %v171
    %v441 = vadd.f32 %v439, 1e-05
    %v442 = vadd.f32 %v440, 1e-05
    %v443 = vrsqrt.pop %v441
    %v444 = vrsqrt.pop %v442
    %v445 = vmul.f32 %v429, %v443
    %v446 = vmul.f32 %v430, %v444
    %v448 = vlaneseq
    %v449 = vshrl.u32 %v448, 7
    %v450 = vsub.s32 0, %v449
    %v451 = vrot.slane %v419, %v450
    %v453 = vmul.f32 %v445, %v451
    %v454 = vmul.f32 %v446, %v451
    %v456 = vlaneseq
    %v457 = vshrl.u32 %v456, 7
    %v458 = vsub.s32 0, %v457
    %v459 = vrot.slane %v420, %v458
    %v461 = vadd.f32 %v453, %v459
    %v462 = vadd.f32 %v454, %v459
    %v463 = vld [vmem:[%s11] sm:$0xff]
    %v464 = vld [vmem:[%s11 + $0x8] sm:$0xff]
    %v465 = vld [vmem:[%s11 + $0x10] sm:$0xff]
    %v466 = vld [vmem:[%s11 + $0x18] sm:$0xff]
    %v467 = vld [vmem:[%s12] sm:$0x1]
    %v469 = vlaneseq
    %v470 = vshrl.u32 %v469, 7
    %v471 = vsub.s32 0, %v470
    %v472 = vrot.slane %v467, %v471
    %v475 = vsel %vm164, %v461, 0
    %v478 = vsel %vm164, %v462, 0
    %480 = vmatprep.subr.mxu0 0.0
    %481 = vmatpush1.msra.mxu0 %v463
    %482 = vmatprep.subr.mxu0 0.0
    %483 = vmatpush1.msra.mxu0 %v464
    %484 = vmatprep.subr.mxu0 0.0
    %485 = vmatpush1.msra.mxu0 %v465
    %486 = vmatprep.subr.mxu0 0.0
    %487 = vmatpush1.msra.mxu0 %v466
    %488 = vmatprep.subr.mxu0 0.0
    %489 = vmatpush1.msra.mxu0 0.0
    %490 = vmatprep.subr.mxu0 0.0
    %491 = vmatpush1.msra.mxu0 0.0
    %492 = vmatprep.subr.mxu0 0.0
    %493 = vmatpush1.msra.mxu0 0.0
    %494 = vmatprep.subr.mxu0 0.0
    %495 = vmatpush1.msra.mxu0 0.0
    %496 = vmatprep.subr.mxu0 0.0
    %497 = vmatpush1.msra.mxu0 0.0
    %498 = vmatprep.subr.mxu0 0.0
    %499 = vmatpush1.msra.mxu0 0.0
    %500 = vmatprep.subr.mxu0 0.0
    %501 = vmatpush1.msra.mxu0 0.0
    %502 = vmatprep.subr.mxu0 0.0
    %503 = vmatpush1.msra.mxu0 0.0
    %504 = vmatprep.subr.mxu0 0.0
    %505 = vmatpush1.msra.mxu0 0.0
    %506 = vmatprep.subr.mxu0 0.0
    %507 = vmatpush1.msra.mxu0 0.0
    %508 = vmatprep.subr.mxu0 0.0
    %509 = vmatpush1.msra.mxu0 0.0
    %510 = vmatprep.subr.mxu0 0.0
    %511 = vmatpush1.msra.mxu0 0.0
    %512 = vmatprep.subr.mxu0 0.0
    %513 = vmatpush1.msra.mxu0 0.0
    %514 = vmatprep.subr.mxu0 0.0
    %515 = vmatpush1.msra.mxu0 0.0
    %516 = vmatprep.subr.mxu0 0.0
    %517 = vmatpush1.msra.mxu0 0.0
    %518 = vmatprep.subr.mxu0 0.0
    %519 = vmatpush1.msra.mxu0 0.0
    %520 = vmatprep.subr.mxu0 0.0
    %521 = vmatpush1.msra.mxu0 0.0
    %522 = vmatprep.subr.mxu0 0.0
    %523 = vmatpush1.msra.mxu0 0.0
    %524 = vmatprep.subr.mxu0 0.0
    %525 = vmatpush1.msra.mxu0 0.0
    %526 = vmatprep.subr.mxu0 0.0
    %527 = vmatpush1.msra.mxu0 0.0
    %528 = vmatprep.subr.mxu0 0.0
    %529 = vmatpush1.msra.mxu0 0.0
    %530 = vmatprep.subr.mxu0 0.0
    %531 = vmatpush1.msra.mxu0 0.0
    %532 = vmatprep.subr.mxu0 0.0
    %533 = vmatpush1.msra.mxu0 0.0
    %534 = vmatprep.subr.mxu0 0.0
    %535 = vmatpush1.msra.mxu0 0.0
    %536 = vmatprep.subr.mxu0 0.0
    %537 = vmatpush1.msra.mxu0 0.0
    %538 = vmatprep.subr.mxu0 0.0
    %539 = vmatpush1.msra.mxu0 0.0
    %540 = vmatprep.subr.mxu0 0.0
    %541 = vmatpush1.msra.mxu0 0.0
    %542 = vmatprep.subr.mxu0 0.0
    %543 = vmatpush1.msra.mxu0 0.0
    %544 = vmatprep.mubr.f32.mxu0 0.0
    %545 = vmatmul.mubr.f32.gmra.mrb[0].mxu0 %v475
    %v546 = vpop.f32.mrb[0].mxu0
    %v547 = vadd.f32 %v472, %v546
    %v548 = vpop.f32.mrb[0].mxu0
    %549 = vmatprep.mubr.f32.mxu0 0.0
    %550 = vmatmul.mubr.f32.gmra.mrb[0].mxu0 %v478
    %v551 = vpop.f32.mrb[0].mxu0
    %v552 = vadd.f32 %v472, %v551
    %v553 = vpop.f32.mrb[0].mxu0
    %554 = vdwg.mxu0
    %v555 = vmul.f32 %v547, %v547
    %v556 = vmul.f32 %v552, %v552
    %v557 = vmul.f32 %v547, %v555
    %v558 = vmul.f32 %v552, %v556
    %v559 = vmul.f32 %v557, 0.044715
    %v560 = vmul.f32 %v558, 0.044715
    %v561 = vadd.f32 %v547, %v559
    %v562 = vadd.f32 %v552, %v560
    %v563 = vmul.f32 %v561, 0.7978846
    %v564 = vmul.f32 %v562, 0.7978846
    %v565 = vtanh.pop %v563
    %v566 = vtanh.pop %v564
    %v567 = vadd.f32 %v565, 1.0
    %v568 = vadd.f32 %v566, 1.0
    %v569 = vmul.f32 %v567, 0.5
    %v570 = vmul.f32 %v568, 0.5
    %v571 = vmul.f32 %v547, %v569
    %v572 = vmul.f32 %v552, %v570
    %v573 = vld [vmem:[%s13] sm:$0xff]
    %v574 = vld [vmem:[%s13 + $0x8] sm:$0xff]
    %v575 = vld [vmem:[%s13 + $0x10] sm:$0xff]
    %v576 = vld [vmem:[%s13 + $0x18] sm:$0xff]
    %v577 = vld [vmem:[%s13 + $0x20] sm:$0xff]
    %v578 = vld [vmem:[%s13 + $0x28] sm:$0xff]
    %v579 = vld [vmem:[%s13 + $0x30] sm:$0xff]
    %v580 = vld [vmem:[%s13 + $0x38] sm:$0xff]
    %v581 = vld [vmem:[%s14] sm:$0x1]
    %v583 = vlaneseq
    %v584 = vshrl.u32 %v583, 7
    %v585 = vsub.s32 0, %v584
    %v586 = vrot.slane %v581, %v585
    %v589 = vsel %vm80, %v571, 0
    %v592 = vsel %vm80, %v572, 0
    %594 = vmatprep.subr.mxu0 0.0
    %595 = vmatpush1.msra.mxu0 %v573
    %596 = vmatprep.subr.mxu0 0.0
    %597 = vmatpush1.msra.mxu0 %v574
    %598 = vmatprep.subr.mxu0 0.0
    %599 = vmatpush1.msra.mxu0 %v575
    %600 = vmatprep.subr.mxu0 0.0
    %601 = vmatpush1.msra.mxu0 %v576
    %602 = vmatprep.subr.mxu0 0.0
    %603 = vmatpush1.msra.mxu0 %v577
    %604 = vmatprep.subr.mxu0 0.0
    %605 = vmatpush1.msra.mxu0 %v578
    %606 = vmatprep.subr.mxu0 0.0
    %607 = vmatpush1.msra.mxu0 %v579
    %608 = vmatprep.subr.mxu0 0.0
    %609 = vmatpush1.msra.mxu0 %v580
    %610 = vmatprep.subr.mxu0 0.0
    %611 = vmatpush1.msra.mxu0 0.0
    %612 = vmatprep.subr.mxu0 0.0
    %613 = vmatpush1.msra.mxu0 0.0
    %614 = vmatprep.subr.mxu0 0.0
    %615 = vmatpush1.msra.mxu0 0.0
    %616 = vmatprep.subr.mxu0 0.0
    %617 = vmatpush1.msra.mxu0 0.0
    %618 = vmatprep.subr.mxu0 0.0
    %619 = vmatpush1.msra.mxu0 0.0
    %620 = vmatprep.subr.mxu0 0.0
    %621 = vmatpush1.msra.mxu0 0.0
    %622 = vmatprep.subr.mxu0 0.0
    %623 = vmatpush1.msra.mxu0 0.0
    %624 = vmatprep.subr.mxu0 0.0
    %625 = vmatpush1.msra.mxu0 0.0
    %626 = vmatprep.subr.mxu0 0.0
    %627 = vmatpush1.msra.mxu0 0.0
    %628 = vmatprep.subr.mxu0 0.0
    %629 = vmatpush1.msra.mxu0 0.0
    %630 = vmatprep.subr.mxu0 0.0
    %631 = vmatpush1.msra.mxu0 0.0
    %632 = vmatprep.subr.mxu0 0.0
    %633 = vmatpush1.msra.mxu0 0.0
    %634 = vmatprep.subr.mxu0 0.0
    %635 = vmatpush1.msra.mxu0 0.0
    %636 = vmatprep.subr.mxu0 0.0
    %637 = vmatpush1.msra.mxu0 0.0
    %638 = vmatprep.subr.mxu0 0.0
    %639 = vmatpush1.msra.mxu0 0.0
    %640 = vmatprep.subr.mxu0 0.0
    %641 = vmatpush1.msra.mxu0 0.0
    %642 = vmatprep.subr.mxu0 0.0
    %643 = vmatpush1.msra.mxu0 0.0
    %644 = vmatprep.subr.mxu0 0.0
    %645 = vmatpush1.msra.mxu0 0.0
    %646 = vmatprep.subr.mxu0 0.0
    %647 = vmatpush1.msra.mxu0 0.0
    %648 = vmatprep.subr.mxu0 0.0
    %649 = vmatpush1.msra.mxu0 0.0
    %650 = vmatprep.subr.mxu0 0.0
    %651 = vmatpush1.msra.mxu0 0.0
    %652 = vmatprep.subr.mxu0 0.0
    %653 = vmatpush1.msra.mxu0 0.0
    %654 = vmatprep.subr.mxu0 0.0
    %655 = vmatpush1.msra.mxu0 0.0
    %656 = vmatprep.subr.mxu0 0.0
    %657 = vmatpush1.msra.mxu0 0.0
    %658 = vmatprep.mubr.f32.mxu0 0.0
    %659 = vmatmul.mubr.f32.gmra.mrb[0].mxu0 %v589
    %v660 = vpop.f32.mrb[0].mxu0
    %v661 = vadd.f32 %v586, %v660
    %v662 = vpop.f32.mrb[0].mxu0
    %663 = vmatprep.mubr.f32.mxu0 0.0
    %664 = vmatmul.mubr.f32.gmra.mrb[0].mxu0 %v592
    %v665 = vpop.f32.mrb[0].mxu0
    %v666 = vadd.f32 %v586, %v665
    %v667 = vpop.f32.mrb[0].mxu0
    %668 = vdwg.mxu0
    %v669 = vadd.f32 %v417, %v661
    %v670 = vadd.f32 %v418, %v666
    %s671 = scalar_lea.vmem %s3, 1
    %v672 = vld [vmem:[%s671] sm:$0x1]
    %s673 = scalar_lea.vmem %s4, 1
    %v674 = vld [vmem:[%s673] sm:$0x1]
    %v675 = vsel %vm164, %v669, 0.0
    %676 = vadd.xlane.f32.xlu0 %v675
    %v677 = vpop.xlane.xlu0 %676
    %v678 = vsel %vm164, %v670, 0.0
    %679 = vadd.xlane.f32.xlu0 %v678
    %v680 = vpop.xlane.xlu0 %679
    %v681 = vmul.f32 %v677, %v171
    %v682 = vmul.f32 %v680, %v171
    %v683 = vsub.f32 %v669, %v681
    %v684 = vsub.f32 %v670, %v682
    %v685 = vmul.f32 %v683, %v683
    %v686 = vmul.f32 %v684, %v684
    %v687 = vsel %vm164, %v685, 0.0
    %688 = vadd.xlane.f32.xlu0 %v687
    %v689 = vpop.xlane.xlu0 %688
    %v690 = vsel %vm164, %v686, 0.0
    %691 = vadd.xlane.f32.xlu0 %v690
    %v692 = vpop.xlane.xlu0 %691
    %v693 = vmul.f32 %v689, %v171
    %v694 = vmul.f32 %v692, %v171
    %v695 = vadd.f32 %v693, 1e-05
    %v696 = vadd.f32 %v694, 1e-05
    %v697 = vrsqrt.pop %v695
    %v698 = vrsqrt.pop %v696
    %v699 = vmul.f32 %v683, %v697
    %v700 = vmul.f32 %v684, %v698
    %v702 = vlaneseq
    %v703 = vshrl.u32 %v702, 7
    %v704 = vsub.s32 0, %v703
    %v705 = vrot.slane %v672, %v704
    %v707 = vmul.f32 %v699, %v705
    %v708 = vmul.f32 %v700, %v705
    %v710 = vlaneseq
    %v711 = vshrl.u32 %v710, 7
    %v712 = vsub.s32 0, %v711
    %v713 = vrot.slane %v674, %v712
    %v715 = vadd.f32 %v707, %v713
    %v716 = vadd.f32 %v708, %v713
    %s717 = scalar_lea.vmem %s5, 16
    %v718 = vld [vmem:[%s717] sm:$0xff]
    %v719 = vld [vmem:[%s717 + $0x8] sm:$0xff]
    %s720 = scalar_lea.vmem %s6, 16
    %v721 = vld [vmem:[%s720] sm:$0xff]
    %v722 = vld [vmem:[%s720 + $0x8] sm:$0xff]
    %724 = vset.pattern.permute.xlu0 0
    %725 = vperm.xlu0 %724, %v721
    %v726 = vpop.permute.xlu0 %725
    %729 = vset.pattern.permute.xlu0 0
    %730 = vperm.xlu0 %729, %v722
    %v731 = vpop.permute.xlu0 %730
    %v734 = vsel %vm222, %v718, 0
    %v737 = vsel %vm222, %v719, 0
    %739 = vmatprep.subr.mxu0 0.0
    %740 = vmatpush1.msra.mxu0 %v715
    %741 = vmatprep.subr.mxu0 0.0
    %742 = vmatpush1.msra.mxu0 %v716
    %743 = vmatprep.subr.mxu0 0.0
    %744 = vmatpush1.msra.mxu0 0.0
    %745 = vmatprep.subr.mxu0 0.0
    %746 = vmatpush1.msra.mxu0 0.0
    %747 = vmatprep.subr.mxu0 0.0
    %748 = vmatpush1.msra.mxu0 0.0
    %749 = vmatprep.subr.mxu0 0.0
    %750 = vmatpush1.msra.mxu0 0.0
    %751 = vmatprep.subr.mxu0 0.0
    %752 = vmatpush1.msra.mxu0 0.0
    %753 = vmatprep.subr.mxu0 0.0
    %754 = vmatpush1.msra.mxu0 0.0
    %755 = vmatprep.subr.mxu0 0.0
    %756 = vmatpush1.msra.mxu0 0.0
    %757 = vmatprep.subr.mxu0 0.0
    %758 = vmatpush1.msra.mxu0 0.0
    %759 = vmatprep.subr.mxu0 0.0
    %760 = vmatpush1.msra.mxu0 0.0
    %761 = vmatprep.subr.mxu0 0.0
    %762 = vmatpush1.msra.mxu0 0.0
    %763 = vmatprep.subr.mxu0 0.0
    %764 = vmatpush1.msra.mxu0 0.0
    %765 = vmatprep.subr.mxu0 0.0
    %766 = vmatpush1.msra.mxu0 0.0
    %767 = vmatprep.subr.mxu0 0.0
    %768 = vmatpush1.msra.mxu0 0.0
    %769 = vmatprep.subr.mxu0 0.0
    %770 = vmatpush1.msra.mxu0 0.0
    %771 = vmatprep.subr.mxu0 0.0
    %772 = vmatpush1.msra.mxu0 0.0
    %773 = vmatprep.subr.mxu0 0.0
    %774 = vmatpush1.msra.mxu0 0.0
    %775 = vmatprep.subr.mxu0 0.0
    %776 = vmatpush1.msra.mxu0 0.0
    %777 = vmatprep.subr.mxu0 0.0
    %778 = vmatpush1.msra.mxu0 0.0
    %779 = vmatprep.subr.mxu0 0.0
    %780 = vmatpush1.msra.mxu0 0.0
    %781 = vmatprep.subr.mxu0 0.0
    %782 = vmatpush1.msra.mxu0 0.0
    %783 = vmatprep.subr.mxu0 0.0
    %784 = vmatpush1.msra.mxu0 0.0
    %785 = vmatprep.subr.mxu0 0.0
    %786 = vmatpush1.msra.mxu0 0.0
    %787 = vmatprep.subr.mxu0 0.0
    %788 = vmatpush1.msra.mxu0 0.0
    %789 = vmatprep.subr.mxu0 0.0
    %790 = vmatpush1.msra.mxu0 0.0
    %791 = vmatprep.subr.mxu0 0.0
    %792 = vmatpush1.msra.mxu0 0.0
    %793 = vmatprep.subr.mxu0 0.0
    %794 = vmatpush1.msra.mxu0 0.0
    %795 = vmatprep.subr.mxu0 0.0
    %796 = vmatpush1.msra.mxu0 0.0
    %797 = vmatprep.subr.mxu0 0.0
    %798 = vmatpush1.msra.mxu0 0.0
    %799 = vmatprep.subr.mxu0 0.0
    %800 = vmatpush1.msra.mxu0 0.0
    %801 = vmatprep.subr.mxu0 0.0
    %802 = vmatpush1.msra.mxu0 0.0
    %803 = vmatprep.mubr.f32.mxu0 0.0
    %804 = vmatmul.mubr.f32.gmra.mrb[0].mxu0 %v734
    %v805 = vpop.f32.mrb[0].mxu0
    %v806 = vadd.f32 %v726, %v805
    %v807 = vpop.f32.mrb[0].mxu0
    %808 = vmatprep.mubr.f32.mxu0 0.0
    %809 = vmatmul.mubr.f32.gmra.mrb[0].mxu0 %v737
    %v810 = vpop.f32.mrb[0].mxu0
    %v811 = vadd.f32 %v731, %v810
    %v812 = vpop.f32.mrb[0].mxu0
    %813 = vdwg.mxu0
    %v814 = vmul.f32 %v806, %v806
    %v815 = vmul.f32 %v811, %v811
    %v816 = vmul.f32 %v806, %v814
    %v817 = vmul.f32 %v811, %v815
    %v818 = vmul.f32 %v816, 0.044715
    %v819 = vmul.f32 %v817, 0.044715
    %v820 = vadd.f32 %v806, %v818
    %v821 = vadd.f32 %v811, %v819
    %v822 = vmul.f32 %v820, 0.7978846
    %v823 = vmul.f32 %v821, 0.7978846
    %v824 = vtanh.pop %v822
    %v825 = vtanh.pop %v823
    %v826 = vadd.f32 %v824, 1.0
    %v827 = vadd.f32 %v825, 1.0
    %v828 = vmul.f32 %v826, 0.5
    %v829 = vmul.f32 %v827, 0.5
    %v830 = vmul.f32 %v806, %v828
    %v831 = vmul.f32 %v811, %v829
    %s832 = scalar_lea.vmem %s7, 16
    %v833 = vld [vmem:[%s832] sm:$0xff]
    %v834 = vld [vmem:[%s832 + $0x8] sm:$0xff]
    %s835 = scalar_lea.vmem %s8, 16
    %v836 = vld [vmem:[%s835] sm:$0xff]
    %v837 = vld [vmem:[%s835 + $0x8] sm:$0xff]
    %839 = vset.pattern.permute.xlu0 0
    %840 = vperm.xlu0 %839, %v836
    %v841 = vpop.permute.xlu0 %840
    %844 = vset.pattern.permute.xlu0 0
    %845 = vperm.xlu0 %844, %v837
    %v846 = vpop.permute.xlu0 %845
    %v849 = vsel %vm222, %v833, 0
    %v852 = vsel %vm222, %v834, 0
    %854 = vmatprep.subr.mxu0 0.0
    %855 = vmatpush1.msra.mxu0 %v830
    %856 = vmatprep.subr.mxu0 0.0
    %857 = vmatpush1.msra.mxu0 %v831
    %858 = vmatprep.subr.mxu0 0.0
    %859 = vmatpush1.msra.mxu0 0.0
    %860 = vmatprep.subr.mxu0 0.0
    %861 = vmatpush1.msra.mxu0 0.0
    %862 = vmatprep.subr.mxu0 0.0
    %863 = vmatpush1.msra.mxu0 0.0
    %864 = vmatprep.subr.mxu0 0.0
    %865 = vmatpush1.msra.mxu0 0.0
    %866 = vmatprep.subr.mxu0 0.0
    %867 = vmatpush1.msra.mxu0 0.0
    %868 = vmatprep.subr.mxu0 0.0
    %869 = vmatpush1.msra.mxu0 0.0
    %870 = vmatprep.subr.mxu0 0.0
    %871 = vmatpush1.msra.mxu0 0.0
    %872 = vmatprep.subr.mxu0 0.0
    %873 = vmatpush1.msra.mxu0 0.0
    %874 = vmatprep.subr.mxu0 0.0
    %875 = vmatpush1.msra.mxu0 0.0
    %876 = vmatprep.subr.mxu0 0.0
    %877 = vmatpush1.msra.mxu0 0.0
    %878 = vmatprep.subr.mxu0 0.0
    %879 = vmatpush1.msra.mxu0 0.0
    %880 = vmatprep.subr.mxu0 0.0
    %881 = vmatpush1.msra.mxu0 0.0
    %882 = vmatprep.subr.mxu0 0.0
    %883 = vmatpush1.msra.mxu0 0.0
    %884 = vmatprep.subr.mxu0 0.0
    %885 = vmatpush1.msra.mxu0 0.0
    %886 = vmatprep.subr.mxu0 0.0
    %887 = vmatpush1.msra.mxu0 0.0
    %888 = vmatprep.subr.mxu0 0.0
    %889 = vmatpush1.msra.mxu0 0.0
    %890 = vmatprep.subr.mxu0 0.0
    %891 = vmatpush1.msra.mxu0 0.0
    %892 = vmatprep.subr.mxu0 0.0
    %893 = vmatpush1.msra.mxu0 0.0
    %894 = vmatprep.subr.mxu0 0.0
    %895 = vmatpush1.msra.mxu0 0.0
    %896 = vmatprep.subr.mxu0 0.0
    %897 = vmatpush1.msra.mxu0 0.0
    %898 = vmatprep.subr.mxu0 0.0
    %899 = vmatpush1.msra.mxu0 0.0
    %900 = vmatprep.subr.mxu0 0.0
    %901 = vmatpush1.msra.mxu0 0.0
    %902 = vmatprep.subr.mxu0 0.0
    %903 = vmatpush1.msra.mxu0 0.0
    %904 = vmatprep.subr.mxu0 0.0
    %905 = vmatpush1.msra.mxu0 0.0
    %906 = vmatprep.subr.mxu0 0.0
    %907 = vmatpush1.msra.mxu0 0.0
    %908 = vmatprep.subr.mxu0 0.0
    %909 = vmatpush1.msra.mxu0 0.0
    %910 = vmatprep.subr.mxu0 0.0
    %911 = vmatpush1.msra.mxu0 0.0
    %912 = vmatprep.subr.mxu0 0.0
    %913 = vmatpush1.msra.mxu0 0.0
    %914 = vmatprep.subr.mxu0 0.0
    %915 = vmatpush1.msra.mxu0 0.0
    %916 = vmatprep.subr.mxu0 0.0
    %917 = vmatpush1.msra.mxu0 0.0
    %918 = vmatprep.mubr.f32.mxu0 0.0
    %919 = vmatmul.mubr.f32.gmra.mrb[0].mxu0 %v849
    %v920 = vpop.f32.mrb[0].mxu0
    %v921 = vadd.f32 %v841, %v920
    %v922 = vpop.f32.mrb[0].mxu0
    %923 = vmatprep.mubr.f32.mxu0 0.0
    %924 = vmatmul.mubr.f32.gmra.mrb[0].mxu0 %v852
    %v925 = vpop.f32.mrb[0].mxu0
    %v926 = vadd.f32 %v846, %v925
    %v927 = vpop.f32.mrb[0].mxu0
    %928 = vdwg.mxu0
    %v929 = vadd.f32 %v669, %v921
    %v930 = vadd.f32 %v670, %v926
    %s931 = scalar_lea.vmem %s9, 1
    %v932 = vld [vmem:[%s931] sm:$0x1]
    %s933 = scalar_lea.vmem %s10, 1
    %v934 = vld [vmem:[%s933] sm:$0x1]
    %v935 = vsel %vm164, %v929, 0.0
    %936 = vadd.xlane.f32.xlu0 %v935
    %v937 = vpop.xlane.xlu0 %936
    %v938 = vsel %vm164, %v930, 0.0
    %939 = vadd.xlane.f32.xlu0 %v938
    %v940 = vpop.xlane.xlu0 %939
    %v941 = vmul.f32 %v937, %v171
    %v942 = vmul.f32 %v940, %v171
    %v943 = vsub.f32 %v929, %v941
    %v944 = vsub.f32 %v930, %v942
    %v945 = vmul.f32 %v943, %v943
    %v946 = vmul.f32 %v944, %v944
    %v947 = vsel %vm164, %v945, 0.0
    %948 = vadd.xlane.f32.xlu0 %v947
    %v949 = vpop.xlane.xlu0 %948
    %v950 = vsel %vm164, %v946, 0.0
    %951 = vadd.xlane.f32.xlu0 %v950
    %v952 = vpop.xlane.xlu0 %951
    %v953 = vmul.f32 %v949, %v171
    %v954 = vmul.f32 %v952, %v171
    %v955 = vadd.f32 %v953, 1e-05
    %v956 = vadd.f32 %v954, 1e-05
    %v957 = vrsqrt.pop %v955
    %v958 = vrsqrt.pop %v956
    %v959 = vmul.f32 %v943, %v957
    %v960 = vmul.f32 %v944, %v958
    %v962 = vlaneseq
    %v963 = vshrl.u32 %v962, 7
    %v964 = vsub.s32 0, %v963
    %v965 = vrot.slane %v932, %v964
    %v967 = vmul.f32 %v959, %v965
    %v968 = vmul.f32 %v960, %v965
    %v970 = vlaneseq
    %v971 = vshrl.u32 %v970, 7
    %v972 = vsub.s32 0, %v971
    %v973 = vrot.slane %v934, %v972
    %v975 = vadd.f32 %v967, %v973
    %v976 = vadd.f32 %v968, %v973
    %s977 = scalar_lea.vmem %s11, 32
    %v978 = vld [vmem:[%s977] sm:$0xff]
    %v979 = vld [vmem:[%s977 + $0x8] sm:$0xff]
    %v980 = vld [vmem:[%s977 + $0x10] sm:$0xff]
    %v981 = vld [vmem:[%s977 + $0x18] sm:$0xff]
    %s982 = scalar_lea.vmem %s12, 1
    %v983 = vld [vmem:[%s982] sm:$0x1]
    %v985 = vlaneseq
    %v986 = vshrl.u32 %v985, 7
    %v987 = vsub.s32 0, %v986
    %v988 = vrot.slane %v983, %v987
    %v991 = vsel %vm164, %v975, 0
    %v994 = vsel %vm164, %v976, 0
    %996 = vmatprep.subr.mxu0 0.0
    %997 = vmatpush1.msra.mxu0 %v978
    %998 = vmatprep.subr.mxu0 0.0
    %999 = vmatpush1.msra.mxu0 %v979
    %1000 = vmatprep.subr.mxu0 0.0
    %1001 = vmatpush1.msra.mxu0 %v980
    %1002 = vmatprep.subr.mxu0 0.0
    %1003 = vmatpush1.msra.mxu0 %v981
    %1004 = vmatprep.subr.mxu0 0.0
    %1005 = vmatpush1.msra.mxu0 0.0
    %1006 = vmatprep.subr.mxu0 0.0
    %1007 = vmatpush1.msra.mxu0 0.0
    %1008 = vmatprep.subr.mxu0 0.0
    %1009 = vmatpush1.msra.mxu0 0.0
    %1010 = vmatprep.subr.mxu0 0.0
    %1011 = vmatpush1.msra.mxu0 0.0
    %1012 = vmatprep.subr.mxu0 0.0
    %1013 = vmatpush1.msra.mxu0 0.0
    %1014 = vmatprep.subr.mxu0 0.0
    %1015 = vmatpush1.msra.mxu0 0.0
    %1016 = vmatprep.subr.mxu0 0.0
    %1017 = vmatpush1.msra.mxu0 0.0
    %1018 = vmatprep.subr.mxu0 0.0
    %1019 = vmatpush1.msra.mxu0 0.0
    %1020 = vmatprep.subr.mxu0 0.0
    %1021 = vmatpush1.msra.mxu0 0.0
    %1022 = vmatprep.subr.mxu0 0.0
    %1023 = vmatpush1.msra.mxu0 0.0
    %1024 = vmatprep.subr.mxu0 0.0
    %1025 = vmatpush1.msra.mxu0 0.0
    %1026 = vmatprep.subr.mxu0 0.0
    %1027 = vmatpush1.msra.mxu0 0.0
    %1028 = vmatprep.subr.mxu0 0.0
    %1029 = vmatpush1.msra.mxu0 0.0
    %1030 = vmatprep.subr.mxu0 0.0
    %1031 = vmatpush1.msra.mxu0 0.0
    %1032 = vmatprep.subr.mxu0 0.0
    %1033 = vmatpush1.msra.mxu0 0.0
    %1034 = vmatprep.subr.mxu0 0.0
    %1035 = vmatpush1.msra.mxu0 0.0
    %1036 = vmatprep.subr.mxu0 0.0
    %1037 = vmatpush1.msra.mxu0 0.0
    %1038 = vmatprep.subr.mxu0 0.0
    %1039 = vmatpush1.msra.mxu0 0.0
    %1040 = vmatprep.subr.mxu0 0.0
    %1041 = vmatpush1.msra.mxu0 0.0
    %1042 = vmatprep.subr.mxu0 0.0
    %1043 = vmatpush1.msra.mxu0 0.0
    %1044 = vmatprep.subr.mxu0 0.0
    %1045 = vmatpush1.msra.mxu0 0.0
    %1046 = vmatprep.subr.mxu0 0.0
    %1047 = vmatpush1.msra.mxu0 0.0
    %1048 = vmatprep.subr.mxu0 0.0
    %1049 = vmatpush1.msra.mxu0 0.0
    %1050 = vmatprep.subr.mxu0 0.0
    %1051 = vmatpush1.msra.mxu0 0.0
    %1052 = vmatprep.subr.mxu0 0.0
    %1053 = vmatpush1.msra.mxu0 0.0
    %1054 = vmatprep.subr.mxu0 0.0
    %1055 = vmatpush1.msra.mxu0 0.0
    %1056 = vmatprep.subr.mxu0 0.0
    %1057 = vmatpush1.msra.mxu0 0.0
    %1058 = vmatprep.subr.mxu0 0.0
    %1059 = vmatpush1.msra.mxu0 0.0
    %1060 = vmatprep.mubr.f32.mxu0 0.0
    %1061 = vmatmul.mubr.f32.gmra.mrb[0].mxu0 %v991
    %v1062 = vpop.f32.mrb[0].mxu0
    %v1063 = vadd.f32 %v988, %v1062
    %v1064 = vpop.f32.mrb[0].mxu0
    %1065 = vmatprep.mubr.f32.mxu0 0.0
    %1066 = vmatmul.mubr.f32.gmra.mrb[0].mxu0 %v994
    %v1067 = vpop.f32.mrb[0].mxu0
    %v1068 = vadd.f32 %v988, %v1067
    %v1069 = vpop.f32.mrb[0].mxu0
    %1070 = vdwg.mxu0
    %v1071 = vmul.f32 %v1063, %v1063
    %v1072 = vmul.f32 %v1068, %v1068
    %v1073 = vmul.f32 %v1063, %v1071
    %v1074 = vmul.f32 %v1068, %v1072
    %v1075 = vmul.f32 %v1073, 0.044715
    %v1076 = vmul.f32 %v1074, 0.044715
    %v1077 = vadd.f32 %v1063, %v1075
    %v1078 = vadd.f32 %v1068, %v1076
    %v1079 = vmul.f32 %v1077, 0.7978846
    %v1080 = vmul.f32 %v1078, 0.7978846
    %v1081 = vtanh.pop %v1079
    %v1082 = vtanh.pop %v1080
    %v1083 = vadd.f32 %v1081, 1.0
    %v1084 = vadd.f32 %v1082, 1.0
    %v1085 = vmul.f32 %v1083, 0.5
    %v1086 = vmul.f32 %v1084, 0.5
    %v1087 = vmul.f32 %v1063, %v1085
    %v1088 = vmul.f32 %v1068, %v1086
    %s1089 = scalar_lea.vmem %s13, 64
    %v1090 = vld [vmem:[%s1089] sm:$0xff]
    %v1091 = vld [vmem:[%s1089 + $0x8] sm:$0xff]
    %v1092 = vld [vmem:[%s1089 + $0x10] sm:$0xff]
    %v1093 = vld [vmem:[%s1089 + $0x18] sm:$0xff]
    %v1094 = vld [vmem:[%s1089 + $0x20] sm:$0xff]
    %v1095 = vld [vmem:[%s1089 + $0x28] sm:$0xff]
    %v1096 = vld [vmem:[%s1089 + $0x30] sm:$0xff]
    %v1097 = vld [vmem:[%s1089 + $0x38] sm:$0xff]
    %s1098 = scalar_lea.vmem %s14, 1
    %v1099 = vld [vmem:[%s1098] sm:$0x1]
    %v1101 = vlaneseq
    %v1102 = vshrl.u32 %v1101, 7
    %v1103 = vsub.s32 0, %v1102
    %v1104 = vrot.slane %v1099, %v1103
    %v1107 = vsel %vm80, %v1087, 0
    %v1110 = vsel %vm80, %v1088, 0
    %1112 = vmatprep.subr.mxu0 0.0
    %1113 = vmatpush1.msra.mxu0 %v1090
    %1114 = vmatprep.subr.mxu0 0.0
    %1115 = vmatpush1.msra.mxu0 %v1091
    %1116 = vmatprep.subr.mxu0 0.0
    %1117 = vmatpush1.msra.mxu0 %v1092
    %1118 = vmatprep.subr.mxu0 0.0
    %1119 = vmatpush1.msra.mxu0 %v1093
    %1120 = vmatprep.subr.mxu0 0.0
    %1121 = vmatpush1.msra.mxu0 %v1094
    %1122 = vmatprep.subr.mxu0 0.0
    %1123 = vmatpush1.msra.mxu0 %v1095
    %1124 = vmatprep.subr.mxu0 0.0
    %1125 = vmatpush1.msra.mxu0 %v1096
    %1126 = vmatprep.subr.mxu0 0.0
    %1127 = vmatpush1.msra.mxu0 %v1097
    %1128 = vmatprep.subr.mxu0 0.0
    %1129 = vmatpush1.msra.mxu0 0.0
    %1130 = vmatprep.subr.mxu0 0.0
    %1131 = vmatpush1.msra.mxu0 0.0
    %1132 = vmatprep.subr.mxu0 0.0
    %1133 = vmatpush1.msra.mxu0 0.0
    %1134 = vmatprep.subr.mxu0 0.0
    %1135 = vmatpush1.msra.mxu0 0.0
    %1136 = vmatprep.subr.mxu0 0.0
    %1137 = vmatpush1.msra.mxu0 0.0
    %1138 = vmatprep.subr.mxu0 0.0
    %1139 = vmatpush1.msra.mxu0 0.0
    %1140 = vmatprep.subr.mxu0 0.0
    %1141 = vmatpush1.msra.mxu0 0.0
    %1142 = vmatprep.subr.mxu0 0.0
    %1143 = vmatpush1.msra.mxu0 0.0
    %1144 = vmatprep.subr.mxu0 0.0
    %1145 = vmatpush1.msra.mxu0 0.0
    %1146 = vmatprep.subr.mxu0 0.0
    %1147 = vmatpush1.msra.mxu0 0.0
    %1148 = vmatprep.subr.mxu0 0.0
    %1149 = vmatpush1.msra.mxu0 0.0
    %1150 = vmatprep.subr.mxu0 0.0
    %1151 = vmatpush1.msra.mxu0 0.0
    %1152 = vmatprep.subr.mxu0 0.0
    %1153 = vmatpush1.msra.mxu0 0.0
    %1154 = vmatprep.subr.mxu0 0.0
    %1155 = vmatpush1.msra.mxu0 0.0
    %1156 = vmatprep.subr.mxu0 0.0
    %1157 = vmatpush1.msra.mxu0 0.0
    %1158 = vmatprep.subr.mxu0 0.0
    %1159 = vmatpush1.msra.mxu0 0.0
    %1160 = vmatprep.subr.mxu0 0.0
    %1161 = vmatpush1.msra.mxu0 0.0
    %1162 = vmatprep.subr.mxu0 0.0
    %1163 = vmatpush1.msra.mxu0 0.0
    %1164 = vmatprep.subr.mxu0 0.0
    %1165 = vmatpush1.msra.mxu0 0.0
    %1166 = vmatprep.subr.mxu0 0.0
    %1167 = vmatpush1.msra.mxu0 0.0
    %1168 = vmatprep.subr.mxu0 0.0
    %1169 = vmatpush1.msra.mxu0 0.0
    %1170 = vmatprep.subr.mxu0 0.0
    %1171 = vmatpush1.msra.mxu0 0.0
    %1172 = vmatprep.subr.mxu0 0.0
    %1173 = vmatpush1.msra.mxu0 0.0
    %1174 = vmatprep.subr.mxu0 0.0
    %1175 = vmatpush1.msra.mxu0 0.0
    %1176 = vmatprep.mubr.f32.mxu0 0.0
    %1177 = vmatmul.mubr.f32.gmra.mrb[0].mxu0 %v1107
    %v1178 = vpop.f32.mrb[0].mxu0
    %v1179 = vadd.f32 %v1104, %v1178
    %v1180 = vpop.f32.mrb[0].mxu0
    %1181 = vmatprep.mubr.f32.mxu0 0.0
    %1182 = vmatmul.mubr.f32.gmra.mrb[0].mxu0 %v1110
    %v1183 = vpop.f32.mrb[0].mxu0
    %v1184 = vadd.f32 %v1104, %v1183
    %v1185 = vpop.f32.mrb[0].mxu0
    %1186 = vdwg.mxu0
    %v1187 = vadd.f32 %v929, %v1179
    %v1188 = vadd.f32 %v930, %v1184
    %v1189 = vld [vmem:[%s15] sm:$0x1]
    %v1190 = vld [vmem:[%s16] sm:$0x1]
    %v1191 = vsel %vm164, %v1187, 0.0
    %1192 = vadd.xlane.f32.xlu0 %v1191
    %v1193 = vpop.xlane.xlu0 %1192
    %v1194 = vsel %vm164, %v1188, 0.0
    %1195 = vadd.xlane.f32.xlu0 %v1194
    %v1196 = vpop.xlane.xlu0 %1195
    %v1197 = vmul.f32 %v1193, %v171
    %v1198 = vmul.f32 %v1196, %v171
    %v1199 = vsub.f32 %v1187, %v1197
    %v1200 = vsub.f32 %v1188, %v1198
    %v1201 = vmul.f32 %v1199, %v1199
    %v1202 = vmul.f32 %v1200, %v1200
    %v1203 = vsel %vm164, %v1201, 0.0
    %1204 = vadd.xlane.f32.xlu0 %v1203
    %v1205 = vpop.xlane.xlu0 %1204
    %v1206 = vsel %vm164, %v1202, 0.0
    %1207 = vadd.xlane.f32.xlu0 %v1206
    %v1208 = vpop.xlane.xlu0 %1207
    %v1209 = vmul.f32 %v1205, %v171
    %v1210 = vmul.f32 %v1208, %v171
    %v1211 = vadd.f32 %v1209, 1e-05
    %v1212 = vadd.f32 %v1210, 1e-05
    %v1213 = vrsqrt.pop %v1211
    %v1214 = vrsqrt.pop %v1212
    %v1215 = vmul.f32 %v1199, %v1213
    %v1216 = vmul.f32 %v1200, %v1214
    %v1218 = vlaneseq
    %v1219 = vshrl.u32 %v1218, 7
    %v1220 = vsub.s32 0, %v1219
    %v1221 = vrot.slane %v1189, %v1220
    %v1223 = vmul.f32 %v1215, %v1221
    %v1224 = vmul.f32 %v1216, %v1221
    %v1226 = vlaneseq
    %v1227 = vshrl.u32 %v1226, 7
    %v1228 = vsub.s32 0, %v1227
    %v1229 = vrot.slane %v1190, %v1228
    %v1231 = vadd.f32 %v1223, %v1229
    %v1232 = vadd.f32 %v1224, %v1229
    %v1233 = vsel %vm164, %v1231, 0.0
    %v1234 = vsel %vm164, %v1232, 0.0
    %v1235 = vadd.f32 %v1233, %v1234
    %v1236 = vrot.slane %v1235, 4
    %v1237 = vadd.f32 %v1235, %v1236
    %v1238 = vrot.slane %v1237, 2
    %v1239 = vadd.f32 %v1237, %v1238
    %v1240 = vrot.slane %v1239, 1
    %v1241 = vadd.f32 %v1239, %v1240
    %v1242 = vrcp.pop 16.0
    %v1243 = vmul.f32 %v1241, %v1242
    %v1244 = vld [vmem:[%s17] sm:$0xff]
    %v1245 = vld [vmem:[%s17 + $0x8] sm:$0xff]
    %v1246 = vld [vmem:[%s17 + $0x10] sm:$0xff]
    %v1247 = vld [vmem:[%s17 + $0x18] sm:$0xff]
    %v1248 = vld [vmem:[%s18] sm:$0x1]
    %v1250 = vsel %vm164, %v1243, 0
    %1252 = vmatprep.subr.mxu0 0.0
    %1253 = vmatpush1.msra.mxu0 %v1244
    %1254 = vmatprep.subr.mxu0 0.0
    %1255 = vmatpush1.msra.mxu0 %v1245
    %1256 = vmatprep.subr.mxu0 0.0
    %1257 = vmatpush1.msra.mxu0 %v1246
    %1258 = vmatprep.subr.mxu0 0.0
    %1259 = vmatpush1.msra.mxu0 %v1247
    %1260 = vmatprep.subr.mxu0 0.0
    %1261 = vmatpush1.msra.mxu0 0.0
    %1262 = vmatprep.subr.mxu0 0.0
    %1263 = vmatpush1.msra.mxu0 0.0
    %1264 = vmatprep.subr.mxu0 0.0
    %1265 = vmatpush1.msra.mxu0 0.0
    %1266 = vmatprep.subr.mxu0 0.0
    %1267 = vmatpush1.msra.mxu0 0.0
    %1268 = vmatprep.subr.mxu0 0.0
    %1269 = vmatpush1.msra.mxu0 0.0
    %1270 = vmatprep.subr.mxu0 0.0
    %1271 = vmatpush1.msra.mxu0 0.0
    %1272 = vmatprep.subr.mxu0 0.0
    %1273 = vmatpush1.msra.mxu0 0.0
    %1274 = vmatprep.subr.mxu0 0.0
    %1275 = vmatpush1.msra.mxu0 0.0
    %1276 = vmatprep.subr.mxu0 0.0
    %1277 = vmatpush1.msra.mxu0 0.0
    %1278 = vmatprep.subr.mxu0 0.0
    %1279 = vmatpush1.msra.mxu0 0.0
    %1280 = vmatprep.subr.mxu0 0.0
    %1281 = vmatpush1.msra.mxu0 0.0
    %1282 = vmatprep.subr.mxu0 0.0
    %1283 = vmatpush1.msra.mxu0 0.0
    %1284 = vmatprep.subr.mxu0 0.0
    %1285 = vmatpush1.msra.mxu0 0.0
    %1286 = vmatprep.subr.mxu0 0.0
    %1287 = vmatpush1.msra.mxu0 0.0
    %1288 = vmatprep.subr.mxu0 0.0
    %1289 = vmatpush1.msra.mxu0 0.0
    %1290 = vmatprep.subr.mxu0 0.0
    %1291 = vmatpush1.msra.mxu0 0.0
    %1292 = vmatprep.subr.mxu0 0.0
    %1293 = vmatpush1.msra.mxu0 0.0
    %1294 = vmatprep.subr.mxu0 0.0
    %1295 = vmatpush1.msra.mxu0 0.0
    %1296 = vmatprep.subr.mxu0 0.0
    %1297 = vmatpush1.msra.mxu0 0.0
    %1298 = vmatprep.subr.mxu0 0.0
    %1299 = vmatpush1.msra.mxu0 0.0
    %1300 = vmatprep.subr.mxu0 0.0
    %1301 = vmatpush1.msra.mxu0 0.0
    %1302 = vmatprep.subr.mxu0 0.0
    %1303 = vmatpush1.msra.mxu0 0.0
    %1304 = vmatprep.subr.mxu0 0.0
    %1305 = vmatpush1.msra.mxu0 0.0
    %1306 = vmatprep.subr.mxu0 0.0
    %1307 = vmatpush1.msra.mxu0 0.0
    %1308 = vmatprep.subr.mxu0 0.0
    %1309 = vmatpush1.msra.mxu0 0.0
    %1310 = vmatprep.subr.mxu0 0.0
    %1311 = vmatpush1.msra.mxu0 0.0
    %1312 = vmatprep.subr.mxu0 0.0
    %1313 = vmatpush1.msra.mxu0 0.0
    %1314 = vmatprep.subr.mxu0 0.0
    %1315 = vmatpush1.msra.mxu0 0.0
    %1316 = vmatprep.mubr.f32.mxu0 0.0
    %1317 = vmatmul.mubr.f32.gmra.mrb[0].mxu0 %v1250
    %v1318 = vpop.f32.mrb[0].mxu0
    %v1319 = vadd.f32 %v1248, %v1318
    %v1320 = vpop.f32.mrb[0].mxu0
    %1321 = vdwg.mxu0
    %1322 = vst [vmem:[#allocation2] sm:$0x1] %v1319
    %s1323 = scalar_lea.vmem %s0, 16
    %v1324 = vld [vmem:[%s1323] sm:$0xff]
    %v1325 = vld [vmem:[%s1323 + $0x8] sm:$0xff]
    %v1326 = vld [vmem:[%s1] sm:$0xff]
    %v1327 = vld [vmem:[%s1 + $0x8] sm:$0xff]
    %v1328 = vld [vmem:[%s1 + $0x10] sm:$0xff]
    %v1329 = vld [vmem:[%s1 + $0x18] sm:$0xff]
    %v1330 = vld [vmem:[%s1 + $0x20] sm:$0xff]
    %v1331 = vld [vmem:[%s1 + $0x28] sm:$0xff]
    %v1332 = vld [vmem:[%s1 + $0x30] sm:$0xff]
    %v1333 = vld [vmem:[%s1 + $0x38] sm:$0xff]
    %v1334 = vld [vmem:[%s2] sm:$0x1]
    %v1336 = vlaneseq
    %v1337 = vshrl.u32 %v1336, 7
    %v1338 = vsub.s32 0, %v1337
    %v1339 = vrot.slane %v1334, %v1338
    %v1342 = vsel %vm80, %v1324, 0
    %v1345 = vsel %vm80, %v1325, 0
    %1347 = vmatprep.subr.mxu0 0.0
    %1348 = vmatpush1.msra.mxu0 %v1326
    %1349 = vmatprep.subr.mxu0 0.0
    %1350 = vmatpush1.msra.mxu0 %v1327
    %1351 = vmatprep.subr.mxu0 0.0
    %1352 = vmatpush1.msra.mxu0 %v1328
    %1353 = vmatprep.subr.mxu0 0.0
    %1354 = vmatpush1.msra.mxu0 %v1329
    %1355 = vmatprep.subr.mxu0 0.0
    %1356 = vmatpush1.msra.mxu0 %v1330
    %1357 = vmatprep.subr.mxu0 0.0
    %1358 = vmatpush1.msra.mxu0 %v1331
    %1359 = vmatprep.subr.mxu0 0.0
    %1360 = vmatpush1.msra.mxu0 %v1332
    %1361 = vmatprep.subr.mxu0 0.0
    %1362 = vmatpush1.msra.mxu0 %v1333
    %1363 = vmatprep.subr.mxu0 0.0
    %1364 = vmatpush1.msra.mxu0 0.0
    %1365 = vmatprep.subr.mxu0 0.0
    %1366 = vmatpush1.msra.mxu0 0.0
    %1367 = vmatprep.subr.mxu0 0.0
    %1368 = vmatpush1.msra.mxu0 0.0
    %1369 = vmatprep.subr.mxu0 0.0
    %1370 = vmatpush1.msra.mxu0 0.0
    %1371 = vmatprep.subr.mxu0 0.0
    %1372 = vmatpush1.msra.mxu0 0.0
    %1373 = vmatprep.subr.mxu0 0.0
    %1374 = vmatpush1.msra.mxu0 0.0
    %1375 = vmatprep.subr.mxu0 0.0
    %1376 = vmatpush1.msra.mxu0 0.0
    %1377 = vmatprep.subr.mxu0 0.0
    %1378 = vmatpush1.msra.mxu0 0.0
    %1379 = vmatprep.subr.mxu0 0.0
    %1380 = vmatpush1.msra.mxu0 0.0
    %1381 = vmatprep.subr.mxu0 0.0
    %1382 = vmatpush1.msra.mxu0 0.0
    %1383 = vmatprep.subr.mxu0 0.0
    %1384 = vmatpush1.msra.mxu0 0.0
    %1385 = vmatprep.subr.mxu0 0.0
    %1386 = vmatpush1.msra.mxu0 0.0
    %1387 = vmatprep.subr.mxu0 0.0
    %1388 = vmatpush1.msra.mxu0 0.0
    %1389 = vmatprep.subr.mxu0 0.0
    %1390 = vmatpush1.msra.mxu0 0.0
    %1391 = vmatprep.subr.mxu0 0.0
    %1392 = vmatpush1.msra.mxu0 0.0
    %1393 = vmatprep.subr.mxu0 0.0
    %1394 = vmatpush1.msra.mxu0 0.0
    %1395 = vmatprep.subr.mxu0 0.0
    %1396 = vmatpush1.msra.mxu0 0.0
    %1397 = vmatprep.subr.mxu0 0.0
    %1398 = vmatpush1.msra.mxu0 0.0
    %1399 = vmatprep.subr.mxu0 0.0
    %1400 = vmatpush1.msra.mxu0 0.0
    %1401 = vmatprep.subr.mxu0 0.0
    %1402 = vmatpush1.msra.mxu0 0.0
    %1403 = vmatprep.subr.mxu0 0.0
    %1404 = vmatpush1.msra.mxu0 0.0
    %1405 = vmatprep.subr.mxu0 0.0
    %1406 = vmatpush1.msra.mxu0 0.0
    %1407 = vmatprep.subr.mxu0 0.0
    %1408 = vmatpush1.msra.mxu0 0.0
    %1409 = vmatprep.subr.mxu0 0.0
    %1410 = vmatpush1.msra.mxu0 0.0
    %1411 = vmatprep.mubr.f32.mxu0 0.0
    %1412 = vmatmul.mubr.f32.gmra.mrb[0].mxu0 %v1342
    %v1413 = vpop.f32.mrb[0].mxu0
    %v1414 = vadd.f32 %v1339, %v1413
    %v1415 = vpop.f32.mrb[0].mxu0
    %1416 = vmatprep.mubr.f32.mxu0 0.0
    %1417 = vmatmul.mubr.f32.gmra.mrb[0].mxu0 %v1345
    %v1418 = vpop.f32.mrb[0].mxu0
    %v1419 = vadd.f32 %v1339, %v1418
    %v1420 = vpop.f32.mrb[0].mxu0
    %1421 = vdwg.mxu0
    %v1422 = vld [vmem:[%s3] sm:$0x1]
    %v1423 = vld [vmem:[%s4] sm:$0x1]
    %v1424 = vsel %vm164, %v1414, 0.0
    %1425 = vadd.xlane.f32.xlu0 %v1424
    %v1426 = vpop.xlane.xlu0 %1425
    %v1427 = vsel %vm164, %v1419, 0.0
    %1428 = vadd.xlane.f32.xlu0 %v1427
    %v1429 = vpop.xlane.xlu0 %1428
    %v1430 = vmul.f32 %v1426, %v171
    %v1431 = vmul.f32 %v1429, %v171
    %v1432 = vsub.f32 %v1414, %v1430
    %v1433 = vsub.f32 %v1419, %v1431
    %v1434 = vmul.f32 %v1432, %v1432
    %v1435 = vmul.f32 %v1433, %v1433
    %v1436 = vsel %vm164, %v1434, 0.0
    %1437 = vadd.xlane.f32.xlu0 %v1436
    %v1438 = vpop.xlane.xlu0 %1437
    %v1439 = vsel %vm164, %v1435, 0.0
    %1440 = vadd.xlane.f32.xlu0 %v1439
    %v1441 = vpop.xlane.xlu0 %1440
    %v1442 = vmul.f32 %v1438, %v171
    %v1443 = vmul.f32 %v1441, %v171
    %v1444 = vadd.f32 %v1442, 1e-05
    %v1445 = vadd.f32 %v1443, 1e-05
    %v1446 = vrsqrt.pop %v1444
    %v1447 = vrsqrt.pop %v1445
    %v1448 = vmul.f32 %v1432, %v1446
    %v1449 = vmul.f32 %v1433, %v1447
    %v1451 = vlaneseq
    %v1452 = vshrl.u32 %v1451, 7
    %v1453 = vsub.s32 0, %v1452
    %v1454 = vrot.slane %v1422, %v1453
    %v1456 = vmul.f32 %v1448, %v1454
    %v1457 = vmul.f32 %v1449, %v1454
    %v1459 = vlaneseq
    %v1460 = vshrl.u32 %v1459, 7
    %v1461 = vsub.s32 0, %v1460
    %v1462 = vrot.slane %v1423, %v1461
    %v1464 = vadd.f32 %v1456, %v1462
    %v1465 = vadd.f32 %v1457, %v1462
    %v1466 = vld [vmem:[%s5] sm:$0xff]
    %v1467 = vld [vmem:[%s5 + $0x8] sm:$0xff]
    %v1468 = vld [vmem:[%s6] sm:$0xff]
    %v1469 = vld [vmem:[%s6 + $0x8] sm:$0xff]
    %1471 = vset.pattern.permute.xlu0 0
    %1472 = vperm.xlu0 %1471, %v1468
    %v1473 = vpop.permute.xlu0 %1472
    %1476 = vset.pattern.permute.xlu0 0
    %1477 = vperm.xlu0 %1476, %v1469
    %v1478 = vpop.permute.xlu0 %1477
    %v1481 = vsel %vm222, %v1466, 0
    %v1484 = vsel %vm222, %v1467, 0
    %1486 = vmatprep.subr.mxu0 0.0
    %1487 = vmatpush1.msra.mxu0 %v1464
    %1488 = vmatprep.subr.mxu0 0.0
    %1489 = vmatpush1.msra.mxu0 %v1465
    %1490 = vmatprep.subr.mxu0 0.0
    %1491 = vmatpush1.msra.mxu0 0.0
    %1492 = vmatprep.subr.mxu0 0.0
    %1493 = vmatpush1.msra.mxu0 0.0
    %1494 = vmatprep.subr.mxu0 0.0
    %1495 = vmatpush1.msra.mxu0 0.0
    %1496 = vmatprep.subr.mxu0 0.0
    %1497 = vmatpush1.msra.mxu0 0.0
    %1498 = vmatprep.subr.mxu0 0.0
    %1499 = vmatpush1.msra.mxu0 0.0
    %1500 = vmatprep.subr.mxu0 0.0
    %1501 = vmatpush1.msra.mxu0 0.0
    %1502 = vmatprep.subr.mxu0 0.0
    %1503 = vmatpush1.msra.mxu0 0.0
    %1504 = vmatprep.subr.mxu0 0.0
    %1505 = vmatpush1.msra.mxu0 0.0
    %1506 = vmatprep.subr.mxu0 0.0
    %1507 = vmatpush1.msra.mxu0 0.0
    %1508 = vmatprep.subr.mxu0 0.0
    %1509 = vmatpush1.msra.mxu0 0.0
    %1510 = vmatprep.subr.mxu0 0.0
    %1511 = vmatpush1.msra.mxu0 0.0
    %1512 = vmatprep.subr.mxu0 0.0
    %1513 = vmatpush1.msra.mxu0 0.0
    %1514 = vmatprep.subr.mxu0 0.0
    %1515 = vmatpush1.msra.mxu0 0.0
    %1516 = vmatprep.subr.mxu0 0.0
    %1517 = vmatpush1.msra.mxu0 0.0
    %1518 = vmatprep.subr.mxu0 0.0
    %1519 = vmatpush1.msra.mxu0 0.0
    %1520 = vmatprep.subr.mxu0 0.0
    %1521 = vmatpush1.msra.mxu0 0.0
    %1522 = vmatprep.subr.mxu0 0.0
    %1523 = vmatpush1.msra.mxu0 0.0
    %1524 = vmatprep.subr.mxu0 0.0
    %1525 = vmatpush1.msra.mxu0 0.0
    %1526 = vmatprep.subr.mxu0 0.0
    %1527 = vmatpush1.msra.mxu0 0.0
    %1528 = vmatprep.subr.mxu0 0.0
    %1529 = vmatpush1.msra.mxu0 0.0
    %1530 = vmatprep.subr.mxu0 0.0
    %1531 = vmatpush1.msra.mxu0 0.0
    %1532 = vmatprep.subr.mxu0 0.0
    %1533 = vmatpush1.msra.mxu0 0.0
    %1534 = vmatprep.subr.mxu0 0.0
    %1535 = vmatpush1.msra.mxu0 0.0
    %1536 = vmatprep.subr.mxu0 0.0
    %1537 = vmatpush1.msra.mxu0 0.0
    %1538 = vmatprep.subr.mxu0 0.0
    %1539 = vmatpush1.msra.mxu0 0.0
    %1540 = vmatprep.subr.mxu0 0.0
    %1541 = vmatpush1.msra.mxu0 0.0
    %1542 = vmatprep.subr.mxu0 0.0
    %1543 = vmatpush1.msra.mxu0 0.0
    %1544 = vmatprep.subr.mxu0 0.0
    %1545 = vmatpush1.msra.mxu0 0.0
    %1546 = vmatprep.subr.mxu0 0.0
    %1547 = vmatpush1.msra.mxu0 0.0
    %1548 = vmatprep.subr.mxu0 0.0
    %1549 = vmatpush1.msra.mxu0 0.0
    %1550 = vmatprep.mubr.f32.mxu0 0.0
    %1551 = vmatmul.mubr.f32.gmra.mrb[0].mxu0 %v1481
    %v1552 = vpop.f32.mrb[0].mxu0
    %v1553 = vadd.f32 %v1473, %v1552
    %v1554 = vpop.f32.mrb[0].mxu0
    %1555 = vmatprep.mubr.f32.mxu0 0.0
    %1556 = vmatmul.mubr.f32.gmra.mrb[0].mxu0 %v1484
    %v1557 = vpop.f32.mrb[0].mxu0
    %v1558 = vadd.f32 %v1478, %v1557
    %v1559 = vpop.f32.mrb[0].mxu0
    %1560 = vdwg.mxu0
    %v1561 = vmul.f32 %v1553, %v1553
    %v1562 = vmul.f32 %v1558, %v1558
    %v1563 = vmul.f32 %v1553, %v1561
    %v1564 = vmul.f32 %v1558, %v1562
    %v1565 = vmul.f32 %v1563, 0.044715
    %v1566 = vmul.f32 %v1564, 0.044715
    %v1567 = vadd.f32 %v1553, %v1565
    %v1568 = vadd.f32 %v1558, %v1566
    %v1569 = vmul.f32 %v1567, 0.7978846
    %v1570 = vmul.f32 %v1568, 0.7978846
    %v1571 = vtanh.pop %v1569
    %v1572 = vtanh.pop %v1570
    %v1573 = vadd.f32 %v1571, 1.0
    %v1574 = vadd.f32 %v1572, 1.0
    %v1575 = vmul.f32 %v1573, 0.5
    %v1576 = vmul.f32 %v1574, 0.5
    %v1577 = vmul.f32 %v1553, %v1575
    %v1578 = vmul.f32 %v1558, %v1576
    %v1579 = vld [vmem:[%s7] sm:$0xff]
    %v1580 = vld [vmem:[%s7 + $0x8] sm:$0xff]
    %v1581 = vld [vmem:[%s8] sm:$0xff]
    %v1582 = vld [vmem:[%s8 + $0x8] sm:$0xff]
    %1584 = vset.pattern.permute.xlu0 0
    %1585 = vperm.xlu0 %1584, %v1581
    %v1586 = vpop.permute.xlu0 %1585
    %1589 = vset.pattern.permute.xlu0 0
    %1590 = vperm.xlu0 %1589, %v1582
    %v1591 = vpop.permute.xlu0 %1590
    %v1594 = vsel %vm222, %v1579, 0
    %v1597 = vsel %vm222, %v1580, 0
    %1599 = vmatprep.subr.mxu0 0.0
    %1600 = vmatpush1.msra.mxu0 %v1577
    %1601 = vmatprep.subr.mxu0 0.0
    %1602 = vmatpush1.msra.mxu0 %v1578
    %1603 = vmatprep.subr.mxu0 0.0
    %1604 = vmatpush1.msra.mxu0 0.0
    %1605 = vmatprep.subr.mxu0 0.0
    %1606 = vmatpush1.msra.mxu0 0.0
    %1607 = vmatprep.subr.mxu0 0.0
    %1608 = vmatpush1.msra.mxu0 0.0
    %1609 = vmatprep.subr.mxu0 0.0
    %1610 = vmatpush1.msra.mxu0 0.0
    %1611 = vmatprep.subr.mxu0 0.0
    %1612 = vmatpush1.msra.mxu0 0.0
    %1613 = vmatprep.subr.mxu0 0.0
    %1614 = vmatpush1.msra.mxu0 0.0
    %1615 = vmatprep.subr.mxu0 0.0
    %1616 = vmatpush1.msra.mxu0 0.0
    %1617 = vmatprep.subr.mxu0 0.0
    %1618 = vmatpush1.msra.mxu0 0.0
    %1619 = vmatprep.subr.mxu0 0.0
    %1620 = vmatpush1.msra.mxu0 0.0
    %1621 = vmatprep.subr.mxu0 0.0
    %1622 = vmatpush1.msra.mxu0 0.0
    %1623 = vmatprep.subr.mxu0 0.0
    %1624 = vmatpush1.msra.mxu0 0.0
    %1625 = vmatprep.subr.mxu0 0.0
    %1626 = vmatpush1.msra.mxu0 0.0
    %1627 = vmatprep.subr.mxu0 0.0
    %1628 = vmatpush1.msra.mxu0 0.0
    %1629 = vmatprep.subr.mxu0 0.0
    %1630 = vmatpush1.msra.mxu0 0.0
    %1631 = vmatprep.subr.mxu0 0.0
    %1632 = vmatpush1.msra.mxu0 0.0
    %1633 = vmatprep.subr.mxu0 0.0
    %1634 = vmatpush1.msra.mxu0 0.0
    %1635 = vmatprep.subr.mxu0 0.0
    %1636 = vmatpush1.msra.mxu0 0.0
    %1637 = vmatprep.subr.mxu0 0.0
    %1638 = vmatpush1.msra.mxu0 0.0
    %1639 = vmatprep.subr.mxu0 0.0
    %1640 = vmatpush1.msra.mxu0 0.0
    %1641 = vmatprep.subr.mxu0 0.0
    %1642 = vmatpush1.msra.mxu0 0.0
    %1643 = vmatprep.subr.mxu0 0.0
    %1644 = vmatpush1.msra.mxu0 0.0
    %1645 = vmatprep.subr.mxu0 0.0
    %1646 = vmatpush1.msra.mxu0 0.0
    %1647 = vmatprep.subr.mxu0 0.0
    %1648 = vmatpush1.msra.mxu0 0.0
    %1649 = vmatprep.subr.mxu0 0.0
    %1650 = vmatpush1.msra.mxu0 0.0
    %1651 = vmatprep.subr.mxu0 0.0
    %1652 = vmatpush1.msra.mxu0 0.0
    %1653 = vmatprep.subr.mxu0 0.0
    %1654 = vmatpush1.msra.mxu0 0.0
    %1655 = vmatprep.subr.mxu0 0.0
    %1656 = vmatpush1.msra.mxu0 0.0
    %1657 = vmatprep.subr.mxu0 0.0
    %1658 = vmatpush1.msra.mxu0 0.0
    %1659 = vmatprep.subr.mxu0 0.0
    %1660 = vmatpush1.msra.mxu0 0.0
    %1661 = vmatprep.subr.mxu0 0.0
    %1662 = vmatpush1.msra.mxu0 0.0
    %1663 = vmatprep.mubr.f32.mxu0 0.0
    %1664 = vmatmul.mubr.f32.gmra.mrb[0].mxu0 %v1594
    %v1665 = vpop.f32.mrb[0].mxu0
    %v1666 = vadd.f32 %v1586, %v1665
    %v1667 = vpop.f32.mrb[0].mxu0
    %1668 = vmatprep.mubr.f32.mxu0 0.0
    %1669 = vmatmul.mubr.f32.gmra.mrb[0].mxu0 %v1597
    %v1670 = vpop.f32.mrb[0].mxu0
    %v1671 = vadd.f32 %v1591, %v1670
    %v1672 = vpop.f32.mrb[0].mxu0
    %1673 = vdwg.mxu0
    %v1674 = vadd.f32 %v1414, %v1666
    %v1675 = vadd.f32 %v1419, %v1671
    %v1676 = vld [vmem:[%s9] sm:$0x1]
    %v1677 = vld [vmem:[%s10] sm:$0x1]
    %v1678 = vsel %vm164, %v1674, 0.0
    %1679 = vadd.xlane.f32.xlu0 %v1678
    %v1680 = vpop.xlane.xlu0 %1679
    %v1681 = vsel %vm164, %v1675, 0.0
    %1682 = vadd.xlane.f32.xlu0 %v1681
    %v1683 = vpop.xlane.xlu0 %1682
    %v1684 = vmul.f32 %v1680, %v171
    %v1685 = vmul.f32 %v1683, %v171
    %v1686 = vsub.f32 %v1674, %v1684
    %v1687 = vsub.f32 %v1675, %v1685
    %v1688 = vmul.f32 %v1686, %v1686
    %v1689 = vmul.f32 %v1687, %v1687
    %v1690 = vsel %vm164, %v1688, 0.0
    %1691 = vadd.xlane.f32.xlu0 %v1690
    %v1692 = vpop.xlane.xlu0 %1691
    %v1693 = vsel %vm164, %v1689, 0.0
    %1694 = vadd.xlane.f32.xlu0 %v1693
    %v1695 = vpop.xlane.xlu0 %1694
    %v1696 = vmul.f32 %v1692, %v171
    %v1697 = vmul.f32 %v1695, %v171
    %v1698 = vadd.f32 %v1696, 1e-05
    %v1699 = vadd.f32 %v1697, 1e-05
    %v1700 = vrsqrt.pop %v1698
    %v1701 = vrsqrt.pop %v1699
    %v1702 = vmul.f32 %v1686, %v1700
    %v1703 = vmul.f32 %v1687, %v1701
    %v1705 = vlaneseq
    %v1706 = vshrl.u32 %v1705, 7
    %v1707 = vsub.s32 0, %v1706
    %v1708 = vrot.slane %v1676, %v1707
    %v1710 = vmul.f32 %v1702, %v1708
    %v1711 = vmul.f32 %v1703, %v1708
    %v1713 = vlaneseq
    %v1714 = vshrl.u32 %v1713, 7
    %v1715 = vsub.s32 0, %v1714
    %v1716 = vrot.slane %v1677, %v1715
    %v1718 = vadd.f32 %v1710, %v1716
    %v1719 = vadd.f32 %v1711, %v1716
    %v1720 = vld [vmem:[%s11] sm:$0xff]
    %v1721 = vld [vmem:[%s11 + $0x8] sm:$0xff]
    %v1722 = vld [vmem:[%s11 + $0x10] sm:$0xff]
    %v1723 = vld [vmem:[%s11 + $0x18] sm:$0xff]
    %v1724 = vld [vmem:[%s12] sm:$0x1]
    %v1726 = vlaneseq
    %v1727 = vshrl.u32 %v1726, 7
    %v1728 = vsub.s32 0, %v1727
    %v1729 = vrot.slane %v1724, %v1728
    %v1732 = vsel %vm164, %v1718, 0
    %v1735 = vsel %vm164, %v1719, 0
    %1737 = vmatprep.subr.mxu0 0.0
    %1738 = vmatpush1.msra.mxu0 %v1720
    %1739 = vmatprep.subr.mxu0 0.0
    %1740 = vmatpush1.msra.mxu0 %v1721
    %1741 = vmatprep.subr.mxu0 0.0
    %1742 = vmatpush1.msra.mxu0 %v1722
    %1743 = vmatprep.subr.mxu0 0.0
    %1744 = vmatpush1.msra.mxu0 %v1723
    %1745 = vmatprep.subr.mxu0 0.0
    %1746 = vmatpush1.msra.mxu0 0.0
    %1747 = vmatprep.subr.mxu0 0.0
    %1748 = vmatpush1.msra.mxu0 0.0
    %1749 = vmatprep.subr.mxu0 0.0
    %1750 = vmatpush1.msra.mxu0 0.0
    %1751 = vmatprep.subr.mxu0 0.0
    %1752 = vmatpush1.msra.mxu0 0.0
    %1753 = vmatprep.subr.mxu0 0.0
    %1754 = vmatpush1.msra.mxu0 0.0
    %1755 = vmatprep.subr.mxu0 0.0
    %1756 = vmatpush1.msra.mxu0 0.0
    %1757 = vmatprep.subr.mxu0 0.0
    %1758 = vmatpush1.msra.mxu0 0.0
    %1759 = vmatprep.subr.mxu0 0.0
    %1760 = vmatpush1.msra.mxu0 0.0
    %1761 = vmatprep.subr.mxu0 0.0
    %1762 = vmatpush1.msra.mxu0 0.0
    %1763 = vmatprep.subr.mxu0 0.0
    %1764 = vmatpush1.msra.mxu0 0.0
    %1765 = vmatprep.subr.mxu0 0.0
    %1766 = vmatpush1.msra.mxu0 0.0
    %1767 = vmatprep.subr.mxu0 0.0
    %1768 = vmatpush1.msra.mxu0 0.0
    %1769 = vmatprep.subr.mxu0 0.0
    %1770 = vmatpush1.msra.mxu0 0.0
    %1771 = vmatprep.subr.mxu0 0.0
    %1772 = vmatpush1.msra.mxu0 0.0
    %1773 = vmatprep.subr.mxu0 0.0
    %1774 = vmatpush1.msra.mxu0 0.0
    %1775 = vmatprep.subr.mxu0 0.0
    %1776 = vmatpush1.msra.mxu0 0.0
    %1777 = vmatprep.subr.mxu0 0.0
    %1778 = vmatpush1.msra.mxu0 0.0
    %1779 = vmatprep.subr.mxu0 0.0
    %1780 = vmatpush1.msra.mxu0 0.0
    %1781 = vmatprep.subr.mxu0 0.0
    %1782 = vmatpush1.msra.mxu0 0.0
    %1783 = vmatprep.subr.mxu0 0.0
    %1784 = vmatpush1.msra.mxu0 0.0
    %1785 = vmatprep.subr.mxu0 0.0
    %1786 = vmatpush1.msra.mxu0 0.0
    %1787 = vmatprep.subr.mxu0 0.0
    %1788 = vmatpush1.msra.mxu0 0.0
    %1789 = vmatprep.subr.mxu0 0.0
    %1790 = vmatpush1.msra.mxu0 0.0
    %1791 = vmatprep.subr.mxu0 0.0
    %1792 = vmatpush1.msra.mxu0 0.0
    %1793 = vmatprep.subr.mxu0 0.0
    %1794 = vmatpush1.msra.mxu0 0.0
    %1795 = vmatprep.subr.mxu0 0.0
    %1796 = vmatpush1.msra.mxu0 0.0
    %1797 = vmatprep.subr.mxu0 0.0
    %1798 = vmatpush1.msra.mxu0 0.0
    %1799 = vmatprep.subr.mxu0 0.0
    %1800 = vmatpush1.msra.mxu0 0.0
    %1801 = vmatprep.mubr.f32.mxu0 0.0
    %1802 = vmatmul.mubr.f32.gmra.mrb[0].mxu0 %v1732
    %v1803 = vpop.f32.mrb[0].mxu0
    %v1804 = vadd.f32 %v1729, %v1803
    %v1805 = vpop.f32.mrb[0].mxu0
    %1806 = vmatprep.mubr.f32.mxu0 0.0
    %1807 = vmatmul.mubr.f32.gmra.mrb[0].mxu0 %v1735
    %v1808 = vpop.f32.mrb[0].mxu0
    %v1809 = vadd.f32 %v1729, %v1808
    %v1810 = vpop.f32.mrb[0].mxu0
    %1811 = vdwg.mxu0
    %v1812 = vmul.f32 %v1804, %v1804
    %v1813 = vmul.f32 %v1809, %v1809
    %v1814 = vmul.f32 %v1804, %v1812
    %v1815 = vmul.f32 %v1809, %v1813
    %v1816 = vmul.f32 %v1814, 0.044715
    %v1817 = vmul.f32 %v1815, 0.044715
    %v1818 = vadd.f32 %v1804, %v1816
    %v1819 = vadd.f32 %v1809, %v1817
    %v1820 = vmul.f32 %v1818, 0.7978846
    %v1821 = vmul.f32 %v1819, 0.7978846
    %v1822 = vtanh.pop %v1820
    %v1823 = vtanh.pop %v1821
    %v1824 = vadd.f32 %v1822, 1.0
    %v1825 = vadd.f32 %v1823, 1.0
    %v1826 = vmul.f32 %v1824, 0.5
    %v1827 = vmul.f32 %v1825, 0.5
    %v1828 = vmul.f32 %v1804, %v1826
    %v1829 = vmul.f32 %v1809, %v1827
    %v1830 = vld [vmem:[%s13] sm:$0xff]
    %v1831 = vld [vmem:[%s13 + $0x8] sm:$0xff]
    %v1832 = vld [vmem:[%s13 + $0x10] sm:$0xff]
    %v1833 = vld [vmem:[%s13 + $0x18] sm:$0xff]
    %v1834 = vld [vmem:[%s13 + $0x20] sm:$0xff]
    %v1835 = vld [vmem:[%s13 + $0x28] sm:$0xff]
    %v1836 = vld [vmem:[%s13 + $0x30] sm:$0xff]
    %v1837 = vld [vmem:[%s13 + $0x38] sm:$0xff]
    %v1838 = vld [vmem:[%s14] sm:$0x1]
    %v1840 = vlaneseq
    %v1841 = vshrl.u32 %v1840, 7
    %v1842 = vsub.s32 0, %v1841
    %v1843 = vrot.slane %v1838, %v1842
    %v1846 = vsel %vm80, %v1828, 0
    %v1849 = vsel %vm80, %v1829, 0
    %1851 = vmatprep.subr.mxu0 0.0
    %1852 = vmatpush1.msra.mxu0 %v1830
    %1853 = vmatprep.subr.mxu0 0.0
    %1854 = vmatpush1.msra.mxu0 %v1831
    %1855 = vmatprep.subr.mxu0 0.0
    %1856 = vmatpush1.msra.mxu0 %v1832
    %1857 = vmatprep.subr.mxu0 0.0
    %1858 = vmatpush1.msra.mxu0 %v1833
    %1859 = vmatprep.subr.mxu0 0.0
    %1860 = vmatpush1.msra.mxu0 %v1834
    %1861 = vmatprep.subr.mxu0 0.0
    %1862 = vmatpush1.msra.mxu0 %v1835
    %1863 = vmatprep.subr.mxu0 0.0
    %1864 = vmatpush1.msra.mxu0 %v1836
    %1865 = vmatprep.subr.mxu0 0.0
    %1866 = vmatpush1.msra.mxu0 %v1837
    %1867 = vmatprep.subr.mxu0 0.0
    %1868 = vmatpush1.msra.mxu0 0.0
    %1869 = vmatprep.subr.mxu0 0.0
    %1870 = vmatpush1.msra.mxu0 0.0
    %1871 = vmatprep.subr.mxu0 0.0
    %1872 = vmatpush1.msra.mxu0 0.0
    %1873 = vmatprep.subr.mxu0 0.0
    %1874 = vmatpush1.msra.mxu0 0.0
    %1875 = vmatprep.subr.mxu0 0.0
    %1876 = vmatpush1.msra.mxu0 0.0
    %1877 = vmatprep.subr.mxu0 0.0
    %1878 = vmatpush1.msra.mxu0 0.0
    %1879 = vmatprep.subr.mxu0 0.0
    %1880 = vmatpush1.msra.mxu0 0.0
    %1881 = vmatprep.subr.mxu0 0.0
    %1882 = vmatpush1.msra.mxu0 0.0
    %1883 = vmatprep.subr.mxu0 0.0
    %1884 = vmatpush1.msra.mxu0 0.0
    %1885 = vmatprep.subr.mxu0 0.0
    %1886 = vmatpush1.msra.mxu0 0.0
    %1887 = vmatprep.subr.mxu0 0.0
    %1888 = vmatpush1.msra.mxu0 0.0
    %1889 = vmatprep.subr.mxu0 0.0
    %1890 = vmatpush1.msra.mxu0 0.0
    %1891 = vmatprep.subr.mxu0 0.0
    %1892 = vmatpush1.msra.mxu0 0.0
    %1893 = vmatprep.subr.mxu0 0.0
    %1894 = vmatpush1.msra.mxu0 0.0
    %1895 = vmatprep.subr.mxu0 0.0
    %1896 = vmatpush1.msra.mxu0 0.0
    %1897 = vmatprep.subr.mxu0 0.0
    %1898 = vmatpush1.msra.mxu0 0.0
    %1899 = vmatprep.subr.mxu0 0.0
    %1900 = vmatpush1.msra.mxu0 0.0
    %1901 = vmatprep.subr.mxu0 0.0
    %1902 = vmatpush1.msra.mxu0 0.0
    %1903 = vmatprep.subr.mxu0 0.0
    %1904 = vmatpush1.msra.mxu0 0.0
    %1905 = vmatprep.subr.mxu0 0.0
    %1906 = vmatpush1.msra.mxu0 0.0
    %1907 = vmatprep.subr.mxu0 0.0
    %1908 = vmatpush1.msra.mxu0 0.0
    %1909 = vmatprep.subr.mxu0 0.0
    %1910 = vmatpush1.msra.mxu0 0.0
    %1911 = vmatprep.subr.mxu0 0.0
    %1912 = vmatpush1.msra.mxu0 0.0
    %1913 = vmatprep.subr.mxu0 0.0
    %1914 = vmatpush1.msra.mxu0 0.0
    %1915 = vmatprep.mubr.f32.mxu0 0.0
    %1916 = vmatmul.mubr.f32.gmra.mrb[0].mxu0 %v1846
    %v1917 = vpop.f32.mrb[0].mxu0
    %v1918 = vadd.f32 %v1843, %v1917
    %v1919 = vpop.f32.mrb[0].mxu0
    %1920 = vmatprep.mubr.f32.mxu0 0.0
    %1921 = vmatmul.mubr.f32.gmra.mrb[0].mxu0 %v1849
    %v1922 = vpop.f32.mrb[0].mxu0
    %v1923 = vadd.f32 %v1843, %v1922
    %v1924 = vpop.f32.mrb[0].mxu0
    %1925 = vdwg.mxu0
    %v1926 = vadd.f32 %v1674, %v1918
    %v1927 = vadd.f32 %v1675, %v1923
    %v1928 = vld [vmem:[%s671] sm:$0x1]
    %v1929 = vld [vmem:[%s673] sm:$0x1]
    %v1930 = vsel %vm164, %v1926, 0.0
    %1931 = vadd.xlane.f32.xlu0 %v1930
    %v1932 = vpop.xlane.xlu0 %1931
    %v1933 = vsel %vm164, %v1927, 0.0
    %1934 = vadd.xlane.f32.xlu0 %v1933
    %v1935 = vpop.xlane.xlu0 %1934
    %v1936 = vmul.f32 %v1932, %v171
    %v1937 = vmul.f32 %v1935, %v171
    %v1938 = vsub.f32 %v1926, %v1936
    %v1939 = vsub.f32 %v1927, %v1937
    %v1940 = vmul.f32 %v1938, %v1938
    %v1941 = vmul.f32 %v1939, %v1939
    %v1942 = vsel %vm164, %v1940, 0.0
    %1943 = vadd.xlane.f32.xlu0 %v1942
    %v1944 = vpop.xlane.xlu0 %1943
    %v1945 = vsel %vm164, %v1941, 0.0
    %1946 = vadd.xlane.f32.xlu0 %v1945
    %v1947 = vpop.xlane.xlu0 %1946
    %v1948 = vmul.f32 %v1944, %v171
    %v1949 = vmul.f32 %v1947, %v171
    %v1950 = vadd.f32 %v1948, 1e-05
    %v1951 = vadd.f32 %v1949, 1e-05
    %v1952 = vrsqrt.pop %v1950
    %v1953 = vrsqrt.pop %v1951
    %v1954 = vmul.f32 %v1938, %v1952
    %v1955 = vmul.f32 %v1939, %v1953
    %v1957 = vlaneseq
    %v1958 = vshrl.u32 %v1957, 7
    %v1959 = vsub.s32 0, %v1958
    %v1960 = vrot.slane %v1928, %v1959
    %v1962 = vmul.f32 %v1954, %v1960
    %v1963 = vmul.f32 %v1955, %v1960
    %v1965 = vlaneseq
    %v1966 = vshrl.u32 %v1965, 7
    %v1967 = vsub.s32 0, %v1966
    %v1968 = vrot.slane %v1929, %v1967
    %v1970 = vadd.f32 %v1962, %v1968
    %v1971 = vadd.f32 %v1963, %v1968
    %v1972 = vld [vmem:[%s717] sm:$0xff]
    %v1973 = vld [vmem:[%s717 + $0x8] sm:$0xff]
    %v1974 = vld [vmem:[%s720] sm:$0xff]
    %v1975 = vld [vmem:[%s720 + $0x8] sm:$0xff]
    %1977 = vset.pattern.permute.xlu0 0
    %1978 = vperm.xlu0 %1977, %v1974
    %v1979 = vpop.permute.xlu0 %1978
    %1982 = vset.pattern.permute.xlu0 0
    %1983 = vperm.xlu0 %1982, %v1975
    %v1984 = vpop.permute.xlu0 %1983
    %v1987 = vsel %vm222, %v1972, 0
    %v1990 = vsel %vm222, %v1973, 0
    %1992 = vmatprep.subr.mxu0 0.0
    %1993 = vmatpush1.msra.mxu0 %v1970
    %1994 = vmatprep.subr.mxu0 0.0
    %1995 = vmatpush1.msra.mxu0 %v1971
    %1996 = vmatprep.subr.mxu0 0.0
    %1997 = vmatpush1.msra.mxu0 0.0
    %1998 = vmatprep.subr.mxu0 0.0
    %1999 = vmatpush1.msra.mxu0 0.0
    %2000 = vmatprep.subr.mxu0 0.0
    %2001 = vmatpush1.msra.mxu0 0.0
    %2002 = vmatprep.subr.mxu0 0.0
    %2003 = vmatpush1.msra.mxu0 0.0
    %2004 = vmatprep.subr.mxu0 0.0
    %2005 = vmatpush1.msra.mxu0 0.0
    %2006 = vmatprep.subr.mxu0 0.0
    %2007 = vmatpush1.msra.mxu0 0.0
    %2008 = vmatprep.subr.mxu0 0.0
    %2009 = vmatpush1.msra.mxu0 0.0
    %2010 = vmatprep.subr.mxu0 0.0
    %2011 = vmatpush1.msra.mxu0 0.0
    %2012 = vmatprep.subr.mxu0 0.0
    %2013 = vmatpush1.msra.mxu0 0.0
    %2014 = vmatprep.subr.mxu0 0.0
    %2015 = vmatpush1.msra.mxu0 0.0
    %2016 = vmatprep.subr.mxu0 0.0
    %2017 = vmatpush1.msra.mxu0 0.0
    %2018 = vmatprep.subr.mxu0 0.0
    %2019 = vmatpush1.msra.mxu0 0.0
    %2020 = vmatprep.subr.mxu0 0.0
    %2021 = vmatpush1.msra.mxu0 0.0
    %2022 = vmatprep.subr.mxu0 0.0
    %2023 = vmatpush1.msra.mxu0 0.0
    %2024 = vmatprep.subr.mxu0 0.0
    %2025 = vmatpush1.msra.mxu0 0.0
    %2026 = vmatprep.subr.mxu0 0.0
    %2027 = vmatpush1.msra.mxu0 0.0
    %2028 = vmatprep.subr.mxu0 0.0
    %2029 = vmatpush1.msra.mxu0 0.0
    %2030 = vmatprep.subr.mxu0 0.0
    %2031 = vmatpush1.msra.mxu0 0.0
    %2032 = vmatprep.subr.mxu0 0.0
    %2033 = vmatpush1.msra.mxu0 0.0
    %2034 = vmatprep.subr.mxu0 0.0
    %2035 = vmatpush1.msra.mxu0 0.0
    %2036 = vmatprep.subr.mxu0 0.0
    %2037 = vmatpush1.msra.mxu0 0.0
    %2038 = vmatprep.subr.mxu0 0.0
    %2039 = vmatpush1.msra.mxu0 0.0
    %2040 = vmatprep.subr.mxu0 0.0
    %2041 = vmatpush1.msra.mxu0 0.0
    %2042 = vmatprep.subr.mxu0 0.0
    %2043 = vmatpush1.msra.mxu0 0.0
    %2044 = vmatprep.subr.mxu0 0.0
    %2045 = vmatpush1.msra.mxu0 0.0
    %2046 = vmatprep.subr.mxu0 0.0
    %2047 = vmatpush1.msra.mxu0 0.0
    %2048 = vmatprep.subr.mxu0 0.0
    %2049 = vmatpush1.msra.mxu0 0.0
    %2050 = vmatprep.subr.mxu0 0.0
    %2051 = vmatpush1.msra.mxu0 0.0
    %2052 = vmatprep.subr.mxu0 0.0
    %2053 = vmatpush1.msra.mxu0 0.0
    %2054 = vmatprep.subr.mxu0 0.0
    %2055 = vmatpush1.msra.mxu0 0.0
    %2056 = vmatprep.mubr.f32.mxu0 0.0
    %2057 = vmatmul.mubr.f32.gmra.mrb[0].mxu0 %v1987
    %v2058 = vpop.f32.mrb[0].mxu0
    %v2059 = vadd.f32 %v1979, %v2058
    %v2060 = vpop.f32.mrb[0].mxu0
    %2061 = vmatprep.mubr.f32.mxu0 0.0
    %2062 = vmatmul.mubr.f32.gmra.mrb[0].mxu0 %v1990
    %v2063 = vpop.f32.mrb[0].mxu0
    %v2064 = vadd.f32 %v1984, %v2063
    %v2065 = vpop.f32.mrb[0].mxu0
    %2066 = vdwg.mxu0
    %v2067 = vmul.f32 %v2059, %v2059
    %v2068 = vmul.f32 %v2064, %v2064
    %v2069 = vmul.f32 %v2059, %v2067
    %v2070 = vmul.f32 %v2064, %v2068
    %v2071 = vmul.f32 %v2069, 0.044715
    %v2072 = vmul.f32 %v2070, 0.044715
    %v2073 = vadd.f32 %v2059, %v2071
    %v2074 = vadd.f32 %v2064, %v2072
    %v2075 = vmul.f32 %v2073, 0.7978846
    %v2076 = vmul.f32 %v2074, 0.7978846
    %v2077 = vtanh.pop %v2075
    %v2078 = vtanh.pop %v2076
    %v2079 = vadd.f32 %v2077, 1.0
    %v2080 = vadd.f32 %v2078, 1.0
    %v2081 = vmul.f32 %v2079, 0.5
    %v2082 = vmul.f32 %v2080, 0.5
    %v2083 = vmul.f32 %v2059, %v2081
    %v2084 = vmul.f32 %v2064, %v2082
    %v2085 = vld [vmem:[%s832] sm:$0xff]
    %v2086 = vld [vmem:[%s832 + $0x8] sm:$0xff]
    %v2087 = vld [vmem:[%s835] sm:$0xff]
    %v2088 = vld [vmem:[%s835 + $0x8] sm:$0xff]
    %2090 = vset.pattern.permute.xlu0 0
    %2091 = vperm.xlu0 %2090, %v2087
    %v2092 = vpop.permute.xlu0 %2091
    %2095 = vset.pattern.permute.xlu0 0
    %2096 = vperm.xlu0 %2095, %v2088
    %v2097 = vpop.permute.xlu0 %2096
    %v2100 = vsel %vm222, %v2085, 0
    %v2103 = vsel %vm222, %v2086, 0
    %2105 = vmatprep.subr.mxu0 0.0
    %2106 = vmatpush1.msra.mxu0 %v2083
    %2107 = vmatprep.subr.mxu0 0.0
    %2108 = vmatpush1.msra.mxu0 %v2084
    %2109 = vmatprep.subr.mxu0 0.0
    %2110 = vmatpush1.msra.mxu0 0.0
    %2111 = vmatprep.subr.mxu0 0.0
    %2112 = vmatpush1.msra.mxu0 0.0
    %2113 = vmatprep.subr.mxu0 0.0
    %2114 = vmatpush1.msra.mxu0 0.0
    %2115 = vmatprep.subr.mxu0 0.0
    %2116 = vmatpush1.msra.mxu0 0.0
    %2117 = vmatprep.subr.mxu0 0.0
    %2118 = vmatpush1.msra.mxu0 0.0
    %2119 = vmatprep.subr.mxu0 0.0
    %2120 = vmatpush1.msra.mxu0 0.0
    %2121 = vmatprep.subr.mxu0 0.0
    %2122 = vmatpush1.msra.mxu0 0.0
    %2123 = vmatprep.subr.mxu0 0.0
    %2124 = vmatpush1.msra.mxu0 0.0
    %2125 = vmatprep.subr.mxu0 0.0
    %2126 = vmatpush1.msra.mxu0 0.0
    %2127 = vmatprep.subr.mxu0 0.0
    %2128 = vmatpush1.msra.mxu0 0.0
    %2129 = vmatprep.subr.mxu0 0.0
    %2130 = vmatpush1.msra.mxu0 0.0
    %2131 = vmatprep.subr.mxu0 0.0
    %2132 = vmatpush1.msra.mxu0 0.0
    %2133 = vmatprep.subr.mxu0 0.0
    %2134 = vmatpush1.msra.mxu0 0.0
    %2135 = vmatprep.subr.mxu0 0.0
    %2136 = vmatpush1.msra.mxu0 0.0
    %2137 = vmatprep.subr.mxu0 0.0
    %2138 = vmatpush1.msra.mxu0 0.0
    %2139 = vmatprep.subr.mxu0 0.0
    %2140 = vmatpush1.msra.mxu0 0.0
    %2141 = vmatprep.subr.mxu0 0.0
    %2142 = vmatpush1.msra.mxu0 0.0
    %2143 = vmatprep.subr.mxu0 0.0
    %2144 = vmatpush1.msra.mxu0 0.0
    %2145 = vmatprep.subr.mxu0 0.0
    %2146 = vmatpush1.msra.mxu0 0.0
    %2147 = vmatprep.subr.mxu0 0.0
    %2148 = vmatpush1.msra.mxu0 0.0
    %2149 = vmatprep.subr.mxu0 0.0
    %2150 = vmatpush1.msra.mxu0 0.0
    %2151 = vmatprep.subr.mxu0 0.0
    %2152 = vmatpush1.msra.mxu0 0.0
    %2153 = vmatprep.subr.mxu0 0.0
    %2154 = vmatpush1.msra.mxu0 0.0
    %2155 = vmatprep.subr.mxu0 0.0
    %2156 = vmatpush1.msra.mxu0 0.0
    %2157 = vmatprep.subr.mxu0 0.0
    %2158 = vmatpush1.msra.mxu0 0.0
    %2159 = vmatprep.subr.mxu0 0.0
    %2160 = vmatpush1.msra.mxu0 0.0
    %2161 = vmatprep.subr.mxu0 0.0
    %2162 = vmatpush1.msra.mxu0 0.0
    %2163 = vmatprep.subr.mxu0 0.0
    %2164 = vmatpush1.msra.mxu0 0.0
    %2165 = vmatprep.subr.mxu0 0.0
    %2166 = vmatpush1.msra.mxu0 0.0
    %2167 = vmatprep.subr.mxu0 0.0
    %2168 = vmatpush1.msra.mxu0 0.0
    %2169 = vmatprep.mubr.f32.mxu0 0.0
    %2170 = vmatmul.mubr.f32.gmra.mrb[0].mxu0 %v2100
    %v2171 = vpop.f32.mrb[0].mxu0
    %v2172 = vadd.f32 %v2092, %v2171
    %v2173 = vpop.f32.mrb[0].mxu0
    %2174 = vmatprep.mubr.f32.mxu0 0.0
    %2175 = vmatmul.mubr.f32.gmra.mrb[0].mxu0 %v2103
    %v2176 = vpop.f32.mrb[0].mxu0
    %v2177 = vadd.f32 %v2097, %v2176
    %v2178 = vpop.f32.mrb[0].mxu0
    %2179 = vdwg.mxu0
    %v2180 = vadd.f32 %v1926, %v2172
    %v2181 = vadd.f32 %v1927, %v2177
    %v2182 = vld [vmem:[%s931] sm:$0x1]
    %v2183 = vld [vmem:[%s933] sm:$0x1]
    %v2184 = vsel %vm164, %v2180, 0.0
    %2185 = vadd.xlane.f32.xlu0 %v2184
    %v2186 = vpop.xlane.xlu0 %2185
    %v2187 = vsel %vm164, %v2181, 0.0
    %2188 = vadd.xlane.f32.xlu0 %v2187
    %v2189 = vpop.xlane.xlu0 %2188
    %v2190 = vmul.f32 %v2186, %v171
    %v2191 = vmul.f32 %v2189, %v171
    %v2192 = vsub.f32 %v2180, %v2190
    %v2193 = vsub.f32 %v2181, %v2191
    %v2194 = vmul.f32 %v2192, %v2192
    %v2195 = vmul.f32 %v2193, %v2193
    %v2196 = vsel %vm164, %v2194, 0.0
    %2197 = vadd.xlane.f32.xlu0 %v2196
    %v2198 = vpop.xlane.xlu0 %2197
    %v2199 = vsel %vm164, %v2195, 0.0
    %2200 = vadd.xlane.f32.xlu0 %v2199
    %v2201 = vpop.xlane.xlu0 %2200
    %v2202 = vmul.f32 %v2198, %v171
    %v2203 = vmul.f32 %v2201, %v171
    %v2204 = vadd.f32 %v2202, 1e-05
    %v2205 = vadd.f32 %v2203, 1e-05
    %v2206 = vrsqrt.pop %v2204
    %v2207 = vrsqrt.pop %v2205
    %v2208 = vmul.f32 %v2192, %v2206
    %v2209 = vmul.f32 %v2193, %v2207
    %v2211 = vlaneseq
    %v2212 = vshrl.u32 %v2211, 7
    %v2213 = vsub.s32 0, %v2212
    %v2214 = vrot.slane %v2182, %v2213
    %v2216 = vmul.f32 %v2208, %v2214
    %v2217 = vmul.f32 %v2209, %v2214
    %v2219 = vlaneseq
    %v2220 = vshrl.u32 %v2219, 7
    %v2221 = vsub.s32 0, %v2220
    %v2222 = vrot.slane %v2183, %v2221
    %v2224 = vadd.f32 %v2216, %v2222
    %v2225 = vadd.f32 %v2217, %v2222
    %v2226 = vld [vmem:[%s977] sm:$0xff]
    %v2227 = vld [vmem:[%s977 + $0x8] sm:$0xff]
    %v2228 = vld [vmem:[%s977 + $0x10] sm:$0xff]
    %v2229 = vld [vmem:[%s977 + $0x18] sm:$0xff]
    %v2230 = vld [vmem:[%s982] sm:$0x1]
    %v2232 = vlaneseq
    %v2233 = vshrl.u32 %v2232, 7
    %v2234 = vsub.s32 0, %v2233
    %v2235 = vrot.slane %v2230, %v2234
    %v2238 = vsel %vm164, %v2224, 0
    %v2241 = vsel %vm164, %v2225, 0
    %2243 = vmatprep.subr.mxu0 0.0
    %2244 = vmatpush1.msra.mxu0 %v2226
    %2245 = vmatprep.subr.mxu0 0.0
    %2246 = vmatpush1.msra.mxu0 %v2227
    %2247 = vmatprep.subr.mxu0 0.0
    %2248 = vmatpush1.msra.mxu0 %v2228
    %2249 = vmatprep.subr.mxu0 0.0
    %2250 = vmatpush1.msra.mxu0 %v2229
    %2251 = vmatprep.subr.mxu0 0.0
    %2252 = vmatpush1.msra.mxu0 0.0
    %2253 = vmatprep.subr.mxu0 0.0
    %2254 = vmatpush1.msra.mxu0 0.0
    %2255 = vmatprep.subr.mxu0 0.0
    %2256 = vmatpush1.msra.mxu0 0.0
    %2257 = vmatprep.subr.mxu0 0.0
    %2258 = vmatpush1.msra.mxu0 0.0
    %2259 = vmatprep.subr.mxu0 0.0
    %2260 = vmatpush1.msra.mxu0 0.0
    %2261 = vmatprep.subr.mxu0 0.0
    %2262 = vmatpush1.msra.mxu0 0.0
    %2263 = vmatprep.subr.mxu0 0.0
    %2264 = vmatpush1.msra.mxu0 0.0
    %2265 = vmatprep.subr.mxu0 0.0
    %2266 = vmatpush1.msra.mxu0 0.0
    %2267 = vmatprep.subr.mxu0 0.0
    %2268 = vmatpush1.msra.mxu0 0.0
    %2269 = vmatprep.subr.mxu0 0.0
    %2270 = vmatpush1.msra.mxu0 0.0
    %2271 = vmatprep.subr.mxu0 0.0
    %2272 = vmatpush1.msra.mxu0 0.0
    %2273 = vmatprep.subr.mxu0 0.0
    %2274 = vmatpush1.msra.mxu0 0.0
    %2275 = vmatprep.subr.mxu0 0.0
    %2276 = vmatpush1.msra.mxu0 0.0
    %2277 = vmatprep.subr.mxu0 0.0
    %2278 = vmatpush1.msra.mxu0 0.0
    %2279 = vmatprep.subr.mxu0 0.0
    %2280 = vmatpush1.msra.mxu0 0.0
    %2281 = vmatprep.subr.mxu0 0.0
    %2282 = vmatpush1.msra.mxu0 0.0
    %2283 = vmatprep.subr.mxu0 0.0
    %2284 = vmatpush1.msra.mxu0 0.0
    %2285 = vmatprep.subr.mxu0 0.0
    %2286 = vmatpush1.msra.mxu0 0.0
    %2287 = vmatprep.subr.mxu0 0.0
    %2288 = vmatpush1.msra.mxu0 0.0
    %2289 = vmatprep.subr.mxu0 0.0
    %2290 = vmatpush1.msra.mxu0 0.0
    %2291 = vmatprep.subr.mxu0 0.0
    %2292 = vmatpush1.msra.mxu0 0.0
    %2293 = vmatprep.subr.mxu0 0.0
    %2294 = vmatpush1.msra.mxu0 0.0
    %2295 = vmatprep.subr.mxu0 0.0
    %2296 = vmatpush1.msra.mxu0 0.0
    %2297 = vmatprep.subr.mxu0 0.0
    %2298 = vmatpush1.msra.mxu0 0.0
    %2299 = vmatprep.subr.mxu0 0.0
    %2300 = vmatpush1.msra.mxu0 0.0
    %2301 = vmatprep.subr.mxu0 0.0
    %2302 = vmatpush1.msra.mxu0 0.0
    %2303 = vmatprep.subr.mxu0 0.0
    %2304 = vmatpush1.msra.mxu0 0.0
    %2305 = vmatprep.subr.mxu0 0.0
    %2306 = vmatpush1.msra.mxu0 0.0
    %2307 = vmatprep.mubr.f32.mxu0 0.0
    %2308 = vmatmul.mubr.f32.gmra.mrb[0].mxu0 %v2238
    %v2309 = vpop.f32.mrb[0].mxu0
    %v2310 = vadd.f32 %v2235, %v2309
    %v2311 = vpop.f32.mrb[0].mxu0
    %2312 = vmatprep.mubr.f32.mxu0 0.0
    %2313 = vmatmul.mubr.f32.gmra.mrb[0].mxu0 %v2241
    %v2314 = vpop.f32.mrb[0].mxu0
    %v2315 = vadd.f32 %v2235, %v2314
    %v2316 = vpop.f32.mrb[0].mxu0
    %2317 = vdwg.mxu0
    %v2318 = vmul.f32 %v2310, %v2310
    %v2319 = vmul.f32 %v2315, %v2315
    %v2320 = vmul.f32 %v2310, %v2318
    %v2321 = vmul.f32 %v2315, %v2319
    %v2322 = vmul.f32 %v2320, 0.044715
    %v2323 = vmul.f32 %v2321, 0.044715
    %v2324 = vadd.f32 %v2310, %v2322
    %v2325 = vadd.f32 %v2315, %v2323
    %v2326 = vmul.f32 %v2324, 0.7978846
    %v2327 = vmul.f32 %v2325, 0.7978846
    %v2328 = vtanh.pop %v2326
    %v2329 = vtanh.pop %v2327
    %v2330 = vadd.f32 %v2328, 1.0
    %v2331 = vadd.f32 %v2329, 1.0
    %v2332 = vmul.f32 %v2330, 0.5
    %v2333 = vmul.f32 %v2331, 0.5
    %v2334 = vmul.f32 %v2310, %v2332
    %v2335 = vmul.f32 %v2315, %v2333
    %v2336 = vld [vmem:[%s1089] sm:$0xff]
    %v2337 = vld [vmem:[%s1089 + $0x8] sm:$0xff]
    %v2338 = vld [vmem:[%s1089 + $0x10] sm:$0xff]
    %v2339 = vld [vmem:[%s1089 + $0x18] sm:$0xff]
    %v2340 = vld [vmem:[%s1089 + $0x20] sm:$0xff]
    %v2341 = vld [vmem:[%s1089 + $0x28] sm:$0xff]
    %v2342 = vld [vmem:[%s1089 + $0x30] sm:$0xff]
    %v2343 = vld [vmem:[%s1089 + $0x38] sm:$0xff]
    %v2344 = vld [vmem:[%s1098] sm:$0x1]
    %v2346 = vlaneseq
    %v2347 = vshrl.u32 %v2346, 7
    %v2348 = vsub.s32 0, %v2347
    %v2349 = vrot.slane %v2344, %v2348
    %v2352 = vsel %vm80, %v2334, 0
    %v2355 = vsel %vm80, %v2335, 0
    %2357 = vmatprep.subr.mxu0 0.0
    %2358 = vmatpush1.msra.mxu0 %v2336
    %2359 = vmatprep.subr.mxu0 0.0
    %2360 = vmatpush1.msra.mxu0 %v2337
    %2361 = vmatprep.subr.mxu0 0.0
    %2362 = vmatpush1.msra.mxu0 %v2338
    %2363 = vmatprep.subr.mxu0 0.0
    %2364 = vmatpush1.msra.mxu0 %v2339
    %2365 = vmatprep.subr.mxu0 0.0
    %2366 = vmatpush1.msra.mxu0 %v2340
    %2367 = vmatprep.subr.mxu0 0.0
    %2368 = vmatpush1.msra.mxu0 %v2341
    %2369 = vmatprep.subr.mxu0 0.0
    %2370 = vmatpush1.msra.mxu0 %v2342
    %2371 = vmatprep.subr.mxu0 0.0
    %2372 = vmatpush1.msra.mxu0 %v2343
    %2373 = vmatprep.subr.mxu0 0.0
    %2374 = vmatpush1.msra.mxu0 0.0
    %2375 = vmatprep.subr.mxu0 0.0
    %2376 = vmatpush1.msra.mxu0 0.0
    %2377 = vmatprep.subr.mxu0 0.0
    %2378 = vmatpush1.msra.mxu0 0.0
    %2379 = vmatprep.subr.mxu0 0.0
    %2380 = vmatpush1.msra.mxu0 0.0
    %2381 = vmatprep.subr.mxu0 0.0
    %2382 = vmatpush1.msra.mxu0 0.0
    %2383 = vmatprep.subr.mxu0 0.0
    %2384 = vmatpush1.msra.mxu0 0.0
    %2385 = vmatprep.subr.mxu0 0.0
    %2386 = vmatpush1.msra.mxu0 0.0
    %2387 = vmatprep.subr.mxu0 0.0
    %2388 = vmatpush1.msra.mxu0 0.0
    %2389 = vmatprep.subr.mxu0 0.0
    %2390 = vmatpush1.msra.mxu0 0.0
    %2391 = vmatprep.subr.mxu0 0.0
    %2392 = vmatpush1.msra.mxu0 0.0
    %2393 = vmatprep.subr.mxu0 0.0
    %2394 = vmatpush1.msra.mxu0 0.0
    %2395 = vmatprep.subr.mxu0 0.0
    %2396 = vmatpush1.msra.mxu0 0.0
    %2397 = vmatprep.subr.mxu0 0.0
    %2398 = vmatpush1.msra.mxu0 0.0
    %2399 = vmatprep.subr.mxu0 0.0
    %2400 = vmatpush1.msra.mxu0 0.0
    %2401 = vmatprep.subr.mxu0 0.0
    %2402 = vmatpush1.msra.mxu0 0.0
    %2403 = vmatprep.subr.mxu0 0.0
    %2404 = vmatpush1.msra.mxu0 0.0
    %2405 = vmatprep.subr.mxu0 0.0
    %2406 = vmatpush1.msra.mxu0 0.0
    %2407 = vmatprep.subr.mxu0 0.0
    %2408 = vmatpush1.msra.mxu0 0.0
    %2409 = vmatprep.subr.mxu0 0.0
    %2410 = vmatpush1.msra.mxu0 0.0
    %2411 = vmatprep.subr.mxu0 0.0
    %2412 = vmatpush1.msra.mxu0 0.0
    %2413 = vmatprep.subr.mxu0 0.0
    %2414 = vmatpush1.msra.mxu0 0.0
    %2415 = vmatprep.subr.mxu0 0.0
    %2416 = vmatpush1.msra.mxu0 0.0
    %2417 = vmatprep.subr.mxu0 0.0
    %2418 = vmatpush1.msra.mxu0 0.0
    %2419 = vmatprep.subr.mxu0 0.0
    %2420 = vmatpush1.msra.mxu0 0.0
    %2421 = vmatprep.mubr.f32.mxu0 0.0
    %2422 = vmatmul.mubr.f32.gmra.mrb[0].mxu0 %v2352
    %v2423 = vpop.f32.mrb[0].mxu0
    %v2424 = vadd.f32 %v2349, %v2423
    %v2425 = vpop.f32.mrb[0].mxu0
    %2426 = vmatprep.mubr.f32.mxu0 0.0
    %2427 = vmatmul.mubr.f32.gmra.mrb[0].mxu0 %v2355
    %v2428 = vpop.f32.mrb[0].mxu0
    %v2429 = vadd.f32 %v2349, %v2428
    %v2430 = vpop.f32.mrb[0].mxu0
    %2431 = vdwg.mxu0
    %v2432 = vadd.f32 %v2180, %v2424
    %v2433 = vadd.f32 %v2181, %v2429
    %v2434 = vld [vmem:[%s15] sm:$0x1]
    %v2435 = vld [vmem:[%s16] sm:$0x1]
    %v2436 = vsel %vm164, %v2432, 0.0
    %2437 = vadd.xlane.f32.xlu0 %v2436
    %v2438 = vpop.xlane.xlu0 %2437
    %v2439 = vsel %vm164, %v2433, 0.0
    %2440 = vadd.xlane.f32.xlu0 %v2439
    %v2441 = vpop.xlane.xlu0 %2440
    %v2442 = vmul.f32 %v2438, %v171
    %v2443 = vmul.f32 %v2441, %v171
    %v2444 = vsub.f32 %v2432, %v2442
    %v2445 = vsub.f32 %v2433, %v2443
    %v2446 = vmul.f32 %v2444, %v2444
    %v2447 = vmul.f32 %v2445, %v2445
    %v2448 = vsel %vm164, %v2446, 0.0
    %2449 = vadd.xlane.f32.xlu0 %v2448
    %v2450 = vpop.xlane.xlu0 %2449
    %v2451 = vsel %vm164, %v2447, 0.0
    %2452 = vadd.xlane.f32.xlu0 %v2451
    %v2453 = vpop.xlane.xlu0 %2452
    %v2454 = vmul.f32 %v2450, %v171
    %v2455 = vmul.f32 %v2453, %v171
    %v2456 = vadd.f32 %v2454, 1e-05
    %v2457 = vadd.f32 %v2455, 1e-05
    %v2458 = vrsqrt.pop %v2456
    %v2459 = vrsqrt.pop %v2457
    %v2460 = vmul.f32 %v2444, %v2458
    %v2461 = vmul.f32 %v2445, %v2459
    %v2463 = vlaneseq
    %v2464 = vshrl.u32 %v2463, 7
    %v2465 = vsub.s32 0, %v2464
    %v2466 = vrot.slane %v2434, %v2465
    %v2468 = vmul.f32 %v2460, %v2466
    %v2469 = vmul.f32 %v2461, %v2466
    %v2471 = vlaneseq
    %v2472 = vshrl.u32 %v2471, 7
    %v2473 = vsub.s32 0, %v2472
    %v2474 = vrot.slane %v2435, %v2473
    %v2476 = vadd.f32 %v2468, %v2474
    %v2477 = vadd.f32 %v2469, %v2474
    %v2478 = vsel %vm164, %v2476, 0.0
    %v2479 = vsel %vm164, %v2477, 0.0
    %v2480 = vadd.f32 %v2478, %v2479
    %v2481 = vrot.slane %v2480, 4
    %v2482 = vadd.f32 %v2480, %v2481
    %v2483 = vrot.slane %v2482, 2
    %v2484 = vadd.f32 %v2482, %v2483
    %v2485 = vrot.slane %v2484, 1
    %v2486 = vadd.f32 %v2484, %v2485
    %v2487 = vmul.f32 %v2486, %v1242
    %v2488 = vld [vmem:[%s17] sm:$0xff]
    %v2489 = vld [vmem:[%s17 + $0x8] sm:$0xff]
    %v2490 = vld [vmem:[%s17 + $0x10] sm:$0xff]
    %v2491 = vld [vmem:[%s17 + $0x18] sm:$0xff]
    %v2492 = vld [vmem:[%s18] sm:$0x1]
    %v2494 = vsel %vm164, %v2487, 0
    %2496 = vmatprep.subr.mxu0 0.0
    %2497 = vmatpush1.msra.mxu0 %v2488
    %2498 = vmatprep.subr.mxu0 0.0
    %2499 = vmatpush1.msra.mxu0 %v2489
    %2500 = vmatprep.subr.mxu0 0.0
    %2501 = vmatpush1.msra.mxu0 %v2490
    %2502 = vmatprep.subr.mxu0 0.0
    %2503 = vmatpush1.msra.mxu0 %v2491
    %2504 = vmatprep.subr.mxu0 0.0
    %2505 = vmatpush1.msra.mxu0 0.0
    %2506 = vmatprep.subr.mxu0 0.0
    %2507 = vmatpush1.msra.mxu0 0.0
    %2508 = vmatprep.subr.mxu0 0.0
    %2509 = vmatpush1.msra.mxu0 0.0
    %2510 = vmatprep.subr.mxu0 0.0
    %2511 = vmatpush1.msra.mxu0 0.0
    %2512 = vmatprep.subr.mxu0 0.0
    %2513 = vmatpush1.msra.mxu0 0.0
    %2514 = vmatprep.subr.mxu0 0.0
    %2515 = vmatpush1.msra.mxu0 0.0
    %2516 = vmatprep.subr.mxu0 0.0
    %2517 = vmatpush1.msra.mxu0 0.0
    %2518 = vmatprep.subr.mxu0 0.0
    %2519 = vmatpush1.msra.mxu0 0.0
    %2520 = vmatprep.subr.mxu0 0.0
    %2521 = vmatpush1.msra.mxu0 0.0
    %2522 = vmatprep.subr.mxu0 0.0
    %2523 = vmatpush1.msra.mxu0 0.0
    %2524 = vmatprep.subr.mxu0 0.0
    %2525 = vmatpush1.msra.mxu0 0.0
    %2526 = vmatprep.subr.mxu0 0.0
    %2527 = vmatpush1.msra.mxu0 0.0
    %2528 = vmatprep.subr.mxu0 0.0
    %2529 = vmatpush1.msra.mxu0 0.0
    %2530 = vmatprep.subr.mxu0 0.0
    %2531 = vmatpush1.msra.mxu0 0.0
    %2532 = vmatprep.subr.mxu0 0.0
    %2533 = vmatpush1.msra.mxu0 0.0
    %2534 = vmatprep.subr.mxu0 0.0
    %2535 = vmatpush1.msra.mxu0 0.0
    %2536 = vmatprep.subr.mxu0 0.0
    %2537 = vmatpush1.msra.mxu0 0.0
    %2538 = vmatprep.subr.mxu0 0.0
    %2539 = vmatpush1.msra.mxu0 0.0
    %2540 = vmatprep.subr.mxu0 0.0
    %2541 = vmatpush1.msra.mxu0 0.0
    %2542 = vmatprep.subr.mxu0 0.0
    %2543 = vmatpush1.msra.mxu0 0.0
    %2544 = vmatprep.subr.mxu0 0.0
    %2545 = vmatpush1.msra.mxu0 0.0
    %2546 = vmatprep.subr.mxu0 0.0
    %2547 = vmatpush1.msra.mxu0 0.0
    %2548 = vmatprep.subr.mxu0 0.0
    %2549 = vmatpush1.msra.mxu0 0.0
    %2550 = vmatprep.subr.mxu0 0.0
    %2551 = vmatpush1.msra.mxu0 0.0
    %2552 = vmatprep.subr.mxu0 0.0
    %2553 = vmatpush1.msra.mxu0 0.0
    %2554 = vmatprep.subr.mxu0 0.0
    %2555 = vmatpush1.msra.mxu0 0.0
    %2556 = vmatprep.subr.mxu0 0.0
    %2557 = vmatpush1.msra.mxu0 0.0
    %2558 = vmatprep.subr.mxu0 0.0
    %2559 = vmatpush1.msra.mxu0 0.0
    %2560 = vmatprep.mubr.f32.mxu0 0.0
    %2561 = vmatmul.mubr.f32.gmra.mrb[0].mxu0 %v2494
    %v2562 = vpop.f32.mrb[0].mxu0
    %v2563 = vadd.f32 %v2492, %v2562
    %v2564 = vpop.f32.mrb[0].mxu0
    %2565 = vdwg.mxu0
    %s2566 = scalar_lea.vmem [#allocation2], 1
    %2567 = vst [vmem:[%s2566] sm:$0x1] %v2563
    // Predicated region
    $region78: #{forward.1} parent=1 // pred_check
      _
    $region79: #{forward.1} parent=1 // pred_check_branch
      %2569 = sbr.rel (0) target = $region81
    $region80: #{forward.1} parent=1 // pred_region
      %s2571 = ssub.s32 32, 32
      %2572 = vsyncadd [#allocation3], %s2571
      %s2573 = sshll.u32 [#allocation2], 4
      %s2574 = int_to_ptr.vmem [resolvable:$true] %s2573
      %2579 = dma.vmem_to_hbm [thread:$0]  %s2574, 32, %s19, [#allocation3], 16, 16, 1
    $region81: #{forward.1} parent=1 // pred_fallthru
      _
    // Predicated region
    $region82: #{forward.1} parent=1 // pred_check
      _
    $region83: #{forward.1} parent=1 // pred_check_branch
      %2581 = sbr.rel (0) target = $region85
    $region84: #{forward.1} parent=1 // pred_region
      %2582 = dma.done [#allocation3], 32
    $region85: #{forward.1} parent=1 // pred_fallthru
      _
    %2583 = vsyncpa [#allocation3], 1

</llo_original>
